<compile_context>
chip_gen: v7x
topology: tpu7x:2x2x1
jax: 0.10.0
libtpu: 0.0.40
codegen_flags: <defaults>
</compile_context>

<pallas_src>
import numpy as np
import jax
import jax.numpy as jnp
from jax.experimental import pallas as pl
from jax.experimental.pallas import tpu as pltpu

_BN_EPS = 1e-5
_TARGET_TM = 1024   # token-tile target (multiple of 256 for the MXU)
_LANE = 128         # TPU lane width; default channel alignment


def _round_up(n, m):
    return ((n + m - 1) // m) * m


def _cdiv(a, b):
    return -(-a // b)


def _embed(a, rows, cols):
    """Zero-pad a 2-D array up to [rows, cols] (host/trace-time weight prep)."""
    return jnp.pad(a, ((0, rows - a.shape[0]), (0, cols - a.shape[1])))


# ----------------------------------------------------------------------------
# Hardware-aware knobs (generation-aware VMEM budgeting, Buffered(1) probe)
# ----------------------------------------------------------------------------
_VMEM_CAP = None
_BUFFERED_ONE = None


def _vmem_capacity_bytes():
    """Physical VMEM per TensorCore (v5e/v6e 128 MiB, v7x 64 MiB)."""
    global _VMEM_CAP
    if _VMEM_CAP is None:
        cap = None
        try:
            info = pltpu.get_tpu_info()
            cap = getattr(info, "vmem_capacity_bytes", None)
        except Exception:
            cap = None
        _VMEM_CAP = int(cap) if cap else 64 * 1024 * 1024   # v7x-safe fallback
    return _VMEM_CAP


def _vmem_limit_bytes():
    # Raise the scoped-VMEM limit explicitly (defaults are only 16 MiB on v5e /
    # 32 MiB on v6e/v7x), leaving ~10% headroom for compiler-internal scratch.
    return min(int(_vmem_capacity_bytes() * 0.9), 100 * 1024 * 1024)


def _buffered_one_supported():
    """One-time probe: does pipeline_mode=pl.Buffered(1) lower & run here?

    Buffered(1) halves the VMEM footprint of resident weights (their index_map
    is constant, so the second pipeline buffer is dead weight).  If the probe
    fails for any reason we fall back to the default double-buffered spec,
    which is always correct.
    """
    global _BUFFERED_ONE
    if _BUFFERED_ONE is not None:
        return _BUFFERED_ONE
    try:
        def k(x_ref, w_ref, b_ref, o_ref):
            o_ref[...] = x_ref[...] + w_ref[...] + b_ref[...]

        res = pl.pallas_call(
            k,
            out_shape=jax.ShapeDtypeStruct((16, 128), jnp.float32),
            grid_spec=pltpu.PrefetchScalarGridSpec(
                num_scalar_prefetch=0,
                grid=(2,),
                in_specs=[
                    pl.BlockSpec((8, 128), lambda i: (i, 0)),
                    pl.BlockSpec((8, 128), lambda i: (0, 0),
                                 pipeline_mode=pl.Buffered(1)),
                    pl.BlockSpec((1, 128), lambda i: (0, 0),
                                 pipeline_mode=pl.Buffered(1)),
                ],
                out_specs=pl.BlockSpec((8, 128), lambda i: (i, 0)),
            ),
        )(jnp.zeros((16, 128), jnp.float32),
          jnp.ones((8, 128), jnp.float32),
          jnp.ones((1, 128), jnp.float32))
        np.asarray(res)   # raises if we're inside a trace or the run failed
        _BUFFERED_ONE = True
    except Exception:
        _BUFFERED_ONE = False
    return _BUFFERED_ONE


def _weight_spec(shape):
    """Constant-index (grid-resident) BlockSpec for weights/biases."""
    index_map = lambda i: (0,) * len(shape)
    if _buffered_one_supported():
        return pl.BlockSpec(shape, index_map, pipeline_mode=pl.Buffered(1))
    return pl.BlockSpec(shape, index_map)


def _leaf_vmem_bytes(tm, x_cp, child_cps, out_cp, act_bytes, w_bytes, w_bufs):
    """Honest VMEM estimate for one fused leaf at token tile `tm`.

    Counts: lane-rounded streamed inputs x2 buffers, output x2 buffers,
    weights x w_bufs buffers, and the f32 x1/x2/accumulator intermediates.
    """
    lane = lambda c: _round_up(c, _LANE)
    stream_in = 2 * tm * act_bytes * (lane(x_cp) + sum(lane(c) for c in child_cps))
    stream_out = 2 * tm * act_bytes * lane(out_cp)
    w_rows = (lane(x_cp) + lane(out_cp)                       # W1, W2
              + 2 * lane(out_cp)                              # root parts for x2, x1
              + sum(lane(c) for c in child_cps) + lane(x_cp))  # child parts (+x_extra worst case)
    weights = w_bufs * (w_rows * lane(out_cp) + 4 * lane(out_cp)) * w_bytes
    interm = 3 * tm * lane(out_cp) * 4                        # f32 x1 / x2 / acc
    return stream_in + stream_out + weights + interm


# ----------------------------------------------------------------------------
# Fused leaf kernel: tree1 (conv+BN+ReLU) -> tree2 (conv+BN+ReLU) -> root
# (split-weight conv+BN [+residual] +ReLU), all per token tile, in one kernel.
# ----------------------------------------------------------------------------
def _make_leaf_kernel(num_children, has_x_extra, residual):
    def kernel(*refs):
        it = iter(refs)
        x_ref = next(it)
        child_refs = [next(it) for _ in range(num_children)]
        w1_ref, b1_ref, w2_ref, b2_ref, wr2_ref, wr1_ref = (next(it) for _ in range(6))
        wrx_ref = next(it) if has_x_extra else None
        wrc_refs = [next(it) for _ in range(num_children)]
        br_ref = next(it)
        o_ref = next(it)

        dt = w2_ref.dtype               # bf16 weights -> native bf16 MXU path
        x = x_ref[...]

        # tree1: relu(x @ W1 + b1)      (pointwise conv + folded BN)
        x1 = jnp.maximum(
            jnp.dot(x, w1_ref[...], preferred_element_type=jnp.float32)
            + b1_ref[...], 0.0)
        x1c = x1.astype(dt)
        # tree2: relu(x1 @ W2 + b2)
        x2 = jnp.maximum(
            jnp.dot(x1c, w2_ref[...], preferred_element_type=jnp.float32)
            + b2_ref[...], 0.0)
        x2c = x2.astype(dt)

        # root: conv over concat([x2, x1, *children]) == sum of partial matmuls.
        y = jnp.dot(x2c, wr2_ref[...], preferred_element_type=jnp.float32)
        y = y + jnp.dot(x1c, wr1_ref[...], preferred_element_type=jnp.float32)
        if has_x_extra:
            # De-duplicated child that is identical to x: no extra HBM stream,
            # its root contribution is computed straight from x_ref.
            y = y + jnp.dot(x, wrx_ref[...], preferred_element_type=jnp.float32)
        for c_ref, wc_ref in zip(child_refs, wrc_refs):
            y = y + jnp.dot(c_ref[...], wc_ref[...],
                            preferred_element_type=jnp.float32)
        y = y + br_ref[...]
        if residual:
            y = y + x2                   # residual is x2 (children[0] of Root.forward)
        o_ref[...] = jnp.maximum(y, 0.0).astype(o_ref.dtype)

    return kernel


def fused_leaf(x, children, w1, b1, w2, b2, wr_x2, wr_x1, wr_x_extra,
               wr_children, br, *, residual, tm, vmem_limit_bytes):
    """One pallas_call computing a full levels==1 subtree on padded [T, C]."""
    T, x_c = x.shape
    assert T % tm == 0, "token axis must be pre-padded once by the Tree wrapper"
    cout_p = w1.shape[1]
    grid = (T // tm,)

    def tok_spec(c):
        return pl.BlockSpec((tm, c), lambda i: (i, 0))

    in_specs = [tok_spec(x_c)] + [tok_spec(c.shape[1]) for c in children]
    args = [x, *children]
    for warr in (w1, b1, w2, b2, wr_x2, wr_x1):
        in_specs.append(_weight_spec(warr.shape))
        args.append(warr)
    if wr_x_extra is not None:
        in_specs.append(_weight_spec(wr_x_extra.shape))
        args.append(wr_x_extra)
    for wc in wr_children:
        in_specs.append(_weight_spec(wc.shape))
        args.append(wc)
    in_specs.append(_weight_spec(br.shape))
    args.append(br)

    return pl.pallas_call(
        _make_leaf_kernel(len(children), wr_x_extra is not None, residual),
        out_shape=jax.ShapeDtypeStruct((T, cout_p), x.dtype),
        grid_spec=pltpu.PrefetchScalarGridSpec(
            num_scalar_prefetch=0,
            grid=grid,
            in_specs=in_specs,
            out_specs=tok_spec(cout_p),   # lane-dense when channel_align >= 128
        ),
        compiler_params=pltpu.CompilerParams(
            dimension_semantics=("parallel",),        # v7x: 2 TCs share the token grid
            vmem_limit_bytes=int(vmem_limit_bytes),   # v5e default (16 MiB) is too small
        ),
    )(*args)


# ----------------------------------------------------------------------------
# Deterministic parameter construction (Conv1d k=1 weight + BatchNorm1d, folded)
# ----------------------------------------------------------------------------
def _make_conv_bn_params(key, cin, cout, cin_p, cout_p, dtype):
    k_w, k_g, k_b = jax.random.split(key, 3)
    # PyTorch Conv1d weight is [Cout, Cin, 1]; stored here as its transpose [Cin, Cout].
    w = jax.random.normal(k_w, (cin, cout), jnp.float32) * 0.1
    gamma = 1.0 + 0.1 * jax.random.normal(k_g, (cout,), jnp.float32)
    beta = 0.1 * jax.random.normal(k_b, (cout,), jnp.float32)
    running_mean = jnp.zeros((cout,), jnp.float32)   # TODO(synk): real checkpoint stats
    running_var = jnp.ones((cout,), jnp.float32)
    scale = gamma / jnp.sqrt(running_var + _BN_EPS)
    w_log = w * scale[None, :]                    # logical folded weight (f32)
    b_log = (beta - running_mean * scale)[None, :]
    # Lane-aligned, zero-padded copies in the kernel dtype (host-side prep).
    w_pad = _embed(w_log, cin_p, cout_p).astype(dtype)
    b_pad = _embed(b_log, 1, cout_p).astype(dtype)
    return w_log, b_log, w_pad, b_pad


# ----------------------------------------------------------------------------
# Module mirrors (operate on [T, C] tensors)
# ----------------------------------------------------------------------------
class Block:
    """Stand-in for the unspecified rawnetxt `block`: Conv1d(k=1) + BN + ReLU.

    # TODO(synk): swap in the real rawnetxt block once its definition exists.
    """

    def __init__(self, key, in_channels, out_channels, dilation=1, dsp=True,
                 up_path=True, gate=True, channel_align=_LANE, dtype=jnp.float32):
        del dilation, dsp, up_path, gate   # a pointwise conv ignores these
        cin_p = _round_up(in_channels, channel_align)
        cout_p = _round_up(out_channels, channel_align)
        self.w_log, self.b_log, self.w, self.b = _make_conv_bn_params(
            key, in_channels, out_channels, cin_p, cout_p, dtype)


class Root:
    def __init__(self, key, in_channels, out_channels, kernel_size, residual,
                 channel_align=_LANE, dtype=jnp.float32):
        assert kernel_size == 1, "only root_kernel_size == 1 is implemented"
        # TODO(synk): root_kernel_size > 1 (true 1-D conv window) not implemented.
        cout_p = _round_up(out_channels, channel_align)
        # Keep the LOGICAL folded weight; it is split by concat segments and
        # padded per-segment at the fused leaf (trace-time constants).
        self.w_log, self.b_log, _, self.b_pad = _make_conv_bn_params(
            key, in_channels, out_channels, in_channels, cout_p, dtype)
        self.residual = residual


class Tree:
    """Pallas mirror of rawnetxt.Tree.

    Public __call__ consumes/returns LOGICAL channels-last tokens [T, C].
    Channel + token padding happens ONCE here; padded activations propagate
    through every fused leaf and the result is sliced back only at the end.
    """

    def __init__(self, key, levels, block, in_channels, out_channels, stride=1,
                 level_root=False, root_dim=0, root_kernel_size=1, dilation=1,
                 root_residual=False, dsp=True, up_path=True, gate=True,
                 channel_align=_LANE, param_dtype=jnp.float32):
        if root_dim == 0:
            root_dim = 2 * out_channels
        if level_root:
            root_dim += in_channels
        self.levels = levels
        self.level_root = level_root
        self.root_dim = root_dim
        self.in_channels = in_channels
        self.out_channels = out_channels
        self.channel_align = channel_align
        self.param_dtype = param_dtype
        self._cin_p = _round_up(in_channels, channel_align)
        self._cout_p = _round_up(out_channels, channel_align)

        k1, k2, k3 = jax.random.split(key, 3)
        if levels == 1:
            self.tree1 = block(k1, in_channels, out_channels, dilation=dilation,
                               dsp=dsp, up_path=up_path, gate=gate,
                               channel_align=channel_align, dtype=param_dtype)
            self.tree2 = block(k2, out_channels, out_channels, dilation=dilation,
                               dsp=dsp, up_path=up_path, gate=gate,
                               channel_align=channel_align, dtype=param_dtype)
            self.root = Root(k3, root_dim, out_channels, root_kernel_size,
                             root_residual, channel_align=channel_align,
                             dtype=param_dtype)
        else:
            self.tree1 = Tree(k1, levels - 1, block, in_channels, out_channels,
                              stride, root_dim=0,
                              root_kernel_size=root_kernel_size,
                              dilation=dilation, root_residual=root_residual,
                              dsp=dsp, up_path=up_path, gate=gate,
                              channel_align=channel_align, param_dtype=param_dtype)
            self.tree2 = Tree(k2, levels - 1, block, out_channels, out_channels,
                              root_dim=root_dim + out_channels,
                              root_kernel_size=root_kernel_size,
                              dilation=dilation, root_residual=root_residual,
                              dsp=dsp, up_path=up_path, gate=gate,
                              channel_align=channel_align, param_dtype=param_dtype)
        # downsample / project are constructed in PyTorch but never used in
        # Tree.forward, so they are omitted here.
        _buffered_one_supported()   # warm the probe outside any jit trace

    # -- planning ----------------------------------------------------------
    def _leaf_plans(self, in_dim_p, child_dims_p):
        """Yield (x_dim_p, child_dims_p, out_dim_p) for every fused leaf."""
        child_dims_p = list(child_dims_p)
        if self.level_root:
            child_dims_p.append(in_dim_p)
        if self.levels == 1:
            yield (in_dim_p, tuple(child_dims_p), self._cout_p)
        else:
            yield from self.tree1._leaf_plans(in_dim_p, [])
            child_dims_p.append(self._cout_p)
            yield from self.tree2._leaf_plans(self._cout_p, child_dims_p)

    def _plan(self, T, extra_child_dims_p, act_dtype):
        plans = list(self._leaf_plans(self._cin_p, extra_child_dims_p))
        act_bytes = jnp.dtype(act_dtype).itemsize
        w_bytes = jnp.dtype(self.param_dtype).itemsize
        w_bufs = 1 if _buffered_one_supported() else 2
        cap = _vmem_capacity_bytes()
        budget = int(cap * 0.6)               # headroom for compiler scratch/spills
        vmem_limit = _vmem_limit_bytes()

        tm = min(_TARGET_TM, _round_up(T, 256))
        while tm > 128 and max(
                _leaf_vmem_bytes(tm, x, ch, o, act_bytes, w_bytes, w_bufs)
                for x, ch, o in plans) > budget:
            tm //= 2
        # Guarantee >= 2 token tiles when there is enough work, so both v7x
        # TensorCores get a share under dimension_semantics=("parallel",).
        if T > 128 and _round_up(T, tm) <= tm:
            tm = max(128, _round_up(_cdiv(T, 2), 128))
        T_pad = _round_up(T, tm)
        return tm, T_pad, vmem_limit

    # -- forward -----------------------------------------------------------
    def __call__(self, x, children=None):
        """x: logical [T, Cin] channels-last tokens -> logical [T, Cout]."""
        children = [] if children is None else list(children)   # never mutate caller's list
        T, cin = x.shape
        assert cin == self.in_channels
        ch_log = [c.shape[1] for c in children]
        ch_pad = [_round_up(c, self.channel_align) for c in ch_log]
        tm, T_pad, vmem_limit = self._plan(T, ch_pad, x.dtype)

        # Pad tokens AND channels once, at the top of the tree (single jnp.pad).
        x_p = jnp.pad(x, ((0, T_pad - T), (0, self._cin_p - cin)))
        ch_pairs = [(jnp.pad(c, ((0, T_pad - T), (0, cp - cl))), cl)
                    for c, cl, cp in zip(children, ch_log, ch_pad)]

        out_p = self._forward_padded(x_p, cin, ch_pairs, tm, vmem_limit)
        return out_p[:T, :self.out_channels]   # slice back only at the very end

    def _forward_padded(self, x_p, x_c, children, tm, vmem_limit):
        """children: list of (padded [T_pad, c_p] array, logical channel count)."""
        children = list(children)
        if self.level_root:
            children.append((x_p, x_c))
        if self.levels == 1:
            return self._leaf(x_p, x_c, children, tm, vmem_limit)
        x1 = self.tree1._forward_padded(x_p, x_c, [], tm, vmem_limit)
        children.append((x1, self.out_channels))
        return self.tree2._forward_padded(x1, self.out_channels, children,
                                          tm, vmem_limit)

    def _leaf(self, x_p, x_c, children, tm, vmem_limit):
        cout, cout_p = self.out_channels, self._cout_p
        pdt = self.param_dtype

        # Split the LOGICAL root weight rows by the concat order [x2, x1, *children],
        # then zero-pad each part to the padded width of its stream.  These are
        # trace-time constants -> zero per-step cost.
        seg_log = [cout, cout] + [c for _, c in children]
        seg_pad = [cout_p, cout_p] + [a.shape[1] for a, _ in children]
        offs = [0]
        for d in seg_log:
            offs.append(offs[-1] + d)
        parts = [_embed(self.root.w_log[offs[i]:offs[i + 1]], rp, cout_p).astype(pdt)
                 for i, rp in enumerate(seg_pad)]
        wr_x2, wr_x1 = parts[0], parts[1]

        # De-dup: any child that IS the kernel's x input (the doubled x1 stream
        # at levels>=2) gets its root partial folded into wr_x_extra instead of
        # being streamed again from HBM.
        wr_x_extra = None
        streamed, streamed_w = [], []
        for (arr, _), wpart in zip(children, parts[2:]):
            if arr is x_p:
                wr_x_extra = wpart if wr_x_extra is None else wr_x_extra + wpart
            else:
                streamed.append(arr)
                streamed_w.append(wpart)

        return fused_leaf(
            x_p, streamed,
            self.tree1.w, self.tree1.b, self.tree2.w, self.tree2.b,
            wr_x2, wr_x1, wr_x_extra, streamed_w, self.root.b_pad,
            residual=self.root.residual, tm=tm, vmem_limit_bytes=vmem_limit)


# ----------------------------------------------------------------------------
# Pure-JAX reference (logical weights, explicit concat, f32 math)
# ----------------------------------------------------------------------------
def _ref_pointwise(x, w, b, residual=None):
    y = x @ w + b
    if residual is not None:
        y = y + residual
    return jnp.maximum(y, 0.0)


def _ref_tree(tree, x, children=None):
    children = [] if children is None else list(children)
    if tree.level_root:
        children.append(x)
    if tree.levels == 1:
        x1 = _ref_pointwise(x, tree.tree1.w_log, tree.tree1.b_log)
        x2 = _ref_pointwise(x1, tree.tree2.w_log, tree.tree2.b_log)
        cat = jnp.concatenate([x2, x1, *children], axis=-1)
        res = x2 if tree.root.residual else None
        return _ref_pointwise(cat, tree.root.w_log, tree.root.b_log, res)
    x1 = _ref_tree(tree.tree1, x)
    children.append(x1)
    return _ref_tree(tree.tree2, x1, children=children)


# ----------------------------------------------------------------------------
if __name__ == "__main__":
    key = jax.random.PRNGKey(0)
    k_param, k_x = jax.random.split(key)

    B, C_IN, L = 2, 4, 16     # PyTorch NCL input: (batch, in_channels, length)
    C_OUT = 8

    tree = Tree(k_param, levels=2, block=Block, in_channels=C_IN,
                out_channels=C_OUT, level_root=True, root_kernel_size=1,
                root_residual=True)

    x_ncl = jax.random.normal(k_x, (B, C_IN, L), jnp.float32)

    # NCL -> NLC -> [T, C]  (channels-last token layout for the kernels)
    x_tc = jnp.transpose(x_ncl, (0, 2, 1)).reshape(B * L, C_IN)

    fwd = jax.jit(lambda xt: tree(xt))
    out_tc = jax.block_until_ready(fwd(x_tc))

    # Back to PyTorch NCL layout: (B, C_OUT, L)
    out_ncl = jnp.transpose(out_tc.reshape(B, L, C_OUT), (0, 2, 1))
    out_ncl = jax.block_until_ready(out_ncl)
    assert out_ncl.shape == (B, C_OUT, L)

    # Correctness check against the pure-JAX reference of the same math (f32).
    ref = _ref_tree(tree, x_tc)
    assert jnp.allclose(out_tc, ref, rtol=1e-3, atol=1e-3)

    # bf16 production path: bf16 weights + activation streams, f32 MXU accumulate.
    tree_bf16 = Tree(k_param, levels=2, block=Block, in_channels=C_IN,
                     out_channels=C_OUT, level_root=True, root_kernel_size=1,
                     root_residual=True, param_dtype=jnp.bfloat16)
    out_bf16 = jax.block_until_ready(
        jax.jit(lambda xt: tree_bf16(xt))(x_tc.astype(jnp.bfloat16)))
    assert jnp.allclose(out_bf16.astype(jnp.float32), ref, rtol=1e-1, atol=1e-1)

    print("KERNEL_OK")
</pallas_src>

<mosaic_0001>
module attributes {stable_mosaic.version = 11 : i64} {
  func.func @k(%arg0: i32, %arg1: memref<8x128xf32, #tpu.memory_space<vmem>>, %arg2: memref<8x128xf32, #tpu.memory_space<vmem>>, %arg3: memref<1x128xf32, #tpu.memory_space<vmem>>, %arg4: memref<8x128xf32, #tpu.memory_space<vmem>>) attributes {dimension_semantics = [#tpu.dimension_semantics<arbitrary>], iteration_bounds = array<i64: 2>, scalar_prefetch = 0 : i64, scratch_operands = 0 : i64, tpu.core_type = #tpu.core_type<tc>, window_params = [{transform_indices = @transform_0, window_bounds = array<i64: 8, 128>}, {pipeline_mode = #tpu.pipeline_mode<synchronous>, transform_indices = @transform_1, window_bounds = array<i64: 8, 128>}, {pipeline_mode = #tpu.pipeline_mode<synchronous>, transform_indices = @transform_2, window_bounds = array<i64: 1, 128>}, {transform_indices = @transform_3, window_bounds = array<i64: 8, 128>}]} {
    %c0 = arith.constant 0 : index
    %c0_0 = arith.constant 0 : index
    %0 = vector.load %arg1[%c0, %c0_0] : memref<8x128xf32, #tpu.memory_space<vmem>>, vector<8x128xf32>
    %c0_1 = arith.constant 0 : index
    %c0_2 = arith.constant 0 : index
    %1 = vector.load %arg2[%c0_1, %c0_2] : memref<8x128xf32, #tpu.memory_space<vmem>>, vector<8x128xf32>
    %2 = arith.addf %0, %1 : vector<8x128xf32>
    %c0_3 = arith.constant 0 : index
    %c0_4 = arith.constant 0 : index
    %3 = vector.load %arg3[%c0_3, %c0_4] : memref<1x128xf32, #tpu.memory_space<vmem>>, vector<1x128xf32>
    %4 = vector.broadcast %3 : vector<1x128xf32> to vector<8x128xf32>
    %5 = arith.addf %2, %4 : vector<8x128xf32>
    %c0_5 = arith.constant 0 : index
    %c0_6 = arith.constant 0 : index
    %6 = vector.load %arg4[%c0_5, %c0_6] : memref<8x128xf32, #tpu.memory_space<vmem>>, vector<8x128xf32>
    tpu.vector_store %arg4[%c0_5, %c0_6], %5 {strides = array<i32>} : memref<8x128xf32, #tpu.memory_space<vmem>>, vector<8x128xf32>,
    return
  }
  func.func @transform_0(%arg0: i32) -> (i32, i32) {
    %c0_i32 = arith.constant 0 : i32
    %c0_i32_0 = arith.constant 0 : i32
    return %arg0, %c0_i32 : i32, i32
  }
  func.func @transform_1(%arg0: i32) -> (i32, i32) {
    %c0_i32 = arith.constant 0 : i32
    %c0_i32_0 = arith.constant 0 : i32
    %c0_i32_1 = arith.constant 0 : i32
    return %c0_i32, %c0_i32_0 : i32, i32
  }
  func.func @transform_2(%arg0: i32) -> (i32, i32) {
    %c0_i32 = arith.constant 0 : i32
    %c0_i32_0 = arith.constant 0 : i32
    %c0_i32_1 = arith.constant 0 : i32
    return %c0_i32, %c0_i32_0 : i32, i32
  }
  func.func @transform_3(%arg0: i32) -> (i32, i32) {
    %c0_i32 = arith.constant 0 : i32
    %c0_i32_0 = arith.constant 0 : i32
    return %arg0, %c0_i32 : i32, i32
  }
}

module attributes {stable_mosaic.version = 11 : i64} {
  func.func @kernel(%arg0: i32, %arg1: memref<256x128xf32, #tpu.memory_space<vmem>>, %arg2: memref<256x128xf32, #tpu.memory_space<vmem>>, %arg3: memref<128x128xf32, #tpu.memory_space<vmem>>, %arg4: memref<1x128xf32, #tpu.memory_space<vmem>>, %arg5: memref<128x128xf32, #tpu.memory_space<vmem>>, %arg6: memref<1x128xf32, #tpu.memory_space<vmem>>, %arg7: memref<128x128xf32, #tpu.memory_space<vmem>>, %arg8: memref<128x128xf32, #tpu.memory_space<vmem>>, %arg9: memref<128x128xf32, #tpu.memory_space<vmem>>, %arg10: memref<128x128xf32, #tpu.memory_space<vmem>>, %arg11: memref<1x128xf32, #tpu.memory_space<vmem>>, %arg12: memref<256x128xf32, #tpu.memory_space<vmem>>) attributes {dimension_semantics = [#tpu.dimension_semantics<parallel>], iteration_bounds = array<i64: 1>, scalar_prefetch = 0 : i64, scratch_operands = 0 : i64, tpu.core_type = #tpu.core_type<tc>, window_params = [{transform_indices = @transform_0, window_bounds = array<i64: 256, 128>}, {transform_indices = @transform_1, window_bounds = array<i64: 256, 128>}, {pipeline_mode = #tpu.pipeline_mode<synchronous>, transform_indices = @transform_2, window_bounds = array<i64: 128, 128>}, {pipeline_mode = #tpu.pipeline_mode<synchronous>, transform_indices = @transform_3, window_bounds = array<i64: 1, 128>}, {pipeline_mode = #tpu.pipeline_mode<synchronous>, transform_indices = @transform_4, window_bounds = array<i64: 128, 128>}, {pipeline_mode = #tpu.pipeline_mode<synchronous>, transform_indices = @transform_5, window_bounds = array<i64: 1, 128>}, {pipeline_mode = #tpu.pipeline_mode<synchronous>, transform_indices = @transform_6, window_bounds = array<i64: 128, 128>}, {pipeline_mode = #tpu.pipeline_mode<synchronous>, transform_indices = @transform_7, window_bounds = array<i64: 128, 128>}, {pipeline_mode = #tpu.pipeline_mode<synchronous>, transform_indices = @transform_8, window_bounds = array<i64: 128, 128>}, {pipeline_mode = #tpu.pipeline_mode<synchronous>, transform_indices = @transform_9, window_bounds = array<i64: 128, 128>}, {pipeline_mode = #tpu.pipeline_mode<synchronous>, transform_indices = @transform_10, window_bounds = array<i64: 1, 128>}, {transform_indices = @transform_11, window_bounds = array<i64: 256, 128>}]} {
    %c0 = arith.constant 0 : index
    %c0_0 = arith.constant 0 : index
    %0 = vector.load %arg1[%c0, %c0_0] : memref<256x128xf32, #tpu.memory_space<vmem>>, vector<256x128xf32>
    %c0_1 = arith.constant 0 : index
    %c0_2 = arith.constant 0 : index
    %1 = vector.load %arg3[%c0_1, %c0_2] : memref<128x128xf32, #tpu.memory_space<vmem>>, vector<128x128xf32>
    %cst = arith.constant dense<0.000000e+00> : vector<256x128xf32>
    %2 = tpu.matmul %0, %1, %cst {dimension_numbers = #tpu.dot_dimension_numbers<[1], [0], [0], [1], [0, 0, 1, 1], [], []>} : vector<256x128xf32>, vector<128x128xf32>, vector<256x128xf32> -> vector<256x128xf32>
    %c0_3 = arith.constant 0 : index
    %c0_4 = arith.constant 0 : index
    %3 = vector.load %arg4[%c0_3, %c0_4] : memref<1x128xf32, #tpu.memory_space<vmem>>, vector<1x128xf32>
    %4 = vector.broadcast %3 : vector<1x128xf32> to vector<256x128xf32>
    %5 = arith.addf %2, %4 : vector<256x128xf32>
    %cst_5 = arith.constant 0.000000e+00 : f32
    %6 = vector.broadcast %cst_5 : f32 to vector<256x128xf32>
    %7 = arith.maximumf %5, %6 : vector<256x128xf32>
    %c0_6 = arith.constant 0 : index
    %c0_7 = arith.constant 0 : index
    %8 = vector.load %arg5[%c0_6, %c0_7] : memref<128x128xf32, #tpu.memory_space<vmem>>, vector<128x128xf32>
    %cst_8 = arith.constant dense<0.000000e+00> : vector<256x128xf32>
    %9 = tpu.matmul %7, %8, %cst_8 {dimension_numbers = #tpu.dot_dimension_numbers<[1], [0], [0], [1], [0, 0, 1, 1], [], []>} : vector<256x128xf32>, vector<128x128xf32>, vector<256x128xf32> -> vector<256x128xf32>
    %c0_9 = arith.constant 0 : index
    %c0_10 = arith.constant 0 : index
    %10 = vector.load %arg6[%c0_9, %c0_10] : memref<1x128xf32, #tpu.memory_space<vmem>>, vector<1x128xf32>
    %11 = vector.broadcast %10 : vector<1x128xf32> to vector<256x128xf32>
    %12 = arith.addf %9, %11 : vector<256x128xf32>
    %cst_11 = arith.constant 0.000000e+00 : f32
    %13 = vector.broadcast %cst_11 : f32 to vector<256x128xf32>
    %14 = arith.maximumf %12, %13 : vector<256x128xf32>
    %c0_12 = arith.constant 0 : index
    %c0_13 = arith.constant 0 : index
    %15 = vector.load %arg7[%c0_12, %c0_13] : memref<128x128xf32, #tpu.memory_space<vmem>>, vector<128x128xf32>
    %cst_14 = arith.constant dense<0.000000e+00> : vector<256x128xf32>
    %16 = tpu.matmul %14, %15, %cst_14 {dimension_numbers = #tpu.dot_dimension_numbers<[1], [0], [0], [1], [0, 0, 1, 1], [], []>} : vector<256x128xf32>, vector<128x128xf32>, vector<256x128xf32> -> vector<256x128xf32>
    %c0_15 = arith.constant 0 : index
    %c0_16 = arith.constant 0 : index
    %17 = vector.load %arg8[%c0_15, %c0_16] : memref<128x128xf32, #tpu.memory_space<vmem>>, vector<128x128xf32>
    %cst_17 = arith.constant dense<0.000000e+00> : vector<256x128xf32>
    %18 = tpu.matmul %7, %17, %cst_17 {dimension_numbers = #tpu.dot_dimension_numbers<[1], [0], [0], [1], [0, 0, 1, 1], [], []>} : vector<256x128xf32>, vector<128x128xf32>, vector<256x128xf32> -> vector<256x128xf32>
    %19 = arith.addf %16, %18 : vector<256x128xf32>
    %c0_18 = arith.constant 0 : index
    %c0_19 = arith.constant 0 : index
    %20 = vector.load %arg9[%c0_18, %c0_19] : memref<128x128xf32, #tpu.memory_space<vmem>>, vector<128x128xf32>
    %cst_20 = arith.constant dense<0.000000e+00> : vector<256x128xf32>
    %21 = tpu.matmul %0, %20, %cst_20 {dimension_numbers = #tpu.dot_dimension_numbers<[1], [0], [0], [1], [0, 0, 1, 1], [], []>} : vector<256x128xf32>, vector<128x128xf32>, vector<256x128xf32> -> vector<256x128xf32>
    %22 = arith.addf %19, %21 : vector<256x128xf32>
    %c0_21 = arith.constant 0 : index
    %c0_22 = arith.constant 0 : index
    %23 = vector.load %arg2[%c0_21, %c0_22] : memref<256x128xf32, #tpu.memory_space<vmem>>, vector<256x128xf32>
    %c0_23 = arith.constant 0 : index
    %c0_24 = arith.constant 0 : index
    %24 = vector.load %arg10[%c0_23, %c0_24] : memref<128x128xf32, #tpu.memory_space<vmem>>, vector<128x128xf32>
    %cst_25 = arith.constant dense<0.000000e+00> : vector<256x128xf32>
    %25 = tpu.matmul %23, %24, %cst_25 {dimension_numbers = #tpu.dot_dimension_numbers<[1], [0], [0], [1], [0, 0, 1, 1], [], []>} : vector<256x128xf32>, vector<128x128xf32>, vector<256x128xf32> -> vector<256x128xf32>
    %26 = arith.addf %22, %25 : vector<256x128xf32>
    %c0_26 = arith.constant 0 : index
    %c0_27 = arith.constant 0 : index
    %27 = vector.load %arg11[%c0_26, %c0_27] : memref<1x128xf32, #tpu.memory_space<vmem>>, vector<1x128xf32>
    %28 = vector.broadcast %27 : vector<1x128xf32> to vector<256x128xf32>
    %29 = arith.addf %26, %28 : vector<256x128xf32>
    %30 = arith.addf %29, %14 : vector<256x128xf32>
    %cst_28 = arith.constant 0.000000e+00 : f32
    %31 = vector.broadcast %cst_28 : f32 to vector<256x128xf32>
    %32 = arith.maximumf %30, %31 : vector<256x128xf32>
    %c0_29 = arith.constant 0 : index
    %c0_30 = arith.constant 0 : index
    %33 = vector.load %arg12[%c0_29, %c0_30] : memref<256x128xf32, #tpu.memory_space<vmem>>, vector<256x128xf32>
    tpu.vector_store %arg12[%c0_29, %c0_30], %32 {strides = array<i32>} : memref<256x128xf32, #tpu.memory_space<vmem>>, vector<256x128xf32>,
    return
  }
  func.func @transform_0(%arg0: i32) -> (i32, i32) {
    %c0_i32 = arith.constant 0 : i32
    %c0_i32_0 = arith.constant 0 : i32
    return %arg0, %c0_i32 : i32, i32
  }
  func.func @transform_1(%arg0: i32) -> (i32, i32) {
    %c0_i32 = arith.constant 0 : i32
    %c0_i32_0 = arith.constant 0 : i32
    return %arg0, %c0_i32 : i32, i32
  }
  func.func @transform_2(%arg0: i32) -> (i32, i32) {
    %c0_i32 = arith.constant 0 : i32
    %c0_i32_0 = arith.constant 0 : i32
    %c0_i32_1 = arith.constant 0 : i32
    return %c0_i32, %c0_i32_0 : i32, i32
  }
  func.func @transform_3(%arg0: i32) -> (i32, i32) {
    %c0_i32 = arith.constant 0 : i32
    %c0_i32_0 = arith.constant 0 : i32
    %c0_i32_1 = arith.constant 0 : i32
    return %c0_i32, %c0_i32_0 : i32, i32
  }
  func.func @transform_4(%arg0: i32) -> (i32, i32) {
    %c0_i32 = arith.constant 0 : i32
    %c0_i32_0 = arith.constant 0 : i32
    %c0_i32_1 = arith.constant 0 : i32
    return %c0_i32, %c0_i32_0 : i32, i32
  }
  func.func @transform_5(%arg0: i32) -> (i32, i32) {
    %c0_i32 = arith.constant 0 : i32
    %c0_i32_0 = arith.constant 0 : i32
    %c0_i32_1 = arith.constant 0 : i32
    return %c0_i32, %c0_i32_0 : i32, i32
  }
  func.func @transform_6(%arg0: i32) -> (i32, i32) {
    %c0_i32 = arith.constant 0 : i32
    %c0_i32_0 = arith.constant 0 : i32
    %c0_i32_1 = arith.constant 0 : i32
    return %c0_i32, %c0_i32_0 : i32, i32
  }
  func.func @transform_7(%arg0: i32) -> (i32, i32) {
    %c0_i32 = arith.constant 0 : i32
    %c0_i32_0 = arith.constant 0 : i32
    %c0_i32_1 = arith.constant 0 : i32
    return %c0_i32, %c0_i32_0 : i32, i32
  }
  func.func @transform_8(%arg0: i32) -> (i32, i32) {
    %c0_i32 = arith.constant 0 : i32
    %c0_i32_0 = arith.constant 0 : i32
    %c0_i32_1 = arith.constant 0 : i32
    return %c0_i32, %c0_i32_0 : i32, i32
  }
  func.func @transform_9(%arg0: i32) -> (i32, i32) {
    %c0_i32 = arith.constant 0 : i32
    %c0_i32_0 = arith.constant 0 : i32
    %c0_i32_1 = arith.constant 0 : i32
    return %c0_i32, %c0_i32_0 : i32, i32
  }
  func.func @transform_10(%arg0: i32) -> (i32, i32) {
    %c0_i32 = arith.constant 0 : i32
    %c0_i32_0 = arith.constant 0 : i32
    %c0_i32_1 = arith.constant 0 : i32
    return %c0_i32, %c0_i32_0 : i32, i32
  }
  func.func @transform_11(%arg0: i32) -> (i32, i32) {
    %c0_i32 = arith.constant 0 : i32
    %c0_i32_0 = arith.constant 0 : i32
    return %arg0, %c0_i32 : i32, i32
  }
}

module attributes {stable_mosaic.version = 11 : i64} {
  func.func @kernel(%arg0: i32, %arg1: memref<256x128xf32, #tpu.memory_space<vmem>>, %arg2: memref<128x128xf32, #tpu.memory_space<vmem>>, %arg3: memref<1x128xf32, #tpu.memory_space<vmem>>, %arg4: memref<128x128xf32, #tpu.memory_space<vmem>>, %arg5: memref<1x128xf32, #tpu.memory_space<vmem>>, %arg6: memref<128x128xf32, #tpu.memory_space<vmem>>, %arg7: memref<128x128xf32, #tpu.memory_space<vmem>>, %arg8: memref<1x128xf32, #tpu.memory_space<vmem>>, %arg9: memref<256x128xf32, #tpu.memory_space<vmem>>) attributes {dimension_semantics = [#tpu.dimension_semantics<parallel>], iteration_bounds = array<i64: 1>, scalar_prefetch = 0 : i64, scratch_operands = 0 : i64, tpu.core_type = #tpu.core_type<tc>, window_params = [{transform_indices = @transform_0, window_bounds = array<i64: 256, 128>}, {pipeline_mode = #tpu.pipeline_mode<synchronous>, transform_indices = @transform_1, window_bounds = array<i64: 128, 128>}, {pipeline_mode = #tpu.pipeline_mode<synchronous>, transform_indices = @transform_2, window_bounds = array<i64: 1, 128>}, {pipeline_mode = #tpu.pipeline_mode<synchronous>, transform_indices = @transform_3, window_bounds = array<i64: 128, 128>}, {pipeline_mode = #tpu.pipeline_mode<synchronous>, transform_indices = @transform_4, window_bounds = array<i64: 1, 128>}, {pipeline_mode = #tpu.pipeline_mode<synchronous>, transform_indices = @transform_5, window_bounds = array<i64: 128, 128>}, {pipeline_mode = #tpu.pipeline_mode<synchronous>, transform_indices = @transform_6, window_bounds = array<i64: 128, 128>}, {pipeline_mode = #tpu.pipeline_mode<synchronous>, transform_indices = @transform_7, window_bounds = array<i64: 1, 128>}, {transform_indices = @transform_8, window_bounds = array<i64: 256, 128>}]} {
    %c0 = arith.constant 0 : index
    %c0_0 = arith.constant 0 : index
    %0 = vector.load %arg1[%c0, %c0_0] : memref<256x128xf32, #tpu.memory_space<vmem>>, vector<256x128xf32>
    %c0_1 = arith.constant 0 : index
    %c0_2 = arith.constant 0 : index
    %1 = vector.load %arg2[%c0_1, %c0_2] : memref<128x128xf32, #tpu.memory_space<vmem>>, vector<128x128xf32>
    %cst = arith.constant dense<0.000000e+00> : vector<256x128xf32>
    %2 = tpu.matmul %0, %1, %cst {dimension_numbers = #tpu.dot_dimension_numbers<[1], [0], [0], [1], [0, 0, 1, 1], [], []>} : vector<256x128xf32>, vector<128x128xf32>, vector<256x128xf32> -> vector<256x128xf32>
    %c0_3 = arith.constant 0 : index
    %c0_4 = arith.constant 0 : index
    %3 = vector.load %arg3[%c0_3, %c0_4] : memref<1x128xf32, #tpu.memory_space<vmem>>, vector<1x128xf32>
    %4 = vector.broadcast %3 : vector<1x128xf32> to vector<256x128xf32>
    %5 = arith.addf %2, %4 : vector<256x128xf32>
    %cst_5 = arith.constant 0.000000e+00 : f32
    %6 = vector.broadcast %cst_5 : f32 to vector<256x128xf32>
    %7 = arith.maximumf %5, %6 : vector<256x128xf32>
    %c0_6 = arith.constant 0 : index
    %c0_7 = arith.constant 0 : index
    %8 = vector.load %arg4[%c0_6, %c0_7] : memref<128x128xf32, #tpu.memory_space<vmem>>, vector<128x128xf32>
    %cst_8 = arith.constant dense<0.000000e+00> : vector<256x128xf32>
    %9 = tpu.matmul %7, %8, %cst_8 {dimension_numbers = #tpu.dot_dimension_numbers<[1], [0], [0], [1], [0, 0, 1, 1], [], []>} : vector<256x128xf32>, vector<128x128xf32>, vector<256x128xf32> -> vector<256x128xf32>
    %c0_9 = arith.constant 0 : index
    %c0_10 = arith.constant 0 : index
    %10 = vector.load %arg5[%c0_9, %c0_10] : memref<1x128xf32, #tpu.memory_space<vmem>>, vector<1x128xf32>
    %11 = vector.broadcast %10 : vector<1x128xf32> to vector<256x128xf32>
    %12 = arith.addf %9, %11 : vector<256x128xf32>
    %cst_11 = arith.constant 0.000000e+00 : f32
    %13 = vector.broadcast %cst_11 : f32 to vector<256x128xf32>
    %14 = arith.maximumf %12, %13 : vector<256x128xf32>
    %c0_12 = arith.constant 0 : index
    %c0_13 = arith.constant 0 : index
    %15 = vector.load %arg6[%c0_12, %c0_13] : memref<128x128xf32, #tpu.memory_space<vmem>>, vector<128x128xf32>
    %cst_14 = arith.constant dense<0.000000e+00> : vector<256x128xf32>
    %16 = tpu.matmul %14, %15, %cst_14 {dimension_numbers = #tpu.dot_dimension_numbers<[1], [0], [0], [1], [0, 0, 1, 1], [], []>} : vector<256x128xf32>, vector<128x128xf32>, vector<256x128xf32> -> vector<256x128xf32>
    %c0_15 = arith.constant 0 : index
    %c0_16 = arith.constant 0 : index
    %17 = vector.load %arg7[%c0_15, %c0_16] : memref<128x128xf32, #tpu.memory_space<vmem>>, vector<128x128xf32>
    %cst_17 = arith.constant dense<0.000000e+00> : vector<256x128xf32>
    %18 = tpu.matmul %7, %17, %cst_17 {dimension_numbers = #tpu.dot_dimension_numbers<[1], [0], [0], [1], [0, 0, 1, 1], [], []>} : vector<256x128xf32>, vector<128x128xf32>, vector<256x128xf32> -> vector<256x128xf32>
    %19 = arith.addf %16, %18 : vector<256x128xf32>
    %c0_18 = arith.constant 0 : index
    %c0_19 = arith.constant 0 : index
    %20 = vector.load %arg8[%c0_18, %c0_19] : memref<1x128xf32, #tpu.memory_space<vmem>>, vector<1x128xf32>
    %21 = vector.broadcast %20 : vector<1x128xf32> to vector<256x128xf32>
    %22 = arith.addf %19, %21 : vector<256x128xf32>
    %23 = arith.addf %22, %14 : vector<256x128xf32>
    %cst_20 = arith.constant 0.000000e+00 : f32
    %24 = vector.broadcast %cst_20 : f32 to vector<256x128xf32>
    %25 = arith.maximumf %23, %24 : vector<256x128xf32>
    %c0_21 = arith.constant 0 : index
    %c0_22 = arith.constant 0 : index
    %26 = vector.load %arg9[%c0_21, %c0_22] : memref<256x128xf32, #tpu.memory_space<vmem>>, vector<256x128xf32>
    tpu.vector_store %arg9[%c0_21, %c0_22], %25 {strides = array<i32>} : memref<256x128xf32, #tpu.memory_space<vmem>>, vector<256x128xf32>,
    return
  }
  func.func @transform_0(%arg0: i32) -> (i32, i32) {
    %c0_i32 = arith.constant 0 : i32
    %c0_i32_0 = arith.constant 0 : i32
    return %arg0, %c0_i32 : i32, i32
  }
  func.func @transform_1(%arg0: i32) -> (i32, i32) {
    %c0_i32 = arith.constant 0 : i32
    %c0_i32_0 = arith.constant 0 : i32
    %c0_i32_1 = arith.constant 0 : i32
    return %c0_i32, %c0_i32_0 : i32, i32
  }
  func.func @transform_2(%arg0: i32) -> (i32, i32) {
    %c0_i32 = arith.constant 0 : i32
    %c0_i32_0 = arith.constant 0 : i32
    %c0_i32_1 = arith.constant 0 : i32
    return %c0_i32, %c0_i32_0 : i32, i32
  }
  func.func @transform_3(%arg0: i32) -> (i32, i32) {
    %c0_i32 = arith.constant 0 : i32
    %c0_i32_0 = arith.constant 0 : i32
    %c0_i32_1 = arith.constant 0 : i32
    return %c0_i32, %c0_i32_0 : i32, i32
  }
  func.func @transform_4(%arg0: i32) -> (i32, i32) {
    %c0_i32 = arith.constant 0 : i32
    %c0_i32_0 = arith.constant 0 : i32
    %c0_i32_1 = arith.constant 0 : i32
    return %c0_i32, %c0_i32_0 : i32, i32
  }
  func.func @transform_5(%arg0: i32) -> (i32, i32) {
    %c0_i32 = arith.constant 0 : i32
    %c0_i32_0 = arith.constant 0 : i32
    %c0_i32_1 = arith.constant 0 : i32
    return %c0_i32, %c0_i32_0 : i32, i32
  }
  func.func @transform_6(%arg0: i32) -> (i32, i32) {
    %c0_i32 = arith.constant 0 : i32
    %c0_i32_0 = arith.constant 0 : i32
    %c0_i32_1 = arith.constant 0 : i32
    return %c0_i32, %c0_i32_0 : i32, i32
  }
  func.func @transform_7(%arg0: i32) -> (i32, i32) {
    %c0_i32 = arith.constant 0 : i32
    %c0_i32_0 = arith.constant 0 : i32
    %c0_i32_1 = arith.constant 0 : i32
    return %c0_i32, %c0_i32_0 : i32, i32
  }
  func.func @transform_8(%arg0: i32) -> (i32, i32) {
    %c0_i32 = arith.constant 0 : i32
    %c0_i32_0 = arith.constant 0 : i32
    return %arg0, %c0_i32 : i32, i32
  }
}

</mosaic_0001>

<llo_original>
// kernel: tpu_custom_call.1
$region0: #{tpu_custom_call.1}
  #allocation0 [shape = 'u32[]', space=smem, size = 0x4, offset = 0x4, fixed_abs, tag = 'smem constant byte address 0x4 - core index']
  #allocation1 [shape = 'u32[144,128]{1,0:T(1,128)}', space=vmem, size = 0x12000, scoped, tag = 'internal scratch']
  %s0 = inlined_call_operand.hbm [shape: f32[16,128], index: 0, kind: input, shape index: {}]
  %s1 = inlined_call_operand.hbm [shape: f32[8,128], index: 1, kind: input, shape index: {}]
  %s2 = inlined_call_operand.vmem [shape: f32[1,128], index: 2, kind: input, shape index: {}]
  %s3 = inlined_call_operand.hbm [shape: f32[16,128], index: 3, kind: output, shape index: {}]
  %s4 = sld [smem:[#allocation0]]
  $region53: #{tpu_custom_call.1} parent=0
    _
  %s6 = ssub.s32 1, %s4
  %s7 = scalar_select 0, %s6, %s4
  $region1: #{tpu_custom_call.1} parent=0
    #allocation2 [shape = 'u8[8192]{0}', space=vmem, size = 0x2000, scoped, tag = 'input window, operand 0']
    #allocation3 [shape = 's32[2]{0}', space=sflag, size = 0x8, scoped, tag = 'scoped memory for tpu_custom_call.1']
    #allocation4 [shape = 's32[2]{0}', space=sflag, size = 0x8, scoped, tag = 'scoped memory for tpu_custom_call.1']
    #allocation5 [shape = 'u8[4096]{0}', space=vmem, size = 0x1000, scoped, tag = 'input window, operand 1, single buffered']
    #allocation6 [shape = 's32[1]{0}', space=sflag, size = 0x4, scoped, tag = 'scoped memory for tpu_custom_call.1']
    #allocation7 [shape = 'u8[8192]{0}', space=vmem, size = 0x2000, scoped, tag = 'output window, operand 0']
    %8 = vsyncpa [#allocation3], 0
    %s9 = scalar_lea.sflag [#allocation3], 1
    %10 = vsyncpa %s9, 0
    %11 = vsyncpa [#allocation6], 0
    %12 = vsyncpa [#allocation4], 0
    %s13 = scalar_lea.sflag [#allocation4], 1
    %14 = vsyncpa %s13, 0
    loop: start=0, step=1, limit=4
    $region2: #{tpu_custom_call.1} parent=1 // loop_pre_header
      _
    $region3: #{tpu_custom_call.1} parent=1 // loop_header
      %s16 = sphi 0, %s20
      %p17 = scmp.ge.s32.totalorder %s16, 4
      %s26 = sphi 0, %s28
      %s29 = sphi 0, %s26
      %s30 = sphi 0, %s29
      %s46 = sphi 0, %s30
      %s50 = sphi 0, %s50
      %s52 = sphi 0, %s50
      %s53 = sphi 0, %s52
      %s67 = sphi 0, %s53
      %s71 = sphi 0, %s71
      %s73 = sphi 0, %s71
      %s74 = sphi 0, %s73
      %s88 = sphi 0, %s74
      %s94 = sphi 0, %s96
      %s97 = sphi 0, %s94
      %s98 = sphi 0, %s97
      %s114 = sphi 0, %s98
    $region4: #{tpu_custom_call.1} parent=1 // loop_header_branch
      %19 = sbr.rel (%p17) target = $region8
    $region5: #{tpu_custom_call.1} parent=1 // loop_body
      %s21 = ssub.s32 %s16, 1
      %s22 = ssub.s32 %s16, 2
      %s23 = sadd.s32 %s16, 1
      %s24 = ssub.s32 %s16, %s23
      %p25 = scmp.eq.s32.totalorder %s24, 0
      %s27 = sadd.s32 %s26, 1
      %s28 = scalar_select %p25, %s26, %s27
      %p31 = pneg %p25
      %p32 = scmp.eq.s32.totalorder %s16, 1
      %p33 = por %p31, %p32
      %p34 = scmp.ne.s32.totalorder %s26, %s29
      %p35 = scmp.eq.s32.totalorder %s16, 0
      %p36 = por %p34, %p35
      %p37 = scmp.ne.s32.totalorder %s26, %s29
      %p38 = scmp.eq.s32.totalorder %s21, 1
      %p39 = por %p37, %p38
      %p40 = scmp.ne.s32.totalorder %s29, %s30
      %p41 = scmp.eq.s32.totalorder %s21, 0
      %p42 = por %p40, %p41
      %p43 = scmp.ne.s32.totalorder %s29, %s30
      %p44 = scmp.eq.s32.totalorder %s22, 1
      %p45 = por %p43, %p44
      %p47 = scmp.ne.s32.totalorder %s30, %s46
      %p48 = scmp.eq.s32.totalorder %s22, 0
      %p49 = por %p47, %p48
      %s51 = sadd.s32 %s50, 1
      %p54 = scmp.eq.s32.totalorder %s16, 1
      %p55 = scmp.ne.s32.totalorder %s50, %s52
      %p56 = scmp.eq.s32.totalorder %s16, 0
      %p57 = por %p55, %p56
      %p58 = scmp.ne.s32.totalorder %s50, %s52
      %p59 = scmp.eq.s32.totalorder %s21, 1
      %p60 = por %p58, %p59
      %p61 = scmp.ne.s32.totalorder %s52, %s53
      %p62 = scmp.eq.s32.totalorder %s21, 0
      %p63 = por %p61, %p62
      %p64 = scmp.ne.s32.totalorder %s52, %s53
      %p65 = scmp.eq.s32.totalorder %s22, 1
      %p66 = por %p64, %p65
      %p68 = scmp.ne.s32.totalorder %s53, %s67
      %p69 = scmp.eq.s32.totalorder %s22, 0
      %p70 = por %p68, %p69
      %s72 = sadd.s32 %s71, 1
      %p75 = scmp.eq.s32.totalorder %s16, 1
      %p76 = scmp.ne.s32.totalorder %s71, %s73
      %p77 = scmp.eq.s32.totalorder %s16, 0
      %p78 = por %p76, %p77
      %p79 = scmp.ne.s32.totalorder %s71, %s73
      %p80 = scmp.eq.s32.totalorder %s21, 1
      %p81 = por %p79, %p80
      %p82 = scmp.ne.s32.totalorder %s73, %s74
      %p83 = scmp.eq.s32.totalorder %s21, 0
      %p84 = por %p82, %p83
      %p85 = scmp.ne.s32.totalorder %s73, %s74
      %p86 = scmp.eq.s32.totalorder %s22, 1
      %p87 = por %p85, %p86
      %p89 = scmp.ne.s32.totalorder %s74, %s88
      %p90 = scmp.eq.s32.totalorder %s22, 0
      %p91 = por %p89, %p90
      %s92 = ssub.s32 %s16, %s23
      %p93 = scmp.eq.s32.totalorder %s92, 0
      %s95 = sadd.s32 %s94, 1
      %s96 = scalar_select %p93, %s94, %s95
      %p99 = pneg %p93
      %p100 = scmp.eq.s32.totalorder %s16, 1
      %p101 = por %p99, %p100
      %p102 = scmp.ne.s32.totalorder %s94, %s97
      %p103 = scmp.eq.s32.totalorder %s16, 0
      %p104 = por %p102, %p103
      %p105 = scmp.ne.s32.totalorder %s94, %s97
      %p106 = scmp.eq.s32.totalorder %s21, 1
      %p107 = por %p105, %p106
      %p108 = scmp.ne.s32.totalorder %s97, %s98
      %p109 = scmp.eq.s32.totalorder %s21, 0
      %p110 = por %p108, %p109
      %p111 = scmp.ne.s32.totalorder %s97, %s98
      %p112 = scmp.eq.s32.totalorder %s22, 1
      %p113 = por %p111, %p112
      %p115 = scmp.ne.s32.totalorder %s98, %s114
      %p116 = scmp.eq.s32.totalorder %s22, 0
      %p117 = por %p115, %p116
      %p118 = scmp.le.s32.totalorder 1, %s16
      %p119 = scmp.lt.s32.totalorder %s16, 3
      %p120 = pnand %p118, %p119
      %p121 = pneg %p120
      // Predicated region
      $region9: #{tpu_custom_call.1} parent=5 // pred_check
        _
      $region10: #{tpu_custom_call.1} parent=5 // pred_check_branch
        %123 = sbr.rel (%p120) target = $region12
      $region11: #{tpu_custom_call.1} parent=5 // pred_region
        %s124 = ssub.s32 %s16, 1
        // Predicated region
        $region13: #{tpu_custom_call.1} parent=11 // pred_check
          %p125 = pneg %p63
        $region14: #{tpu_custom_call.1} parent=11 // pred_check_branch
          %127 = sbr.rel (%p125) target = $region16
        $region15: #{tpu_custom_call.1} parent=11 // pred_region
          %s129 = ssub.s32 128, 128
          %130 = vsyncadd [#allocation6], %s129
          %s132 = sshll.u32 [#allocation5], 4
          %s133 = int_to_ptr.vmem [resolvable:$true] %s132
          %135 = dma.hbm_to_vmem [thread:$0]  %s1, 128, %s133, [#allocation6]
        $region16: #{tpu_custom_call.1} parent=11 // pred_fallthru
          _
        // Predicated region
        $region17: #{tpu_custom_call.1} parent=11 // pred_check
          %p136 = pneg %p84
        $region18: #{tpu_custom_call.1} parent=11 // pred_check_branch
          %138 = sbr.rel (%p136) target = $region20
        $region19: #{tpu_custom_call.1} parent=11 // pred_region
          _
        $region20: #{tpu_custom_call.1} parent=11 // pred_fallthru
          _
      $region12: #{tpu_custom_call.1} parent=5 // pred_fallthru
        _
      %p139 = scmp.lt.s32.totalorder %s16, 2
      // Predicated region
      $region21: #{tpu_custom_call.1} parent=5 // pred_check
        %p140 = pneg %p139
      $region22: #{tpu_custom_call.1} parent=5 // pred_check_branch
        %142 = sbr.rel (%p140) target = $region24
      $region23: #{tpu_custom_call.1} parent=5 // pred_region
        // Predicated region
        $region25: #{tpu_custom_call.1} parent=23 // pred_check
          %p143 = pneg %p36
        $region26: #{tpu_custom_call.1} parent=23 // pred_check_branch
          %145 = sbr.rel (%p143) target = $region28
        $region27: #{tpu_custom_call.1} parent=23 // pred_region
          %s146 = sand.u32 %s26, 1
          %s147 = scalar_lea.sflag [#allocation3], %s146
          %s148 = sand.u32 %s26, 1
          %s149 = smul.addr %s148, 8
          %s150 = scalar_lea.vmem [#allocation2], %s149
          %s152 = ssub.s32 128, 128
          %153 = vsyncadd %s147, %s152
          %s154 = smul.addr %s16, 128
          %s155 = scalar_lea.hbm %s0, %s154
          %s157 = sshll.u32 %s150, 4
          %s158 = int_to_ptr.vmem [resolvable:$true] %s157
          %160 = dma.hbm_to_vmem [thread:$0]  %s155, 128, %s158, %s147
        $region28: #{tpu_custom_call.1} parent=23 // pred_fallthru
          _
      $region24: #{tpu_custom_call.1} parent=5 // pred_fallthru
        _
      %p161 = scmp.le.s32.totalorder 1, %s16
      %p162 = scmp.lt.s32.totalorder %s16, 3
      %p163 = pnand %p161, %p162
      %p164 = pneg %p163
      // Predicated region
      $region29: #{tpu_custom_call.1} parent=5 // pred_check
        _
      $region30: #{tpu_custom_call.1} parent=5 // pred_check_branch
        %166 = sbr.rel (%p163) target = $region32
      $region31: #{tpu_custom_call.1} parent=5 // pred_region
        %s167 = ssub.s32 %s16, 1
        %s168 = sand.u32 %s29, 1
        %s169 = scalar_lea.sflag [#allocation3], %s168
        %s170 = sand.u32 %s29, 1
        %s171 = smul.addr %s170, 8
        %s172 = scalar_lea.vmem [#allocation2], %s171
        // Predicated region
        $region33: #{tpu_custom_call.1} parent=31 // pred_check
          %p173 = pneg %p42
        $region34: #{tpu_custom_call.1} parent=31 // pred_check_branch
          %175 = sbr.rel (%p173) target = $region36
        $region35: #{tpu_custom_call.1} parent=31 // pred_region
          %176 = dma.done %s169, 128
        $region36: #{tpu_custom_call.1} parent=31 // pred_fallthru
          _
        // Predicated region
        $region37: #{tpu_custom_call.1} parent=31 // pred_check
          %p177 = pneg %p63
        $region38: #{tpu_custom_call.1} parent=31 // pred_check_branch
          %179 = sbr.rel (%p177) target = $region40
        $region39: #{tpu_custom_call.1} parent=31 // pred_region
          %180 = dma.done [#allocation6], 128
        $region40: #{tpu_custom_call.1} parent=31 // pred_fallthru
          _
        %s181 = sand.u32 %s29, 1
        %s182 = scalar_lea.sflag [#allocation3], %s181
        %s183 = sand.u32 %s29, 1
        %s184 = smul.addr %s183, 8
        %s185 = scalar_lea.vmem [#allocation2], %s184
        %p186 = pneg %p42
        %p187 = pneg %p39
        %p188 = pneg %p63
        %p189 = pneg %p60
        %p190 = pneg %p84
        %p191 = pneg %p81
        %p192 = pneg %p110
        %p193 = pneg %p107
        %s194 = sand.u32 %s97, 1
        %s195 = scalar_lea.sflag [#allocation4], %s194
        %s196 = sand.u32 %s97, 1
        %s197 = smul.addr %s196, 8
        %s198 = scalar_lea.vmem [#allocation7], %s197
        %v199 = vld [vmem:[%s172] sm:$0xff]
        %v200 = vld [vmem:[#allocation5] sm:$0xff]
        %v201 = vadd.f32 %v199, %v200
        %v202 = vld [vmem:[%s2] sm:$0x1]
        %v204 = vlaneseq
        %v205 = vshrl.u32 %v204, 7
        %v206 = vsub.s32 0, %v205
        %v207 = vrot.slane %v202, %v206
        %v209 = vadd.f32 %v201, %v207
        %210 = vst [vmem:[%s198] sm:$0xff] %v209
        %s211 = sand.u32 %s97, 1
        %s212 = scalar_lea.sflag [#allocation4], %s211
        %s213 = sand.u32 %s97, 1
        %s214 = smul.addr %s213, 8
        %s215 = scalar_lea.vmem [#allocation7], %s214
        // Predicated region
        $region41: #{tpu_custom_call.1} parent=31 // pred_check
          %p216 = pneg %p107
        $region42: #{tpu_custom_call.1} parent=31 // pred_check_branch
          %218 = sbr.rel (%p216) target = $region44
        $region43: #{tpu_custom_call.1} parent=31 // pred_region
          %s220 = ssub.s32 128, 128
          %221 = vsyncadd %s212, %s220
          %s222 = smul.addr %s21, 128
          %s223 = scalar_lea.hbm %s3, %s222
          %s225 = sshll.u32 %s215, 4
          %s226 = int_to_ptr.vmem [resolvable:$true] %s225
          %228 = dma.vmem_to_hbm [thread:$0]  %s226, 128, %s223, %s212
        $region44: #{tpu_custom_call.1} parent=31 // pred_fallthru
          _
      $region32: #{tpu_custom_call.1} parent=5 // pred_fallthru
        _
      %p229 = scmp.le.s32.totalorder 2, %s16
      // Predicated region
      $region45: #{tpu_custom_call.1} parent=5 // pred_check
        %p230 = pneg %p229
      $region46: #{tpu_custom_call.1} parent=5 // pred_check_branch
        %232 = sbr.rel (%p230) target = $region48
      $region47: #{tpu_custom_call.1} parent=5 // pred_region
        %s233 = ssub.s32 %s16, 2
        // Predicated region
        $region49: #{tpu_custom_call.1} parent=47 // pred_check
          %p234 = pneg %p113
        $region50: #{tpu_custom_call.1} parent=47 // pred_check_branch
          %236 = sbr.rel (%p234) target = $region52
        $region51: #{tpu_custom_call.1} parent=47 // pred_region
          %s237 = sand.u32 %s98, 1
          %s238 = scalar_lea.sflag [#allocation4], %s237
          %s239 = sand.u32 %s98, 1
          %s240 = smul.addr %s239, 8
          %s241 = scalar_lea.vmem [#allocation7], %s240
          %242 = dma.done %s238, 128
        $region52: #{tpu_custom_call.1} parent=47 // pred_fallthru
          _
      $region48: #{tpu_custom_call.1} parent=5 // pred_fallthru
        _
    $region6: #{tpu_custom_call.1} parent=1 // loop_footer
      %s20 = sadd.s32 1, %s16
    $region7: #{tpu_custom_call.1} parent=1 // loop_footer_branch
      %15 = sbr.rel target = $region3
    $region8: #{tpu_custom_call.1} parent=1 // loop_exit
      _
    %243 = vsyncpa [#allocation3], 1
    %s244 = scalar_lea.sflag [#allocation3], 1
    %245 = vsyncpa %s244, 1
    %246 = vsyncpa [#allocation6], 1
    %247 = vsyncpa [#allocation4], 1
    %s248 = scalar_lea.sflag [#allocation4], 1
    %249 = vsyncpa %s248, 1

// kernel: _lambda_.3
$region0: #{_lambda_.3}
  #allocation0 [shape = 'u32[]', space=smem, size = 0x4, offset = 0x4, fixed_abs, tag = 'smem constant byte address 0x4 - core index']
  #allocation1 [shape = 'u32[144,128]{1,0:T(1,128)}', space=vmem, size = 0x12000, scoped, tag = 'internal scratch']
  %s0 = inlined_call_operand.vmem [shape: f32[256,128], index: 0, kind: input, shape index: {}]
  %s1 = inlined_call_operand.vmem [shape: f32[256,128], index: 1, kind: input, shape index: {}]
  %s2 = inlined_call_operand.vmem [shape: f32[128,128], index: 2, kind: input, shape index: {}]
  %s3 = inlined_call_operand.vmem [shape: f32[1,128], index: 3, kind: input, shape index: {}]
  %s4 = inlined_call_operand.vmem [shape: f32[128,128], index: 4, kind: input, shape index: {}]
  %s5 = inlined_call_operand.vmem [shape: f32[1,128], index: 5, kind: input, shape index: {}]
  %s6 = inlined_call_operand.vmem [shape: f32[128,128], index: 6, kind: input, shape index: {}]
  %s7 = inlined_call_operand.vmem [shape: f32[128,128], index: 7, kind: input, shape index: {}]
  %s8 = inlined_call_operand.vmem [shape: f32[128,128], index: 8, kind: input, shape index: {}]
  %s9 = inlined_call_operand.vmem [shape: f32[128,128], index: 9, kind: input, shape index: {}]
  %s10 = inlined_call_operand.vmem [shape: f32[1,128], index: 10, kind: input, shape index: {}]
  %s11 = inlined_call_operand.vmem [shape: f32[256,128], index: 11, kind: output, shape index: {}]
  %s12 = sld [smem:[#allocation0]]
  $region54: #{_lambda_.3} parent=0
    _
  %s14 = ssub.s32 1, %s12
  %s15 = scalar_select 0, %s14, %s12
  // Predicated region
  $region2: #{_lambda_.3} parent=0 // pred_check
    _
  $region3: #{_lambda_.3} parent=0 // pred_check_branch
    %17 = sbr.rel (0) target = $region5
  $region4: #{_lambda_.3} parent=0 // pred_region
    _
  $region5: #{_lambda_.3} parent=0 // pred_fallthru
    _
  // Predicated region
  $region6: #{_lambda_.3} parent=0 // pred_check
    _
  $region7: #{_lambda_.3} parent=0 // pred_check_branch
    %19 = sbr.rel (0) target = $region9
  $region8: #{_lambda_.3} parent=0 // pred_region
    _
  $region9: #{_lambda_.3} parent=0 // pred_fallthru
    _
  // Predicated region
  $region10: #{_lambda_.3} parent=0 // pred_check
    _
  $region11: #{_lambda_.3} parent=0 // pred_check_branch
    %21 = sbr.rel (0) target = $region13
  $region12: #{_lambda_.3} parent=0 // pred_region
    _
  $region13: #{_lambda_.3} parent=0 // pred_fallthru
    _
  // Predicated region
  $region14: #{_lambda_.3} parent=0 // pred_check
    _
  $region15: #{_lambda_.3} parent=0 // pred_check_branch
    %23 = sbr.rel (0) target = $region17
  $region16: #{_lambda_.3} parent=0 // pred_region
    _
  $region17: #{_lambda_.3} parent=0 // pred_fallthru
    _
  // Predicated region
  $region18: #{_lambda_.3} parent=0 // pred_check
    _
  $region19: #{_lambda_.3} parent=0 // pred_check_branch
    %25 = sbr.rel (0) target = $region21
  $region20: #{_lambda_.3} parent=0 // pred_region
    _
  $region21: #{_lambda_.3} parent=0 // pred_fallthru
    _
  // Predicated region
  $region22: #{_lambda_.3} parent=0 // pred_check
    _
  $region23: #{_lambda_.3} parent=0 // pred_check_branch
    %27 = sbr.rel (0) target = $region25
  $region24: #{_lambda_.3} parent=0 // pred_region
    _
  $region25: #{_lambda_.3} parent=0 // pred_fallthru
    _
  // Predicated region
  $region26: #{_lambda_.3} parent=0 // pred_check
    _
  $region27: #{_lambda_.3} parent=0 // pred_check_branch
    %29 = sbr.rel (0) target = $region29
  $region28: #{_lambda_.3} parent=0 // pred_region
    _
  $region29: #{_lambda_.3} parent=0 // pred_fallthru
    _
  // Predicated region
  $region30: #{_lambda_.3} parent=0 // pred_check
    _
  $region31: #{_lambda_.3} parent=0 // pred_check_branch
    %31 = sbr.rel (0) target = $region33
  $region32: #{_lambda_.3} parent=0 // pred_region
    _
  $region33: #{_lambda_.3} parent=0 // pred_fallthru
    _
  // Predicated region
  $region34: #{_lambda_.3} parent=0 // pred_check
    _
  $region35: #{_lambda_.3} parent=0 // pred_check_branch
    %33 = sbr.rel (0) target = $region37
  $region36: #{_lambda_.3} parent=0 // pred_region
    _
  $region37: #{_lambda_.3} parent=0 // pred_fallthru
    _
  // Predicated region
  $region38: #{_lambda_.3} parent=0 // pred_check
    _
  $region39: #{_lambda_.3} parent=0 // pred_check_branch
    %35 = sbr.rel (0) target = $region41
  $region40: #{_lambda_.3} parent=0 // pred_region
    _
  $region41: #{_lambda_.3} parent=0 // pred_fallthru
    _
  // Predicated region
  $region42: #{_lambda_.3} parent=0 // pred_check
    _
  $region43: #{_lambda_.3} parent=0 // pred_check_branch
    %37 = sbr.rel (0) target = $region45
  $region44: #{_lambda_.3} parent=0 // pred_region
    _
  $region45: #{_lambda_.3} parent=0 // pred_fallthru
    _
  %v38 = vld [vmem:[%s0] sm:$0xff]
  %v39 = vld [vmem:[%s0 + $0x8] sm:$0xff]
  %v40 = vld [vmem:[%s0 + $0x10] sm:$0xff]
  %v41 = vld [vmem:[%s0 + $0x18] sm:$0xff]
  %v42 = vld [vmem:[%s0 + $0x20] sm:$0xff]
  %v43 = vld [vmem:[%s0 + $0x28] sm:$0xff]
  %v44 = vld [vmem:[%s0 + $0x30] sm:$0xff]
  %v45 = vld [vmem:[%s0 + $0x38] sm:$0xff]
  %v46 = vld [vmem:[%s0 + $0x40] sm:$0xff]
  %v47 = vld [vmem:[%s0 + $0x48] sm:$0xff]
  %v48 = vld [vmem:[%s0 + $0x50] sm:$0xff]
  %v49 = vld [vmem:[%s0 + $0x58] sm:$0xff]
  %v50 = vld [vmem:[%s0 + $0x60] sm:$0xff]
  %v51 = vld [vmem:[%s0 + $0x68] sm:$0xff]
  %v52 = vld [vmem:[%s0 + $0x70] sm:$0xff]
  %v53 = vld [vmem:[%s0 + $0x78] sm:$0xff]
  %v54 = vld [vmem:[%s0 + $0x80] sm:$0xff]
  %v55 = vld [vmem:[%s0 + $0x88] sm:$0xff]
  %v56 = vld [vmem:[%s0 + $0x90] sm:$0xff]
  %v57 = vld [vmem:[%s0 + $0x98] sm:$0xff]
  %v58 = vld [vmem:[%s0 + $0xa0] sm:$0xff]
  %v59 = vld [vmem:[%s0 + $0xa8] sm:$0xff]
  %v60 = vld [vmem:[%s0 + $0xb0] sm:$0xff]
  %v61 = vld [vmem:[%s0 + $0xb8] sm:$0xff]
  %v62 = vld [vmem:[%s0 + $0xc0] sm:$0xff]
  %v63 = vld [vmem:[%s0 + $0xc8] sm:$0xff]
  %v64 = vld [vmem:[%s0 + $0xd0] sm:$0xff]
  %v65 = vld [vmem:[%s0 + $0xd8] sm:$0xff]
  %v66 = vld [vmem:[%s0 + $0xe0] sm:$0xff]
  %v67 = vld [vmem:[%s0 + $0xe8] sm:$0xff]
  %v68 = vld [vmem:[%s0 + $0xf0] sm:$0xff]
  %v69 = vld [vmem:[%s0 + $0xf8] sm:$0xff]
  %v70 = vld [vmem:[%s2] sm:$0xff]
  %v71 = vld [vmem:[%s2 + $0x8] sm:$0xff]
  %v72 = vld [vmem:[%s2 + $0x10] sm:$0xff]
  %v73 = vld [vmem:[%s2 + $0x18] sm:$0xff]
  %v74 = vld [vmem:[%s2 + $0x20] sm:$0xff]
  %v75 = vld [vmem:[%s2 + $0x28] sm:$0xff]
  %v76 = vld [vmem:[%s2 + $0x30] sm:$0xff]
  %v77 = vld [vmem:[%s2 + $0x38] sm:$0xff]
  %v78 = vld [vmem:[%s2 + $0x40] sm:$0xff]
  %v79 = vld [vmem:[%s2 + $0x48] sm:$0xff]
  %v80 = vld [vmem:[%s2 + $0x50] sm:$0xff]
  %v81 = vld [vmem:[%s2 + $0x58] sm:$0xff]
  %v82 = vld [vmem:[%s2 + $0x60] sm:$0xff]
  %v83 = vld [vmem:[%s2 + $0x68] sm:$0xff]
  %v84 = vld [vmem:[%s2 + $0x70] sm:$0xff]
  %v85 = vld [vmem:[%s2 + $0x78] sm:$0xff]
  %v86 = vld [vmem:[%s3] sm:$0x1]
  %v88 = vlaneseq
  %v89 = vshrl.u32 %v88, 7
  %v90 = vsub.s32 0, %v89
  %v91 = vrot.slane %v86, %v90
  %93 = vmatprep.subr.mxu0 0.0
  %94 = vmatpush1.msra.mxu0 %v70
  %95 = vmatprep.subr.mxu0 0.0
  %96 = vmatpush1.msra.mxu0 %v71
  %97 = vmatprep.subr.mxu0 0.0
  %98 = vmatpush1.msra.mxu0 %v72
  %99 = vmatprep.subr.mxu0 0.0
  %100 = vmatpush1.msra.mxu0 %v73
  %101 = vmatprep.subr.mxu0 0.0
  %102 = vmatpush1.msra.mxu0 %v74
  %103 = vmatprep.subr.mxu0 0.0
  %104 = vmatpush1.msra.mxu0 %v75
  %105 = vmatprep.subr.mxu0 0.0
  %106 = vmatpush1.msra.mxu0 %v76
  %107 = vmatprep.subr.mxu0 0.0
  %108 = vmatpush1.msra.mxu0 %v77
  %109 = vmatprep.subr.mxu0 0.0
  %110 = vmatpush1.msra.mxu0 %v78
  %111 = vmatprep.subr.mxu0 0.0
  %112 = vmatpush1.msra.mxu0 %v79
  %113 = vmatprep.subr.mxu0 0.0
  %114 = vmatpush1.msra.mxu0 %v80
  %115 = vmatprep.subr.mxu0 0.0
  %116 = vmatpush1.msra.mxu0 %v81
  %117 = vmatprep.subr.mxu0 0.0
  %118 = vmatpush1.msra.mxu0 %v82
  %119 = vmatprep.subr.mxu0 0.0
  %120 = vmatpush1.msra.mxu0 %v83
  %121 = vmatprep.subr.mxu0 0.0
  %122 = vmatpush1.msra.mxu0 %v84
  %123 = vmatprep.subr.mxu0 0.0
  %124 = vmatpush1.msra.mxu0 %v85
  %125 = vmatprep.subr.mxu0 0.0
  %126 = vmatpush1.msra.mxu0 0.0
  %127 = vmatprep.subr.mxu0 0.0
  %128 = vmatpush1.msra.mxu0 0.0
  %129 = vmatprep.subr.mxu0 0.0
  %130 = vmatpush1.msra.mxu0 0.0
  %131 = vmatprep.subr.mxu0 0.0
  %132 = vmatpush1.msra.mxu0 0.0
  %133 = vmatprep.subr.mxu0 0.0
  %134 = vmatpush1.msra.mxu0 0.0
  %135 = vmatprep.subr.mxu0 0.0
  %136 = vmatpush1.msra.mxu0 0.0
  %137 = vmatprep.subr.mxu0 0.0
  %138 = vmatpush1.msra.mxu0 0.0
  %139 = vmatprep.subr.mxu0 0.0
  %140 = vmatpush1.msra.mxu0 0.0
  %141 = vmatprep.subr.mxu0 0.0
  %142 = vmatpush1.msra.mxu0 0.0
  %143 = vmatprep.subr.mxu0 0.0
  %144 = vmatpush1.msra.mxu0 0.0
  %145 = vmatprep.subr.mxu0 0.0
  %146 = vmatpush1.msra.mxu0 0.0
  %147 = vmatprep.subr.mxu0 0.0
  %148 = vmatpush1.msra.mxu0 0.0
  %149 = vmatprep.subr.mxu0 0.0
  %150 = vmatpush1.msra.mxu0 0.0
  %151 = vmatprep.subr.mxu0 0.0
  %152 = vmatpush1.msra.mxu0 0.0
  %153 = vmatprep.subr.mxu0 0.0
  %154 = vmatpush1.msra.mxu0 0.0
  %155 = vmatprep.subr.mxu0 0.0
  %156 = vmatpush1.msra.mxu0 0.0
  %157 = vmatprep.mubr.f32.mxu0 0.0
  %158 = vmatmul.mubr.f32.gmra.mrb[0].mxu0 %v38
  %v159 = vpop.f32.mrb[0].mxu0
  %v160 = vadd.f32 %v91, %v159
  %v161 = vpop.f32.mrb[0].mxu0
  %162 = vmatprep.mubr.f32.mxu0 0.0
  %163 = vmatmul.mubr.f32.gmra.mrb[0].mxu0 %v39
  %v164 = vpop.f32.mrb[0].mxu0
  %v165 = vadd.f32 %v91, %v164
  %v166 = vpop.f32.mrb[0].mxu0
  %167 = vmatprep.mubr.f32.mxu0 0.0
  %168 = vmatmul.mubr.f32.gmra.mrb[0].mxu0 %v40
  %v169 = vpop.f32.mrb[0].mxu0
  %v170 = vadd.f32 %v91, %v169
  %v171 = vpop.f32.mrb[0].mxu0
  %172 = vmatprep.mubr.f32.mxu0 0.0
  %173 = vmatmul.mubr.f32.gmra.mrb[0].mxu0 %v41
  %v174 = vpop.f32.mrb[0].mxu0
  %v175 = vadd.f32 %v91, %v174
  %v176 = vpop.f32.mrb[0].mxu0
  %177 = vmatprep.mubr.f32.mxu0 0.0
  %178 = vmatmul.mubr.f32.gmra.mrb[0].mxu0 %v42
  %v179 = vpop.f32.mrb[0].mxu0
  %v180 = vadd.f32 %v91, %v179
  %v181 = vpop.f32.mrb[0].mxu0
  %182 = vmatprep.mubr.f32.mxu0 0.0
  %183 = vmatmul.mubr.f32.gmra.mrb[0].mxu0 %v43
  %v184 = vpop.f32.mrb[0].mxu0
  %v185 = vadd.f32 %v91, %v184
  %v186 = vpop.f32.mrb[0].mxu0
  %187 = vmatprep.mubr.f32.mxu0 0.0
  %188 = vmatmul.mubr.f32.gmra.mrb[0].mxu0 %v44
  %v189 = vpop.f32.mrb[0].mxu0
  %v190 = vadd.f32 %v91, %v189
  %v191 = vpop.f32.mrb[0].mxu0
  %192 = vmatprep.mubr.f32.mxu0 0.0
  %193 = vmatmul.mubr.f32.gmra.mrb[0].mxu0 %v45
  %v194 = vpop.f32.mrb[0].mxu0
  %v195 = vadd.f32 %v91, %v194
  %v196 = vpop.f32.mrb[0].mxu0
  %197 = vmatprep.mubr.f32.mxu0 0.0
  %198 = vmatmul.mubr.f32.gmra.mrb[0].mxu0 %v46
  %v199 = vpop.f32.mrb[0].mxu0
  %v200 = vadd.f32 %v91, %v199
  %v201 = vpop.f32.mrb[0].mxu0
  %202 = vmatprep.mubr.f32.mxu0 0.0
  %203 = vmatmul.mubr.f32.gmra.mrb[0].mxu0 %v47
  %v204 = vpop.f32.mrb[0].mxu0
  %v205 = vadd.f32 %v91, %v204
  %v206 = vpop.f32.mrb[0].mxu0
  %207 = vmatprep.mubr.f32.mxu0 0.0
  %208 = vmatmul.mubr.f32.gmra.mrb[0].mxu0 %v48
  %v209 = vpop.f32.mrb[0].mxu0
  %v210 = vadd.f32 %v91, %v209
  %v211 = vpop.f32.mrb[0].mxu0
  %212 = vmatprep.mubr.f32.mxu0 0.0
  %213 = vmatmul.mubr.f32.gmra.mrb[0].mxu0 %v49
  %v214 = vpop.f32.mrb[0].mxu0
  %v215 = vadd.f32 %v91, %v214
  %v216 = vpop.f32.mrb[0].mxu0
  %217 = vmatprep.mubr.f32.mxu0 0.0
  %218 = vmatmul.mubr.f32.gmra.mrb[0].mxu0 %v50
  %v219 = vpop.f32.mrb[0].mxu0
  %v220 = vadd.f32 %v91, %v219
  %v221 = vpop.f32.mrb[0].mxu0
  %222 = vmatprep.mubr.f32.mxu0 0.0
  %223 = vmatmul.mubr.f32.gmra.mrb[0].mxu0 %v51
  %v224 = vpop.f32.mrb[0].mxu0
  %v225 = vadd.f32 %v91, %v224
  %v226 = vpop.f32.mrb[0].mxu0
  %227 = vmatprep.mubr.f32.mxu0 0.0
  %228 = vmatmul.mubr.f32.gmra.mrb[0].mxu0 %v52
  %v229 = vpop.f32.mrb[0].mxu0
  %v230 = vadd.f32 %v91, %v229
  %v231 = vpop.f32.mrb[0].mxu0
  %232 = vmatprep.mubr.f32.mxu0 0.0
  %233 = vmatmul.mubr.f32.gmra.mrb[0].mxu0 %v53
  %v234 = vpop.f32.mrb[0].mxu0
  %v235 = vadd.f32 %v91, %v234
  %v236 = vpop.f32.mrb[0].mxu0
  %237 = vmatprep.mubr.f32.mxu0 0.0
  %238 = vmatmul.mubr.f32.gmra.mrb[0].mxu0 %v54
  %v239 = vpop.f32.mrb[0].mxu0
  %v240 = vadd.f32 %v91, %v239
  %v241 = vpop.f32.mrb[0].mxu0
  %242 = vmatprep.mubr.f32.mxu0 0.0
  %243 = vmatmul.mubr.f32.gmra.mrb[0].mxu0 %v55
  %v244 = vpop.f32.mrb[0].mxu0
  %v245 = vadd.f32 %v91, %v244
  %v246 = vpop.f32.mrb[0].mxu0
  %247 = vmatprep.mubr.f32.mxu0 0.0
  %248 = vmatmul.mubr.f32.gmra.mrb[0].mxu0 %v56
  %v249 = vpop.f32.mrb[0].mxu0
  %v250 = vadd.f32 %v91, %v249
  %v251 = vpop.f32.mrb[0].mxu0
  %252 = vmatprep.mubr.f32.mxu0 0.0
  %253 = vmatmul.mubr.f32.gmra.mrb[0].mxu0 %v57
  %v254 = vpop.f32.mrb[0].mxu0
  %v255 = vadd.f32 %v91, %v254
  %v256 = vpop.f32.mrb[0].mxu0
  %257 = vmatprep.mubr.f32.mxu0 0.0
  %258 = vmatmul.mubr.f32.gmra.mrb[0].mxu0 %v58
  %v259 = vpop.f32.mrb[0].mxu0
  %v260 = vadd.f32 %v91, %v259
  %v261 = vpop.f32.mrb[0].mxu0
  %262 = vmatprep.mubr.f32.mxu0 0.0
  %263 = vmatmul.mubr.f32.gmra.mrb[0].mxu0 %v59
  %v264 = vpop.f32.mrb[0].mxu0
  %v265 = vadd.f32 %v91, %v264
  %v266 = vpop.f32.mrb[0].mxu0
  %267 = vmatprep.mubr.f32.mxu0 0.0
  %268 = vmatmul.mubr.f32.gmra.mrb[0].mxu0 %v60
  %v269 = vpop.f32.mrb[0].mxu0
  %v270 = vadd.f32 %v91, %v269
  %v271 = vpop.f32.mrb[0].mxu0
  %272 = vmatprep.mubr.f32.mxu0 0.0
  %273 = vmatmul.mubr.f32.gmra.mrb[0].mxu0 %v61
  %v274 = vpop.f32.mrb[0].mxu0
  %v275 = vadd.f32 %v91, %v274
  %v276 = vpop.f32.mrb[0].mxu0
  %277 = vmatprep.mubr.f32.mxu0 0.0
  %278 = vmatmul.mubr.f32.gmra.mrb[0].mxu0 %v62
  %v279 = vpop.f32.mrb[0].mxu0
  %v280 = vadd.f32 %v91, %v279
  %v281 = vpop.f32.mrb[0].mxu0
  %282 = vmatprep.mubr.f32.mxu0 0.0
  %283 = vmatmul.mubr.f32.gmra.mrb[0].mxu0 %v63
  %v284 = vpop.f32.mrb[0].mxu0
  %v285 = vadd.f32 %v91, %v284
  %v286 = vpop.f32.mrb[0].mxu0
  %287 = vmatprep.mubr.f32.mxu0 0.0
  %288 = vmatmul.mubr.f32.gmra.mrb[0].mxu0 %v64
  %v289 = vpop.f32.mrb[0].mxu0
  %v290 = vadd.f32 %v91, %v289
  %v291 = vpop.f32.mrb[0].mxu0
  %292 = vmatprep.mubr.f32.mxu0 0.0
  %293 = vmatmul.mubr.f32.gmra.mrb[0].mxu0 %v65
  %v294 = vpop.f32.mrb[0].mxu0
  %v295 = vadd.f32 %v91, %v294
  %v296 = vpop.f32.mrb[0].mxu0
  %297 = vmatprep.mubr.f32.mxu0 0.0
  %298 = vmatmul.mubr.f32.gmra.mrb[0].mxu0 %v66
  %v299 = vpop.f32.mrb[0].mxu0
  %v300 = vadd.f32 %v91, %v299
  %v301 = vpop.f32.mrb[0].mxu0
  %302 = vmatprep.mubr.f32.mxu0 0.0
  %303 = vmatmul.mubr.f32.gmra.mrb[0].mxu0 %v67
  %v304 = vpop.f32.mrb[0].mxu0
  %v305 = vadd.f32 %v91, %v304
  %v306 = vpop.f32.mrb[0].mxu0
  %307 = vmatprep.mubr.f32.mxu0 0.0
  %308 = vmatmul.mubr.f32.gmra.mrb[0].mxu0 %v68
  %v309 = vpop.f32.mrb[0].mxu0
  %v310 = vadd.f32 %v91, %v309
  %v311 = vpop.f32.mrb[0].mxu0
  %312 = vmatprep.mubr.f32.mxu0 0.0
  %313 = vmatmul.mubr.f32.gmra.mrb[0].mxu0 %v69
  %v314 = vpop.f32.mrb[0].mxu0
  %v315 = vadd.f32 %v91, %v314
  %v316 = vpop.f32.mrb[0].mxu0
  %317 = vdwg.mxu0
  %v318 = vmax.f32 %v160, 0.0
  %v319 = vmax.f32 %v165, 0.0
  %v320 = vmax.f32 %v170, 0.0
  %v321 = vmax.f32 %v175, 0.0
  %v322 = vmax.f32 %v180, 0.0
  %v323 = vmax.f32 %v185, 0.0
  %v324 = vmax.f32 %v190, 0.0
  %v325 = vmax.f32 %v195, 0.0
  %v326 = vmax.f32 %v200, 0.0
  %v327 = vmax.f32 %v205, 0.0
  %v328 = vmax.f32 %v210, 0.0
  %v329 = vmax.f32 %v215, 0.0
  %v330 = vmax.f32 %v220, 0.0
  %v331 = vmax.f32 %v225, 0.0
  %v332 = vmax.f32 %v230, 0.0
  %v333 = vmax.f32 %v235, 0.0
  %v334 = vmax.f32 %v240, 0.0
  %v335 = vmax.f32 %v245, 0.0
  %v336 = vmax.f32 %v250, 0.0
  %v337 = vmax.f32 %v255, 0.0
  %v338 = vmax.f32 %v260, 0.0
  %v339 = vmax.f32 %v265, 0.0
  %v340 = vmax.f32 %v270, 0.0
  %v341 = vmax.f32 %v275, 0.0
  %v342 = vmax.f32 %v280, 0.0
  %v343 = vmax.f32 %v285, 0.0
  %v344 = vmax.f32 %v290, 0.0
  %v345 = vmax.f32 %v295, 0.0
  %v346 = vmax.f32 %v300, 0.0
  %v347 = vmax.f32 %v305, 0.0
  %v348 = vmax.f32 %v310, 0.0
  %v349 = vmax.f32 %v315, 0.0
  %v350 = vld [vmem:[%s4] sm:$0xff]
  %v351 = vld [vmem:[%s4 + $0x8] sm:$0xff]
  %v352 = vld [vmem:[%s4 + $0x10] sm:$0xff]
  %v353 = vld [vmem:[%s4 + $0x18] sm:$0xff]
  %v354 = vld [vmem:[%s4 + $0x20] sm:$0xff]
  %v355 = vld [vmem:[%s4 + $0x28] sm:$0xff]
  %v356 = vld [vmem:[%s4 + $0x30] sm:$0xff]
  %v357 = vld [vmem:[%s4 + $0x38] sm:$0xff]
  %v358 = vld [vmem:[%s4 + $0x40] sm:$0xff]
  %v359 = vld [vmem:[%s4 + $0x48] sm:$0xff]
  %v360 = vld [vmem:[%s4 + $0x50] sm:$0xff]
  %v361 = vld [vmem:[%s4 + $0x58] sm:$0xff]
  %v362 = vld [vmem:[%s4 + $0x60] sm:$0xff]
  %v363 = vld [vmem:[%s4 + $0x68] sm:$0xff]
  %v364 = vld [vmem:[%s4 + $0x70] sm:$0xff]
  %v365 = vld [vmem:[%s4 + $0x78] sm:$0xff]
  %v366 = vld [vmem:[%s5] sm:$0x1]
  %v368 = vlaneseq
  %v369 = vshrl.u32 %v368, 7
  %v370 = vsub.s32 0, %v369
  %v371 = vrot.slane %v366, %v370
  %373 = vmatprep.subr.mxu0 0.0
  %374 = vmatpush1.msra.mxu0 %v350
  %375 = vmatprep.subr.mxu0 0.0
  %376 = vmatpush1.msra.mxu0 %v351
  %377 = vmatprep.subr.mxu0 0.0
  %378 = vmatpush1.msra.mxu0 %v352
  %379 = vmatprep.subr.mxu0 0.0
  %380 = vmatpush1.msra.mxu0 %v353
  %381 = vmatprep.subr.mxu0 0.0
  %382 = vmatpush1.msra.mxu0 %v354
  %383 = vmatprep.subr.mxu0 0.0
  %384 = vmatpush1.msra.mxu0 %v355
  %385 = vmatprep.subr.mxu0 0.0
  %386 = vmatpush1.msra.mxu0 %v356
  %387 = vmatprep.subr.mxu0 0.0
  %388 = vmatpush1.msra.mxu0 %v357
  %389 = vmatprep.subr.mxu0 0.0
  %390 = vmatpush1.msra.mxu0 %v358
  %391 = vmatprep.subr.mxu0 0.0
  %392 = vmatpush1.msra.mxu0 %v359
  %393 = vmatprep.subr.mxu0 0.0
  %394 = vmatpush1.msra.mxu0 %v360
  %395 = vmatprep.subr.mxu0 0.0
  %396 = vmatpush1.msra.mxu0 %v361
  %397 = vmatprep.subr.mxu0 0.0
  %398 = vmatpush1.msra.mxu0 %v362
  %399 = vmatprep.subr.mxu0 0.0
  %400 = vmatpush1.msra.mxu0 %v363
  %401 = vmatprep.subr.mxu0 0.0
  %402 = vmatpush1.msra.mxu0 %v364
  %403 = vmatprep.subr.mxu0 0.0
  %404 = vmatpush1.msra.mxu0 %v365
  %405 = vmatprep.subr.mxu0 0.0
  %406 = vmatpush1.msra.mxu0 0.0
  %407 = vmatprep.subr.mxu0 0.0
  %408 = vmatpush1.msra.mxu0 0.0
  %409 = vmatprep.subr.mxu0 0.0
  %410 = vmatpush1.msra.mxu0 0.0
  %411 = vmatprep.subr.mxu0 0.0
  %412 = vmatpush1.msra.mxu0 0.0
  %413 = vmatprep.subr.mxu0 0.0
  %414 = vmatpush1.msra.mxu0 0.0
  %415 = vmatprep.subr.mxu0 0.0
  %416 = vmatpush1.msra.mxu0 0.0
  %417 = vmatprep.subr.mxu0 0.0
  %418 = vmatpush1.msra.mxu0 0.0
  %419 = vmatprep.subr.mxu0 0.0
  %420 = vmatpush1.msra.mxu0 0.0
  %421 = vmatprep.subr.mxu0 0.0
  %422 = vmatpush1.msra.mxu0 0.0
  %423 = vmatprep.subr.mxu0 0.0
  %424 = vmatpush1.msra.mxu0 0.0
  %425 = vmatprep.subr.mxu0 0.0
  %426 = vmatpush1.msra.mxu0 0.0
  %427 = vmatprep.subr.mxu0 0.0
  %428 = vmatpush1.msra.mxu0 0.0
  %429 = vmatprep.subr.mxu0 0.0
  %430 = vmatpush1.msra.mxu0 0.0
  %431 = vmatprep.subr.mxu0 0.0
  %432 = vmatpush1.msra.mxu0 0.0
  %433 = vmatprep.subr.mxu0 0.0
  %434 = vmatpush1.msra.mxu0 0.0
  %435 = vmatprep.subr.mxu0 0.0
  %436 = vmatpush1.msra.mxu0 0.0
  %437 = vmatprep.mubr.f32.mxu0 0.0
  %438 = vmatmul.mubr.f32.gmra.mrb[0].mxu0 %v318
  %v439 = vpop.f32.mrb[0].mxu0
  %v440 = vadd.f32 %v371, %v439
  %v441 = vpop.f32.mrb[0].mxu0
  %442 = vmatprep.mubr.f32.mxu0 0.0
  %443 = vmatmul.mubr.f32.gmra.mrb[0].mxu0 %v319
  %v444 = vpop.f32.mrb[0].mxu0
  %v445 = vadd.f32 %v371, %v444
  %v446 = vpop.f32.mrb[0].mxu0
  %447 = vmatprep.mubr.f32.mxu0 0.0
  %448 = vmatmul.mubr.f32.gmra.mrb[0].mxu0 %v320
  %v449 = vpop.f32.mrb[0].mxu0
  %v450 = vadd.f32 %v371, %v449
  %v451 = vpop.f32.mrb[0].mxu0
  %452 = vmatprep.mubr.f32.mxu0 0.0
  %453 = vmatmul.mubr.f32.gmra.mrb[0].mxu0 %v321
  %v454 = vpop.f32.mrb[0].mxu0
  %v455 = vadd.f32 %v371, %v454
  %v456 = vpop.f32.mrb[0].mxu0
  %457 = vmatprep.mubr.f32.mxu0 0.0
  %458 = vmatmul.mubr.f32.gmra.mrb[0].mxu0 %v322
  %v459 = vpop.f32.mrb[0].mxu0
  %v460 = vadd.f32 %v371, %v459
  %v461 = vpop.f32.mrb[0].mxu0
  %462 = vmatprep.mubr.f32.mxu0 0.0
  %463 = vmatmul.mubr.f32.gmra.mrb[0].mxu0 %v323
  %v464 = vpop.f32.mrb[0].mxu0
  %v465 = vadd.f32 %v371, %v464
  %v466 = vpop.f32.mrb[0].mxu0
  %467 = vmatprep.mubr.f32.mxu0 0.0
  %468 = vmatmul.mubr.f32.gmra.mrb[0].mxu0 %v324
  %v469 = vpop.f32.mrb[0].mxu0
  %v470 = vadd.f32 %v371, %v469
  %v471 = vpop.f32.mrb[0].mxu0
  %472 = vmatprep.mubr.f32.mxu0 0.0
  %473 = vmatmul.mubr.f32.gmra.mrb[0].mxu0 %v325
  %v474 = vpop.f32.mrb[0].mxu0
  %v475 = vadd.f32 %v371, %v474
  %v476 = vpop.f32.mrb[0].mxu0
  %477 = vmatprep.mubr.f32.mxu0 0.0
  %478 = vmatmul.mubr.f32.gmra.mrb[0].mxu0 %v326
  %v479 = vpop.f32.mrb[0].mxu0
  %v480 = vadd.f32 %v371, %v479
  %v481 = vpop.f32.mrb[0].mxu0
  %482 = vmatprep.mubr.f32.mxu0 0.0
  %483 = vmatmul.mubr.f32.gmra.mrb[0].mxu0 %v327
  %v484 = vpop.f32.mrb[0].mxu0
  %v485 = vadd.f32 %v371, %v484
  %v486 = vpop.f32.mrb[0].mxu0
  %487 = vmatprep.mubr.f32.mxu0 0.0
  %488 = vmatmul.mubr.f32.gmra.mrb[0].mxu0 %v328
  %v489 = vpop.f32.mrb[0].mxu0
  %v490 = vadd.f32 %v371, %v489
  %v491 = vpop.f32.mrb[0].mxu0
  %492 = vmatprep.mubr.f32.mxu0 0.0
  %493 = vmatmul.mubr.f32.gmra.mrb[0].mxu0 %v329
  %v494 = vpop.f32.mrb[0].mxu0
  %v495 = vadd.f32 %v371, %v494
  %v496 = vpop.f32.mrb[0].mxu0
  %497 = vmatprep.mubr.f32.mxu0 0.0
  %498 = vmatmul.mubr.f32.gmra.mrb[0].mxu0 %v330
  %v499 = vpop.f32.mrb[0].mxu0
  %v500 = vadd.f32 %v371, %v499
  %v501 = vpop.f32.mrb[0].mxu0
  %502 = vmatprep.mubr.f32.mxu0 0.0
  %503 = vmatmul.mubr.f32.gmra.mrb[0].mxu0 %v331
  %v504 = vpop.f32.mrb[0].mxu0
  %v505 = vadd.f32 %v371, %v504
  %v506 = vpop.f32.mrb[0].mxu0
  %507 = vmatprep.mubr.f32.mxu0 0.0
  %508 = vmatmul.mubr.f32.gmra.mrb[0].mxu0 %v332
  %v509 = vpop.f32.mrb[0].mxu0
  %v510 = vadd.f32 %v371, %v509
  %v511 = vpop.f32.mrb[0].mxu0
  %512 = vmatprep.mubr.f32.mxu0 0.0
  %513 = vmatmul.mubr.f32.gmra.mrb[0].mxu0 %v333
  %v514 = vpop.f32.mrb[0].mxu0
  %v515 = vadd.f32 %v371, %v514
  %v516 = vpop.f32.mrb[0].mxu0
  %517 = vmatprep.mubr.f32.mxu0 0.0
  %518 = vmatmul.mubr.f32.gmra.mrb[0].mxu0 %v334
  %v519 = vpop.f32.mrb[0].mxu0
  %v520 = vadd.f32 %v371, %v519
  %v521 = vpop.f32.mrb[0].mxu0
  %522 = vmatprep.mubr.f32.mxu0 0.0
  %523 = vmatmul.mubr.f32.gmra.mrb[0].mxu0 %v335
  %v524 = vpop.f32.mrb[0].mxu0
  %v525 = vadd.f32 %v371, %v524
  %v526 = vpop.f32.mrb[0].mxu0
  %527 = vmatprep.mubr.f32.mxu0 0.0
  %528 = vmatmul.mubr.f32.gmra.mrb[0].mxu0 %v336
  %v529 = vpop.f32.mrb[0].mxu0
  %v530 = vadd.f32 %v371, %v529
  %v531 = vpop.f32.mrb[0].mxu0
  %532 = vmatprep.mubr.f32.mxu0 0.0
  %533 = vmatmul.mubr.f32.gmra.mrb[0].mxu0 %v337
  %v534 = vpop.f32.mrb[0].mxu0
  %v535 = vadd.f32 %v371, %v534
  %v536 = vpop.f32.mrb[0].mxu0
  %537 = vmatprep.mubr.f32.mxu0 0.0
  %538 = vmatmul.mubr.f32.gmra.mrb[0].mxu0 %v338
  %v539 = vpop.f32.mrb[0].mxu0
  %v540 = vadd.f32 %v371, %v539
  %v541 = vpop.f32.mrb[0].mxu0
  %542 = vmatprep.mubr.f32.mxu0 0.0
  %543 = vmatmul.mubr.f32.gmra.mrb[0].mxu0 %v339
  %v544 = vpop.f32.mrb[0].mxu0
  %v545 = vadd.f32 %v371, %v544
  %v546 = vpop.f32.mrb[0].mxu0
  %547 = vmatprep.mubr.f32.mxu0 0.0
  %548 = vmatmul.mubr.f32.gmra.mrb[0].mxu0 %v340
  %v549 = vpop.f32.mrb[0].mxu0
  %v550 = vadd.f32 %v371, %v549
  %v551 = vpop.f32.mrb[0].mxu0
  %552 = vmatprep.mubr.f32.mxu0 0.0
  %553 = vmatmul.mubr.f32.gmra.mrb[0].mxu0 %v341
  %v554 = vpop.f32.mrb[0].mxu0
  %v555 = vadd.f32 %v371, %v554
  %v556 = vpop.f32.mrb[0].mxu0
  %557 = vmatprep.mubr.f32.mxu0 0.0
  %558 = vmatmul.mubr.f32.gmra.mrb[0].mxu0 %v342
  %v559 = vpop.f32.mrb[0].mxu0
  %v560 = vadd.f32 %v371, %v559
  %v561 = vpop.f32.mrb[0].mxu0
  %562 = vmatprep.mubr.f32.mxu0 0.0
  %563 = vmatmul.mubr.f32.gmra.mrb[0].mxu0 %v343
  %v564 = vpop.f32.mrb[0].mxu0
  %v565 = vadd.f32 %v371, %v564
  %v566 = vpop.f32.mrb[0].mxu0
  %567 = vmatprep.mubr.f32.mxu0 0.0
  %568 = vmatmul.mubr.f32.gmra.mrb[0].mxu0 %v344
  %v569 = vpop.f32.mrb[0].mxu0
  %v570 = vadd.f32 %v371, %v569
  %v571 = vpop.f32.mrb[0].mxu0
  %572 = vmatprep.mubr.f32.mxu0 0.0
  %573 = vmatmul.mubr.f32.gmra.mrb[0].mxu0 %v345
  %v574 = vpop.f32.mrb[0].mxu0
  %v575 = vadd.f32 %v371, %v574
  %v576 = vpop.f32.mrb[0].mxu0
  %577 = vmatprep.mubr.f32.mxu0 0.0
  %578 = vmatmul.mubr.f32.gmra.mrb[0].mxu0 %v346
  %v579 = vpop.f32.mrb[0].mxu0
  %v580 = vadd.f32 %v371, %v579
  %v581 = vpop.f32.mrb[0].mxu0
  %582 = vmatprep.mubr.f32.mxu0 0.0
  %583 = vmatmul.mubr.f32.gmra.mrb[0].mxu0 %v347
  %v584 = vpop.f32.mrb[0].mxu0
  %v585 = vadd.f32 %v371, %v584
  %v586 = vpop.f32.mrb[0].mxu0
  %587 = vmatprep.mubr.f32.mxu0 0.0
  %588 = vmatmul.mubr.f32.gmra.mrb[0].mxu0 %v348
  %v589 = vpop.f32.mrb[0].mxu0
  %v590 = vadd.f32 %v371, %v589
  %v591 = vpop.f32.mrb[0].mxu0
  %592 = vmatprep.mubr.f32.mxu0 0.0
  %593 = vmatmul.mubr.f32.gmra.mrb[0].mxu0 %v349
  %v594 = vpop.f32.mrb[0].mxu0
  %v595 = vadd.f32 %v371, %v594
  %v596 = vpop.f32.mrb[0].mxu0
  %597 = vdwg.mxu0
  %v598 = vmax.f32 %v440, 0.0
  %v599 = vmax.f32 %v445, 0.0
  %v600 = vmax.f32 %v450, 0.0
  %v601 = vmax.f32 %v455, 0.0
  %v602 = vmax.f32 %v460, 0.0
  %v603 = vmax.f32 %v465, 0.0
  %v604 = vmax.f32 %v470, 0.0
  %v605 = vmax.f32 %v475, 0.0
  %v606 = vmax.f32 %v480, 0.0
  %v607 = vmax.f32 %v485, 0.0
  %v608 = vmax.f32 %v490, 0.0
  %v609 = vmax.f32 %v495, 0.0
  %v610 = vmax.f32 %v500, 0.0
  %v611 = vmax.f32 %v505, 0.0
  %v612 = vmax.f32 %v510, 0.0
  %v613 = vmax.f32 %v515, 0.0
  %v614 = vmax.f32 %v520, 0.0
  %v615 = vmax.f32 %v525, 0.0
  %v616 = vmax.f32 %v530, 0.0
  %v617 = vmax.f32 %v535, 0.0
  %v618 = vmax.f32 %v540, 0.0
  %v619 = vmax.f32 %v545, 0.0
  %v620 = vmax.f32 %v550, 0.0
  %v621 = vmax.f32 %v555, 0.0
  %v622 = vmax.f32 %v560, 0.0
  %v623 = vmax.f32 %v565, 0.0
  %v624 = vmax.f32 %v570, 0.0
  %v625 = vmax.f32 %v575, 0.0
  %v626 = vmax.f32 %v580, 0.0
  %v627 = vmax.f32 %v585, 0.0
  %v628 = vmax.f32 %v590, 0.0
  %v629 = vmax.f32 %v595, 0.0
  %v630 = vld [vmem:[%s6] sm:$0xff]
  %v631 = vld [vmem:[%s6 + $0x8] sm:$0xff]
  %v632 = vld [vmem:[%s6 + $0x10] sm:$0xff]
  %v633 = vld [vmem:[%s6 + $0x18] sm:$0xff]
  %v634 = vld [vmem:[%s6 + $0x20] sm:$0xff]
  %v635 = vld [vmem:[%s6 + $0x28] sm:$0xff]
  %v636 = vld [vmem:[%s6 + $0x30] sm:$0xff]
  %v637 = vld [vmem:[%s6 + $0x38] sm:$0xff]
  %v638 = vld [vmem:[%s6 + $0x40] sm:$0xff]
  %v639 = vld [vmem:[%s6 + $0x48] sm:$0xff]
  %v640 = vld [vmem:[%s6 + $0x50] sm:$0xff]
  %v641 = vld [vmem:[%s6 + $0x58] sm:$0xff]
  %v642 = vld [vmem:[%s6 + $0x60] sm:$0xff]
  %v643 = vld [vmem:[%s6 + $0x68] sm:$0xff]
  %v644 = vld [vmem:[%s6 + $0x70] sm:$0xff]
  %v645 = vld [vmem:[%s6 + $0x78] sm:$0xff]
  %v646 = vld [vmem:[%s7] sm:$0xff]
  %v647 = vld [vmem:[%s7 + $0x8] sm:$0xff]
  %v648 = vld [vmem:[%s7 + $0x10] sm:$0xff]
  %v649 = vld [vmem:[%s7 + $0x18] sm:$0xff]
  %v650 = vld [vmem:[%s7 + $0x20] sm:$0xff]
  %v651 = vld [vmem:[%s7 + $0x28] sm:$0xff]
  %v652 = vld [vmem:[%s7 + $0x30] sm:$0xff]
  %v653 = vld [vmem:[%s7 + $0x38] sm:$0xff]
  %v654 = vld [vmem:[%s7 + $0x40] sm:$0xff]
  %v655 = vld [vmem:[%s7 + $0x48] sm:$0xff]
  %v656 = vld [vmem:[%s7 + $0x50] sm:$0xff]
  %v657 = vld [vmem:[%s7 + $0x58] sm:$0xff]
  %v658 = vld [vmem:[%s7 + $0x60] sm:$0xff]
  %v659 = vld [vmem:[%s7 + $0x68] sm:$0xff]
  %v660 = vld [vmem:[%s7 + $0x70] sm:$0xff]
  %v661 = vld [vmem:[%s7 + $0x78] sm:$0xff]
  %662 = vmatprep.subr.mxu0 0.0
  %663 = vmatpush1.msra.mxu0 %v646
  %664 = vmatprep.subr.mxu0 0.0
  %665 = vmatpush1.msra.mxu0 %v647
  %666 = vmatprep.subr.mxu0 0.0
  %667 = vmatpush1.msra.mxu0 %v648
  %668 = vmatprep.subr.mxu0 0.0
  %669 = vmatpush1.msra.mxu0 %v649
  %670 = vmatprep.subr.mxu0 0.0
  %671 = vmatpush1.msra.mxu0 %v650
  %672 = vmatprep.subr.mxu0 0.0
  %673 = vmatpush1.msra.mxu0 %v651
  %674 = vmatprep.subr.mxu0 0.0
  %675 = vmatpush1.msra.mxu0 %v652
  %676 = vmatprep.subr.mxu0 0.0
  %677 = vmatpush1.msra.mxu0 %v653
  %678 = vmatprep.subr.mxu0 0.0
  %679 = vmatpush1.msra.mxu0 %v654
  %680 = vmatprep.subr.mxu0 0.0
  %681 = vmatpush1.msra.mxu0 %v655
  %682 = vmatprep.subr.mxu0 0.0
  %683 = vmatpush1.msra.mxu0 %v656
  %684 = vmatprep.subr.mxu0 0.0
  %685 = vmatpush1.msra.mxu0 %v657
  %686 = vmatprep.subr.mxu0 0.0
  %687 = vmatpush1.msra.mxu0 %v658
  %688 = vmatprep.subr.mxu0 0.0
  %689 = vmatpush1.msra.mxu0 %v659
  %690 = vmatprep.subr.mxu0 0.0
  %691 = vmatpush1.msra.mxu0 %v660
  %692 = vmatprep.subr.mxu0 0.0
  %693 = vmatpush1.msra.mxu0 %v661
  %694 = vmatprep.subr.mxu0 0.0
  %695 = vmatpush1.msra.mxu0 0.0
  %696 = vmatprep.subr.mxu0 0.0
  %697 = vmatpush1.msra.mxu0 0.0
  %698 = vmatprep.subr.mxu0 0.0
  %699 = vmatpush1.msra.mxu0 0.0
  %700 = vmatprep.subr.mxu0 0.0
  %701 = vmatpush1.msra.mxu0 0.0
  %702 = vmatprep.subr.mxu0 0.0
  %703 = vmatpush1.msra.mxu0 0.0
  %704 = vmatprep.subr.mxu0 0.0
  %705 = vmatpush1.msra.mxu0 0.0
  %706 = vmatprep.subr.mxu0 0.0
  %707 = vmatpush1.msra.mxu0 0.0
  %708 = vmatprep.subr.mxu0 0.0
  %709 = vmatpush1.msra.mxu0 0.0
  %710 = vmatprep.subr.mxu0 0.0
  %711 = vmatpush1.msra.mxu0 0.0
  %712 = vmatprep.subr.mxu0 0.0
  %713 = vmatpush1.msra.mxu0 0.0
  %714 = vmatprep.subr.mxu0 0.0
  %715 = vmatpush1.msra.mxu0 0.0
  %716 = vmatprep.subr.mxu0 0.0
  %717 = vmatpush1.msra.mxu0 0.0
  %718 = vmatprep.subr.mxu0 0.0
  %719 = vmatpush1.msra.mxu0 0.0
  %720 = vmatprep.subr.mxu0 0.0
  %721 = vmatpush1.msra.mxu0 0.0
  %722 = vmatprep.subr.mxu0 0.0
  %723 = vmatpush1.msra.mxu0 0.0
  %724 = vmatprep.subr.mxu0 0.0
  %725 = vmatpush1.msra.mxu0 0.0
  %726 = vmatprep.mubr.f32.mxu0 0.0
  %727 = vmatmul.mubr.f32.gmra.mrb[0].mxu0 %v318
  %v728 = vpop.f32.mrb[0].mxu0
  %v729 = vadd.f32 0.0, %v728
  %v730 = vpop.f32.mrb[0].mxu0
  %731 = vmatprep.mubr.f32.mxu0 0.0
  %732 = vmatmul.mubr.f32.gmra.mrb[0].mxu0 %v319
  %v733 = vpop.f32.mrb[0].mxu0
  %v734 = vadd.f32 0.0, %v733
  %v735 = vpop.f32.mrb[0].mxu0
  %736 = vmatprep.mubr.f32.mxu0 0.0
  %737 = vmatmul.mubr.f32.gmra.mrb[0].mxu0 %v320
  %v738 = vpop.f32.mrb[0].mxu0
  %v739 = vadd.f32 0.0, %v738
  %v740 = vpop.f32.mrb[0].mxu0
  %741 = vmatprep.mubr.f32.mxu0 0.0
  %742 = vmatmul.mubr.f32.gmra.mrb[0].mxu0 %v321
  %v743 = vpop.f32.mrb[0].mxu0
  %v744 = vadd.f32 0.0, %v743
  %v745 = vpop.f32.mrb[0].mxu0
  %746 = vmatprep.mubr.f32.mxu0 0.0
  %747 = vmatmul.mubr.f32.gmra.mrb[0].mxu0 %v322
  %v748 = vpop.f32.mrb[0].mxu0
  %v749 = vadd.f32 0.0, %v748
  %v750 = vpop.f32.mrb[0].mxu0
  %751 = vmatprep.mubr.f32.mxu0 0.0
  %752 = vmatmul.mubr.f32.gmra.mrb[0].mxu0 %v323
  %v753 = vpop.f32.mrb[0].mxu0
  %v754 = vadd.f32 0.0, %v753
  %v755 = vpop.f32.mrb[0].mxu0
  %756 = vmatprep.mubr.f32.mxu0 0.0
  %757 = vmatmul.mubr.f32.gmra.mrb[0].mxu0 %v324
  %v758 = vpop.f32.mrb[0].mxu0
  %v759 = vadd.f32 0.0, %v758
  %v760 = vpop.f32.mrb[0].mxu0
  %761 = vmatprep.mubr.f32.mxu0 0.0
  %762 = vmatmul.mubr.f32.gmra.mrb[0].mxu0 %v325
  %v763 = vpop.f32.mrb[0].mxu0
  %v764 = vadd.f32 0.0, %v763
  %v765 = vpop.f32.mrb[0].mxu0
  %766 = vmatprep.mubr.f32.mxu0 0.0
  %767 = vmatmul.mubr.f32.gmra.mrb[0].mxu0 %v326
  %v768 = vpop.f32.mrb[0].mxu0
  %v769 = vadd.f32 0.0, %v768
  %v770 = vpop.f32.mrb[0].mxu0
  %771 = vmatprep.mubr.f32.mxu0 0.0
  %772 = vmatmul.mubr.f32.gmra.mrb[0].mxu0 %v327
  %v773 = vpop.f32.mrb[0].mxu0
  %v774 = vadd.f32 0.0, %v773
  %v775 = vpop.f32.mrb[0].mxu0
  %776 = vmatprep.mubr.f32.mxu0 0.0
  %777 = vmatmul.mubr.f32.gmra.mrb[0].mxu0 %v328
  %v778 = vpop.f32.mrb[0].mxu0
  %v779 = vadd.f32 0.0, %v778
  %v780 = vpop.f32.mrb[0].mxu0
  %781 = vmatprep.mubr.f32.mxu0 0.0
  %782 = vmatmul.mubr.f32.gmra.mrb[0].mxu0 %v329
  %v783 = vpop.f32.mrb[0].mxu0
  %v784 = vadd.f32 0.0, %v783
  %v785 = vpop.f32.mrb[0].mxu0
  %786 = vmatprep.mubr.f32.mxu0 0.0
  %787 = vmatmul.mubr.f32.gmra.mrb[0].mxu0 %v330
  %v788 = vpop.f32.mrb[0].mxu0
  %v789 = vadd.f32 0.0, %v788
  %v790 = vpop.f32.mrb[0].mxu0
  %791 = vmatprep.mubr.f32.mxu0 0.0
  %792 = vmatmul.mubr.f32.gmra.mrb[0].mxu0 %v331
  %v793 = vpop.f32.mrb[0].mxu0
  %v794 = vadd.f32 0.0, %v793
  %v795 = vpop.f32.mrb[0].mxu0
  %796 = vmatprep.mubr.f32.mxu0 0.0
  %797 = vmatmul.mubr.f32.gmra.mrb[0].mxu0 %v332
  %v798 = vpop.f32.mrb[0].mxu0
  %v799 = vadd.f32 0.0, %v798
  %v800 = vpop.f32.mrb[0].mxu0
  %801 = vmatprep.mubr.f32.mxu0 0.0
  %802 = vmatmul.mubr.f32.gmra.mrb[0].mxu0 %v333
  %v803 = vpop.f32.mrb[0].mxu0
  %v804 = vadd.f32 0.0, %v803
  %v805 = vpop.f32.mrb[0].mxu0
  %806 = vmatprep.mubr.f32.mxu0 0.0
  %807 = vmatmul.mubr.f32.gmra.mrb[0].mxu0 %v334
  %v808 = vpop.f32.mrb[0].mxu0
  %v809 = vadd.f32 0.0, %v808
  %v810 = vpop.f32.mrb[0].mxu0
  %811 = vmatprep.mubr.f32.mxu0 0.0
  %812 = vmatmul.mubr.f32.gmra.mrb[0].mxu0 %v335
  %v813 = vpop.f32.mrb[0].mxu0
  %v814 = vadd.f32 0.0, %v813
  %v815 = vpop.f32.mrb[0].mxu0
  %816 = vmatprep.mubr.f32.mxu0 0.0
  %817 = vmatmul.mubr.f32.gmra.mrb[0].mxu0 %v336
  %v818 = vpop.f32.mrb[0].mxu0
  %v819 = vadd.f32 0.0, %v818
  %v820 = vpop.f32.mrb[0].mxu0
  %821 = vmatprep.mubr.f32.mxu0 0.0
  %822 = vmatmul.mubr.f32.gmra.mrb[0].mxu0 %v337
  %v823 = vpop.f32.mrb[0].mxu0
  %v824 = vadd.f32 0.0, %v823
  %v825 = vpop.f32.mrb[0].mxu0
  %826 = vmatprep.mubr.f32.mxu0 0.0
  %827 = vmatmul.mubr.f32.gmra.mrb[0].mxu0 %v338
  %v828 = vpop.f32.mrb[0].mxu0
  %v829 = vadd.f32 0.0, %v828
  %v830 = vpop.f32.mrb[0].mxu0
  %831 = vmatprep.mubr.f32.mxu0 0.0
  %832 = vmatmul.mubr.f32.gmra.mrb[0].mxu0 %v339
  %v833 = vpop.f32.mrb[0].mxu0
  %v834 = vadd.f32 0.0, %v833
  %v835 = vpop.f32.mrb[0].mxu0
  %836 = vmatprep.mubr.f32.mxu0 0.0
  %837 = vmatmul.mubr.f32.gmra.mrb[0].mxu0 %v340
  %v838 = vpop.f32.mrb[0].mxu0
  %v839 = vadd.f32 0.0, %v838
  %v840 = vpop.f32.mrb[0].mxu0
  %841 = vmatprep.mubr.f32.mxu0 0.0
  %842 = vmatmul.mubr.f32.gmra.mrb[0].mxu0 %v341
  %v843 = vpop.f32.mrb[0].mxu0
  %v844 = vadd.f32 0.0, %v843
  %v845 = vpop.f32.mrb[0].mxu0
  %846 = vmatprep.mubr.f32.mxu0 0.0
  %847 = vmatmul.mubr.f32.gmra.mrb[0].mxu0 %v342
  %v848 = vpop.f32.mrb[0].mxu0
  %v849 = vadd.f32 0.0, %v848
  %v850 = vpop.f32.mrb[0].mxu0
  %851 = vmatprep.mubr.f32.mxu0 0.0
  %852 = vmatmul.mubr.f32.gmra.mrb[0].mxu0 %v343
  %v853 = vpop.f32.mrb[0].mxu0
  %v854 = vadd.f32 0.0, %v853
  %v855 = vpop.f32.mrb[0].mxu0
  %856 = vmatprep.mubr.f32.mxu0 0.0
  %857 = vmatmul.mubr.f32.gmra.mrb[0].mxu0 %v344
  %v858 = vpop.f32.mrb[0].mxu0
  %v859 = vadd.f32 0.0, %v858
  %v860 = vpop.f32.mrb[0].mxu0
  %861 = vmatprep.mubr.f32.mxu0 0.0
  %862 = vmatmul.mubr.f32.gmra.mrb[0].mxu0 %v345
  %v863 = vpop.f32.mrb[0].mxu0
  %v864 = vadd.f32 0.0, %v863
  %v865 = vpop.f32.mrb[0].mxu0
  %866 = vmatprep.mubr.f32.mxu0 0.0
  %867 = vmatmul.mubr.f32.gmra.mrb[0].mxu0 %v346
  %v868 = vpop.f32.mrb[0].mxu0
  %v869 = vadd.f32 0.0, %v868
  %v870 = vpop.f32.mrb[0].mxu0
  %871 = vmatprep.mubr.f32.mxu0 0.0
  %872 = vmatmul.mubr.f32.gmra.mrb[0].mxu0 %v347
  %v873 = vpop.f32.mrb[0].mxu0
  %v874 = vadd.f32 0.0, %v873
  %v875 = vpop.f32.mrb[0].mxu0
  %876 = vmatprep.mubr.f32.mxu0 0.0
  %877 = vmatmul.mubr.f32.gmra.mrb[0].mxu0 %v348
  %v878 = vpop.f32.mrb[0].mxu0
  %v879 = vadd.f32 0.0, %v878
  %v880 = vpop.f32.mrb[0].mxu0
  %881 = vmatprep.mubr.f32.mxu0 0.0
  %882 = vmatmul.mubr.f32.gmra.mrb[0].mxu0 %v349
  %v883 = vpop.f32.mrb[0].mxu0
  %v884 = vadd.f32 0.0, %v883
  %v885 = vpop.f32.mrb[0].mxu0
  %886 = vdwg.mxu0
  %887 = vmatprep.subr.mxu0 0.0
  %888 = vmatpush1.msra.mxu0 %v630
  %889 = vmatprep.subr.mxu0 0.0
  %890 = vmatpush1.msra.mxu0 %v631
  %891 = vmatprep.subr.mxu0 0.0
  %892 = vmatpush1.msra.mxu0 %v632
  %893 = vmatprep.subr.mxu0 0.0
  %894 = vmatpush1.msra.mxu0 %v633
  %895 = vmatprep.subr.mxu0 0.0
  %896 = vmatpush1.msra.mxu0 %v634
  %897 = vmatprep.subr.mxu0 0.0
  %898 = vmatpush1.msra.mxu0 %v635
  %899 = vmatprep.subr.mxu0 0.0
  %900 = vmatpush1.msra.mxu0 %v636
  %901 = vmatprep.subr.mxu0 0.0
  %902 = vmatpush1.msra.mxu0 %v637
  %903 = vmatprep.subr.mxu0 0.0
  %904 = vmatpush1.msra.mxu0 %v638
  %905 = vmatprep.subr.mxu0 0.0
  %906 = vmatpush1.msra.mxu0 %v639
  %907 = vmatprep.subr.mxu0 0.0
  %908 = vmatpush1.msra.mxu0 %v640
  %909 = vmatprep.subr.mxu0 0.0
  %910 = vmatpush1.msra.mxu0 %v641
  %911 = vmatprep.subr.mxu0 0.0
  %912 = vmatpush1.msra.mxu0 %v642
  %913 = vmatprep.subr.mxu0 0.0
  %914 = vmatpush1.msra.mxu0 %v643
  %915 = vmatprep.subr.mxu0 0.0
  %916 = vmatpush1.msra.mxu0 %v644
  %917 = vmatprep.subr.mxu0 0.0
  %918 = vmatpush1.msra.mxu0 %v645
  %919 = vmatprep.subr.mxu0 0.0
  %920 = vmatpush1.msra.mxu0 0.0
  %921 = vmatprep.subr.mxu0 0.0
  %922 = vmatpush1.msra.mxu0 0.0
  %923 = vmatprep.subr.mxu0 0.0
  %924 = vmatpush1.msra.mxu0 0.0
  %925 = vmatprep.subr.mxu0 0.0
  %926 = vmatpush1.msra.mxu0 0.0
  %927 = vmatprep.subr.mxu0 0.0
  %928 = vmatpush1.msra.mxu0 0.0
  %929 = vmatprep.subr.mxu0 0.0
  %930 = vmatpush1.msra.mxu0 0.0
  %931 = vmatprep.subr.mxu0 0.0
  %932 = vmatpush1.msra.mxu0 0.0
  %933 = vmatprep.subr.mxu0 0.0
  %934 = vmatpush1.msra.mxu0 0.0
  %935 = vmatprep.subr.mxu0 0.0
  %936 = vmatpush1.msra.mxu0 0.0
  %937 = vmatprep.subr.mxu0 0.0
  %938 = vmatpush1.msra.mxu0 0.0
  %939 = vmatprep.subr.mxu0 0.0
  %940 = vmatpush1.msra.mxu0 0.0
  %941 = vmatprep.subr.mxu0 0.0
  %942 = vmatpush1.msra.mxu0 0.0
  %943 = vmatprep.subr.mxu0 0.0
  %944 = vmatpush1.msra.mxu0 0.0
  %945 = vmatprep.subr.mxu0 0.0
  %946 = vmatpush1.msra.mxu0 0.0
  %947 = vmatprep.subr.mxu0 0.0
  %948 = vmatpush1.msra.mxu0 0.0
  %949 = vmatprep.subr.mxu0 0.0
  %950 = vmatpush1.msra.mxu0 0.0
  %951 = vmatprep.mubr.f32.mxu0 0.0
  %952 = vmatmul.mubr.f32.gmra.mrb[0].mxu0 %v598
  %v953 = vpop.f32.mrb[0].mxu0
  %v954 = vadd.f32 %v729, %v953
  %v955 = vpop.f32.mrb[0].mxu0
  %956 = vmatprep.mubr.f32.mxu0 0.0
  %957 = vmatmul.mubr.f32.gmra.mrb[0].mxu0 %v599
  %v958 = vpop.f32.mrb[0].mxu0
  %v959 = vadd.f32 %v734, %v958
  %v960 = vpop.f32.mrb[0].mxu0
  %961 = vmatprep.mubr.f32.mxu0 0.0
  %962 = vmatmul.mubr.f32.gmra.mrb[0].mxu0 %v600
  %v963 = vpop.f32.mrb[0].mxu0
  %v964 = vadd.f32 %v739, %v963
  %v965 = vpop.f32.mrb[0].mxu0
  %966 = vmatprep.mubr.f32.mxu0 0.0
  %967 = vmatmul.mubr.f32.gmra.mrb[0].mxu0 %v601
  %v968 = vpop.f32.mrb[0].mxu0
  %v969 = vadd.f32 %v744, %v968
  %v970 = vpop.f32.mrb[0].mxu0
  %971 = vmatprep.mubr.f32.mxu0 0.0
  %972 = vmatmul.mubr.f32.gmra.mrb[0].mxu0 %v602
  %v973 = vpop.f32.mrb[0].mxu0
  %v974 = vadd.f32 %v749, %v973
  %v975 = vpop.f32.mrb[0].mxu0
  %976 = vmatprep.mubr.f32.mxu0 0.0
  %977 = vmatmul.mubr.f32.gmra.mrb[0].mxu0 %v603
  %v978 = vpop.f32.mrb[0].mxu0
  %v979 = vadd.f32 %v754, %v978
  %v980 = vpop.f32.mrb[0].mxu0
  %981 = vmatprep.mubr.f32.mxu0 0.0
  %982 = vmatmul.mubr.f32.gmra.mrb[0].mxu0 %v604
  %v983 = vpop.f32.mrb[0].mxu0
  %v984 = vadd.f32 %v759, %v983
  %v985 = vpop.f32.mrb[0].mxu0
  %986 = vmatprep.mubr.f32.mxu0 0.0
  %987 = vmatmul.mubr.f32.gmra.mrb[0].mxu0 %v605
  %v988 = vpop.f32.mrb[0].mxu0
  %v989 = vadd.f32 %v764, %v988
  %v990 = vpop.f32.mrb[0].mxu0
  %991 = vmatprep.mubr.f32.mxu0 0.0
  %992 = vmatmul.mubr.f32.gmra.mrb[0].mxu0 %v606
  %v993 = vpop.f32.mrb[0].mxu0
  %v994 = vadd.f32 %v769, %v993
  %v995 = vpop.f32.mrb[0].mxu0
  %996 = vmatprep.mubr.f32.mxu0 0.0
  %997 = vmatmul.mubr.f32.gmra.mrb[0].mxu0 %v607
  %v998 = vpop.f32.mrb[0].mxu0
  %v999 = vadd.f32 %v774, %v998
  %v1000 = vpop.f32.mrb[0].mxu0
  %1001 = vmatprep.mubr.f32.mxu0 0.0
  %1002 = vmatmul.mubr.f32.gmra.mrb[0].mxu0 %v608
  %v1003 = vpop.f32.mrb[0].mxu0
  %v1004 = vadd.f32 %v779, %v1003
  %v1005 = vpop.f32.mrb[0].mxu0
  %1006 = vmatprep.mubr.f32.mxu0 0.0
  %1007 = vmatmul.mubr.f32.gmra.mrb[0].mxu0 %v609
  %v1008 = vpop.f32.mrb[0].mxu0
  %v1009 = vadd.f32 %v784, %v1008
  %v1010 = vpop.f32.mrb[0].mxu0
  %1011 = vmatprep.mubr.f32.mxu0 0.0
  %1012 = vmatmul.mubr.f32.gmra.mrb[0].mxu0 %v610
  %v1013 = vpop.f32.mrb[0].mxu0
  %v1014 = vadd.f32 %v789, %v1013
  %v1015 = vpop.f32.mrb[0].mxu0
  %1016 = vmatprep.mubr.f32.mxu0 0.0
  %1017 = vmatmul.mubr.f32.gmra.mrb[0].mxu0 %v611
  %v1018 = vpop.f32.mrb[0].mxu0
  %v1019 = vadd.f32 %v794, %v1018
  %v1020 = vpop.f32.mrb[0].mxu0
  %1021 = vmatprep.mubr.f32.mxu0 0.0
  %1022 = vmatmul.mubr.f32.gmra.mrb[0].mxu0 %v612
  %v1023 = vpop.f32.mrb[0].mxu0
  %v1024 = vadd.f32 %v799, %v1023
  %v1025 = vpop.f32.mrb[0].mxu0
  %1026 = vmatprep.mubr.f32.mxu0 0.0
  %1027 = vmatmul.mubr.f32.gmra.mrb[0].mxu0 %v613
  %v1028 = vpop.f32.mrb[0].mxu0
  %v1029 = vadd.f32 %v804, %v1028
  %v1030 = vpop.f32.mrb[0].mxu0
  %1031 = vmatprep.mubr.f32.mxu0 0.0
  %1032 = vmatmul.mubr.f32.gmra.mrb[0].mxu0 %v614
  %v1033 = vpop.f32.mrb[0].mxu0
  %v1034 = vadd.f32 %v809, %v1033
  %v1035 = vpop.f32.mrb[0].mxu0
  %1036 = vmatprep.mubr.f32.mxu0 0.0
  %1037 = vmatmul.mubr.f32.gmra.mrb[0].mxu0 %v615
  %v1038 = vpop.f32.mrb[0].mxu0
  %v1039 = vadd.f32 %v814, %v1038
  %v1040 = vpop.f32.mrb[0].mxu0
  %1041 = vmatprep.mubr.f32.mxu0 0.0
  %1042 = vmatmul.mubr.f32.gmra.mrb[0].mxu0 %v616
  %v1043 = vpop.f32.mrb[0].mxu0
  %v1044 = vadd.f32 %v819, %v1043
  %v1045 = vpop.f32.mrb[0].mxu0
  %1046 = vmatprep.mubr.f32.mxu0 0.0
  %1047 = vmatmul.mubr.f32.gmra.mrb[0].mxu0 %v617
  %v1048 = vpop.f32.mrb[0].mxu0
  %v1049 = vadd.f32 %v824, %v1048
  %v1050 = vpop.f32.mrb[0].mxu0
  %1051 = vmatprep.mubr.f32.mxu0 0.0
  %1052 = vmatmul.mubr.f32.gmra.mrb[0].mxu0 %v618
  %v1053 = vpop.f32.mrb[0].mxu0
  %v1054 = vadd.f32 %v829, %v1053
  %v1055 = vpop.f32.mrb[0].mxu0
  %1056 = vmatprep.mubr.f32.mxu0 0.0
  %1057 = vmatmul.mubr.f32.gmra.mrb[0].mxu0 %v619
  %v1058 = vpop.f32.mrb[0].mxu0
  %v1059 = vadd.f32 %v834, %v1058
  %v1060 = vpop.f32.mrb[0].mxu0
  %1061 = vmatprep.mubr.f32.mxu0 0.0
  %1062 = vmatmul.mubr.f32.gmra.mrb[0].mxu0 %v620
  %v1063 = vpop.f32.mrb[0].mxu0
  %v1064 = vadd.f32 %v839, %v1063
  %v1065 = vpop.f32.mrb[0].mxu0
  %1066 = vmatprep.mubr.f32.mxu0 0.0
  %1067 = vmatmul.mubr.f32.gmra.mrb[0].mxu0 %v621
  %v1068 = vpop.f32.mrb[0].mxu0
  %v1069 = vadd.f32 %v844, %v1068
  %v1070 = vpop.f32.mrb[0].mxu0
  %1071 = vmatprep.mubr.f32.mxu0 0.0
  %1072 = vmatmul.mubr.f32.gmra.mrb[0].mxu0 %v622
  %v1073 = vpop.f32.mrb[0].mxu0
  %v1074 = vadd.f32 %v849, %v1073
  %v1075 = vpop.f32.mrb[0].mxu0
  %1076 = vmatprep.mubr.f32.mxu0 0.0
  %1077 = vmatmul.mubr.f32.gmra.mrb[0].mxu0 %v623
  %v1078 = vpop.f32.mrb[0].mxu0
  %v1079 = vadd.f32 %v854, %v1078
  %v1080 = vpop.f32.mrb[0].mxu0
  %1081 = vmatprep.mubr.f32.mxu0 0.0
  %1082 = vmatmul.mubr.f32.gmra.mrb[0].mxu0 %v624
  %v1083 = vpop.f32.mrb[0].mxu0
  %v1084 = vadd.f32 %v859, %v1083
  %v1085 = vpop.f32.mrb[0].mxu0
  %1086 = vmatprep.mubr.f32.mxu0 0.0
  %1087 = vmatmul.mubr.f32.gmra.mrb[0].mxu0 %v625
  %v1088 = vpop.f32.mrb[0].mxu0
  %v1089 = vadd.f32 %v864, %v1088
  %v1090 = vpop.f32.mrb[0].mxu0
  %1091 = vmatprep.mubr.f32.mxu0 0.0
  %1092 = vmatmul.mubr.f32.gmra.mrb[0].mxu0 %v626
  %v1093 = vpop.f32.mrb[0].mxu0
  %v1094 = vadd.f32 %v869, %v1093
  %v1095 = vpop.f32.mrb[0].mxu0
  %1096 = vmatprep.mubr.f32.mxu0 0.0
  %1097 = vmatmul.mubr.f32.gmra.mrb[0].mxu0 %v627
  %v1098 = vpop.f32.mrb[0].mxu0
  %v1099 = vadd.f32 %v874, %v1098
  %v1100 = vpop.f32.mrb[0].mxu0
  %1101 = vmatprep.mubr.f32.mxu0 0.0
  %1102 = vmatmul.mubr.f32.gmra.mrb[0].mxu0 %v628
  %v1103 = vpop.f32.mrb[0].mxu0
  %v1104 = vadd.f32 %v879, %v1103
  %v1105 = vpop.f32.mrb[0].mxu0
  %1106 = vmatprep.mubr.f32.mxu0 0.0
  %1107 = vmatmul.mubr.f32.gmra.mrb[0].mxu0 %v629
  %v1108 = vpop.f32.mrb[0].mxu0
  %v1109 = vadd.f32 %v884, %v1108
  %v1110 = vpop.f32.mrb[0].mxu0
  %1111 = vdwg.mxu0
  %v1112 = vld [vmem:[%s8] sm:$0xff]
  %v1113 = vld [vmem:[%s8 + $0x8] sm:$0xff]
  %v1114 = vld [vmem:[%s8 + $0x10] sm:$0xff]
  %v1115 = vld [vmem:[%s8 + $0x18] sm:$0xff]
  %v1116 = vld [vmem:[%s8 + $0x20] sm:$0xff]
  %v1117 = vld [vmem:[%s8 + $0x28] sm:$0xff]
  %v1118 = vld [vmem:[%s8 + $0x30] sm:$0xff]
  %v1119 = vld [vmem:[%s8 + $0x38] sm:$0xff]
  %v1120 = vld [vmem:[%s8 + $0x40] sm:$0xff]
  %v1121 = vld [vmem:[%s8 + $0x48] sm:$0xff]
  %v1122 = vld [vmem:[%s8 + $0x50] sm:$0xff]
  %v1123 = vld [vmem:[%s8 + $0x58] sm:$0xff]
  %v1124 = vld [vmem:[%s8 + $0x60] sm:$0xff]
  %v1125 = vld [vmem:[%s8 + $0x68] sm:$0xff]
  %v1126 = vld [vmem:[%s8 + $0x70] sm:$0xff]
  %v1127 = vld [vmem:[%s8 + $0x78] sm:$0xff]
  %1128 = vmatprep.subr.mxu0 0.0
  %1129 = vmatpush1.msra.mxu0 %v1112
  %1130 = vmatprep.subr.mxu0 0.0
  %1131 = vmatpush1.msra.mxu0 %v1113
  %1132 = vmatprep.subr.mxu0 0.0
  %1133 = vmatpush1.msra.mxu0 %v1114
  %1134 = vmatprep.subr.mxu0 0.0
  %1135 = vmatpush1.msra.mxu0 %v1115
  %1136 = vmatprep.subr.mxu0 0.0
  %1137 = vmatpush1.msra.mxu0 %v1116
  %1138 = vmatprep.subr.mxu0 0.0
  %1139 = vmatpush1.msra.mxu0 %v1117
  %1140 = vmatprep.subr.mxu0 0.0
  %1141 = vmatpush1.msra.mxu0 %v1118
  %1142 = vmatprep.subr.mxu0 0.0
  %1143 = vmatpush1.msra.mxu0 %v1119
  %1144 = vmatprep.subr.mxu0 0.0
  %1145 = vmatpush1.msra.mxu0 %v1120
  %1146 = vmatprep.subr.mxu0 0.0
  %1147 = vmatpush1.msra.mxu0 %v1121
  %1148 = vmatprep.subr.mxu0 0.0
  %1149 = vmatpush1.msra.mxu0 %v1122
  %1150 = vmatprep.subr.mxu0 0.0
  %1151 = vmatpush1.msra.mxu0 %v1123
  %1152 = vmatprep.subr.mxu0 0.0
  %1153 = vmatpush1.msra.mxu0 %v1124
  %1154 = vmatprep.subr.mxu0 0.0
  %1155 = vmatpush1.msra.mxu0 %v1125
  %1156 = vmatprep.subr.mxu0 0.0
  %1157 = vmatpush1.msra.mxu0 %v1126
  %1158 = vmatprep.subr.mxu0 0.0
  %1159 = vmatpush1.msra.mxu0 %v1127
  %1160 = vmatprep.subr.mxu0 0.0
  %1161 = vmatpush1.msra.mxu0 0.0
  %1162 = vmatprep.subr.mxu0 0.0
  %1163 = vmatpush1.msra.mxu0 0.0
  %1164 = vmatprep.subr.mxu0 0.0
  %1165 = vmatpush1.msra.mxu0 0.0
  %1166 = vmatprep.subr.mxu0 0.0
  %1167 = vmatpush1.msra.mxu0 0.0
  %1168 = vmatprep.subr.mxu0 0.0
  %1169 = vmatpush1.msra.mxu0 0.0
  %1170 = vmatprep.subr.mxu0 0.0
  %1171 = vmatpush1.msra.mxu0 0.0
  %1172 = vmatprep.subr.mxu0 0.0
  %1173 = vmatpush1.msra.mxu0 0.0
  %1174 = vmatprep.subr.mxu0 0.0
  %1175 = vmatpush1.msra.mxu0 0.0
  %1176 = vmatprep.subr.mxu0 0.0
  %1177 = vmatpush1.msra.mxu0 0.0
  %1178 = vmatprep.subr.mxu0 0.0
  %1179 = vmatpush1.msra.mxu0 0.0
  %1180 = vmatprep.subr.mxu0 0.0
  %1181 = vmatpush1.msra.mxu0 0.0
  %1182 = vmatprep.subr.mxu0 0.0
  %1183 = vmatpush1.msra.mxu0 0.0
  %1184 = vmatprep.subr.mxu0 0.0
  %1185 = vmatpush1.msra.mxu0 0.0
  %1186 = vmatprep.subr.mxu0 0.0
  %1187 = vmatpush1.msra.mxu0 0.0
  %1188 = vmatprep.subr.mxu0 0.0
  %1189 = vmatpush1.msra.mxu0 0.0
  %1190 = vmatprep.subr.mxu0 0.0
  %1191 = vmatpush1.msra.mxu0 0.0
  %1192 = vmatprep.mubr.f32.mxu0 0.0
  %1193 = vmatmul.mubr.f32.gmra.mrb[0].mxu0 %v38
  %v1194 = vpop.f32.mrb[0].mxu0
  %v1195 = vadd.f32 0.0, %v1194
  %v1196 = vpop.f32.mrb[0].mxu0
  %1197 = vmatprep.mubr.f32.mxu0 0.0
  %1198 = vmatmul.mubr.f32.gmra.mrb[0].mxu0 %v39
  %v1199 = vpop.f32.mrb[0].mxu0
  %v1200 = vadd.f32 0.0, %v1199
  %v1201 = vpop.f32.mrb[0].mxu0
  %1202 = vmatprep.mubr.f32.mxu0 0.0
  %1203 = vmatmul.mubr.f32.gmra.mrb[0].mxu0 %v40
  %v1204 = vpop.f32.mrb[0].mxu0
  %v1205 = vadd.f32 0.0, %v1204
  %v1206 = vpop.f32.mrb[0].mxu0
  %1207 = vmatprep.mubr.f32.mxu0 0.0
  %1208 = vmatmul.mubr.f32.gmra.mrb[0].mxu0 %v41
  %v1209 = vpop.f32.mrb[0].mxu0
  %v1210 = vadd.f32 0.0, %v1209
  %v1211 = vpop.f32.mrb[0].mxu0
  %1212 = vmatprep.mubr.f32.mxu0 0.0
  %1213 = vmatmul.mubr.f32.gmra.mrb[0].mxu0 %v42
  %v1214 = vpop.f32.mrb[0].mxu0
  %v1215 = vadd.f32 0.0, %v1214
  %v1216 = vpop.f32.mrb[0].mxu0
  %1217 = vmatprep.mubr.f32.mxu0 0.0
  %1218 = vmatmul.mubr.f32.gmra.mrb[0].mxu0 %v43
  %v1219 = vpop.f32.mrb[0].mxu0
  %v1220 = vadd.f32 0.0, %v1219
  %v1221 = vpop.f32.mrb[0].mxu0
  %1222 = vmatprep.mubr.f32.mxu0 0.0
  %1223 = vmatmul.mubr.f32.gmra.mrb[0].mxu0 %v44
  %v1224 = vpop.f32.mrb[0].mxu0
  %v1225 = vadd.f32 0.0, %v1224
  %v1226 = vpop.f32.mrb[0].mxu0
  %1227 = vmatprep.mubr.f32.mxu0 0.0
  %1228 = vmatmul.mubr.f32.gmra.mrb[0].mxu0 %v45
  %v1229 = vpop.f32.mrb[0].mxu0
  %v1230 = vadd.f32 0.0, %v1229
  %v1231 = vpop.f32.mrb[0].mxu0
  %1232 = vmatprep.mubr.f32.mxu0 0.0
  %1233 = vmatmul.mubr.f32.gmra.mrb[0].mxu0 %v46
  %v1234 = vpop.f32.mrb[0].mxu0
  %v1235 = vadd.f32 0.0, %v1234
  %v1236 = vpop.f32.mrb[0].mxu0
  %1237 = vmatprep.mubr.f32.mxu0 0.0
  %1238 = vmatmul.mubr.f32.gmra.mrb[0].mxu0 %v47
  %v1239 = vpop.f32.mrb[0].mxu0
  %v1240 = vadd.f32 0.0, %v1239
  %v1241 = vpop.f32.mrb[0].mxu0
  %1242 = vmatprep.mubr.f32.mxu0 0.0
  %1243 = vmatmul.mubr.f32.gmra.mrb[0].mxu0 %v48
  %v1244 = vpop.f32.mrb[0].mxu0
  %v1245 = vadd.f32 0.0, %v1244
  %v1246 = vpop.f32.mrb[0].mxu0
  %1247 = vmatprep.mubr.f32.mxu0 0.0
  %1248 = vmatmul.mubr.f32.gmra.mrb[0].mxu0 %v49
  %v1249 = vpop.f32.mrb[0].mxu0
  %v1250 = vadd.f32 0.0, %v1249
  %v1251 = vpop.f32.mrb[0].mxu0
  %1252 = vmatprep.mubr.f32.mxu0 0.0
  %1253 = vmatmul.mubr.f32.gmra.mrb[0].mxu0 %v50
  %v1254 = vpop.f32.mrb[0].mxu0
  %v1255 = vadd.f32 0.0, %v1254
  %v1256 = vpop.f32.mrb[0].mxu0
  %1257 = vmatprep.mubr.f32.mxu0 0.0
  %1258 = vmatmul.mubr.f32.gmra.mrb[0].mxu0 %v51
  %v1259 = vpop.f32.mrb[0].mxu0
  %v1260 = vadd.f32 0.0, %v1259
  %v1261 = vpop.f32.mrb[0].mxu0
  %1262 = vmatprep.mubr.f32.mxu0 0.0
  %1263 = vmatmul.mubr.f32.gmra.mrb[0].mxu0 %v52
  %v1264 = vpop.f32.mrb[0].mxu0
  %v1265 = vadd.f32 0.0, %v1264
  %v1266 = vpop.f32.mrb[0].mxu0
  %1267 = vmatprep.mubr.f32.mxu0 0.0
  %1268 = vmatmul.mubr.f32.gmra.mrb[0].mxu0 %v53
  %v1269 = vpop.f32.mrb[0].mxu0
  %v1270 = vadd.f32 0.0, %v1269
  %v1271 = vpop.f32.mrb[0].mxu0
  %1272 = vmatprep.mubr.f32.mxu0 0.0
  %1273 = vmatmul.mubr.f32.gmra.mrb[0].mxu0 %v54
  %v1274 = vpop.f32.mrb[0].mxu0
  %v1275 = vadd.f32 0.0, %v1274
  %v1276 = vpop.f32.mrb[0].mxu0
  %1277 = vmatprep.mubr.f32.mxu0 0.0
  %1278 = vmatmul.mubr.f32.gmra.mrb[0].mxu0 %v55
  %v1279 = vpop.f32.mrb[0].mxu0
  %v1280 = vadd.f32 0.0, %v1279
  %v1281 = vpop.f32.mrb[0].mxu0
  %1282 = vmatprep.mubr.f32.mxu0 0.0
  %1283 = vmatmul.mubr.f32.gmra.mrb[0].mxu0 %v56
  %v1284 = vpop.f32.mrb[0].mxu0
  %v1285 = vadd.f32 0.0, %v1284
  %v1286 = vpop.f32.mrb[0].mxu0
  %1287 = vmatprep.mubr.f32.mxu0 0.0
  %1288 = vmatmul.mubr.f32.gmra.mrb[0].mxu0 %v57
  %v1289 = vpop.f32.mrb[0].mxu0
  %v1290 = vadd.f32 0.0, %v1289
  %v1291 = vpop.f32.mrb[0].mxu0
  %1292 = vmatprep.mubr.f32.mxu0 0.0
  %1293 = vmatmul.mubr.f32.gmra.mrb[0].mxu0 %v58
  %v1294 = vpop.f32.mrb[0].mxu0
  %v1295 = vadd.f32 0.0, %v1294
  %v1296 = vpop.f32.mrb[0].mxu0
  %1297 = vmatprep.mubr.f32.mxu0 0.0
  %1298 = vmatmul.mubr.f32.gmra.mrb[0].mxu0 %v59
  %v1299 = vpop.f32.mrb[0].mxu0
  %v1300 = vadd.f32 0.0, %v1299
  %v1301 = vpop.f32.mrb[0].mxu0
  %1302 = vmatprep.mubr.f32.mxu0 0.0
  %1303 = vmatmul.mubr.f32.gmra.mrb[0].mxu0 %v60
  %v1304 = vpop.f32.mrb[0].mxu0
  %v1305 = vadd.f32 0.0, %v1304
  %v1306 = vpop.f32.mrb[0].mxu0
  %1307 = vmatprep.mubr.f32.mxu0 0.0
  %1308 = vmatmul.mubr.f32.gmra.mrb[0].mxu0 %v61
  %v1309 = vpop.f32.mrb[0].mxu0
  %v1310 = vadd.f32 0.0, %v1309
  %v1311 = vpop.f32.mrb[0].mxu0
  %1312 = vmatprep.mubr.f32.mxu0 0.0
  %1313 = vmatmul.mubr.f32.gmra.mrb[0].mxu0 %v62
  %v1314 = vpop.f32.mrb[0].mxu0
  %v1315 = vadd.f32 0.0, %v1314
  %v1316 = vpop.f32.mrb[0].mxu0
  %1317 = vmatprep.mubr.f32.mxu0 0.0
  %1318 = vmatmul.mubr.f32.gmra.mrb[0].mxu0 %v63
  %v1319 = vpop.f32.mrb[0].mxu0
  %v1320 = vadd.f32 0.0, %v1319
  %v1321 = vpop.f32.mrb[0].mxu0
  %1322 = vmatprep.mubr.f32.mxu0 0.0
  %1323 = vmatmul.mubr.f32.gmra.mrb[0].mxu0 %v64
  %v1324 = vpop.f32.mrb[0].mxu0
  %v1325 = vadd.f32 0.0, %v1324
  %v1326 = vpop.f32.mrb[0].mxu0
  %1327 = vmatprep.mubr.f32.mxu0 0.0
  %1328 = vmatmul.mubr.f32.gmra.mrb[0].mxu0 %v65
  %v1329 = vpop.f32.mrb[0].mxu0
  %v1330 = vadd.f32 0.0, %v1329
  %v1331 = vpop.f32.mrb[0].mxu0
  %1332 = vmatprep.mubr.f32.mxu0 0.0
  %1333 = vmatmul.mubr.f32.gmra.mrb[0].mxu0 %v66
  %v1334 = vpop.f32.mrb[0].mxu0
  %v1335 = vadd.f32 0.0, %v1334
  %v1336 = vpop.f32.mrb[0].mxu0
  %1337 = vmatprep.mubr.f32.mxu0 0.0
  %1338 = vmatmul.mubr.f32.gmra.mrb[0].mxu0 %v67
  %v1339 = vpop.f32.mrb[0].mxu0
  %v1340 = vadd.f32 0.0, %v1339
  %v1341 = vpop.f32.mrb[0].mxu0
  %1342 = vmatprep.mubr.f32.mxu0 0.0
  %1343 = vmatmul.mubr.f32.gmra.mrb[0].mxu0 %v68
  %v1344 = vpop.f32.mrb[0].mxu0
  %v1345 = vadd.f32 0.0, %v1344
  %v1346 = vpop.f32.mrb[0].mxu0
  %1347 = vmatprep.mubr.f32.mxu0 0.0
  %1348 = vmatmul.mubr.f32.gmra.mrb[0].mxu0 %v69
  %v1349 = vpop.f32.mrb[0].mxu0
  %v1350 = vadd.f32 0.0, %v1349
  %v1351 = vpop.f32.mrb[0].mxu0
  %1352 = vdwg.mxu0
  %v1353 = vadd.f32 %v954, %v1195
  %v1354 = vadd.f32 %v959, %v1200
  %v1355 = vadd.f32 %v964, %v1205
  %v1356 = vadd.f32 %v969, %v1210
  %v1357 = vadd.f32 %v974, %v1215
  %v1358 = vadd.f32 %v979, %v1220
  %v1359 = vadd.f32 %v984, %v1225
  %v1360 = vadd.f32 %v989, %v1230
  %v1361 = vadd.f32 %v994, %v1235
  %v1362 = vadd.f32 %v999, %v1240
  %v1363 = vadd.f32 %v1004, %v1245
  %v1364 = vadd.f32 %v1009, %v1250
  %v1365 = vadd.f32 %v1014, %v1255
  %v1366 = vadd.f32 %v1019, %v1260
  %v1367 = vadd.f32 %v1024, %v1265
  %v1368 = vadd.f32 %v1029, %v1270
  %v1369 = vadd.f32 %v1034, %v1275
  %v1370 = vadd.f32 %v1039, %v1280
  %v1371 = vadd.f32 %v1044, %v1285
  %v1372 = vadd.f32 %v1049, %v1290
  %v1373 = vadd.f32 %v1054, %v1295
  %v1374 = vadd.f32 %v1059, %v1300
  %v1375 = vadd.f32 %v1064, %v1305
  %v1376 = vadd.f32 %v1069, %v1310
  %v1377 = vadd.f32 %v1074, %v1315
  %v1378 = vadd.f32 %v1079, %v1320
  %v1379 = vadd.f32 %v1084, %v1325
  %v1380 = vadd.f32 %v1089, %v1330
  %v1381 = vadd.f32 %v1094, %v1335
  %v1382 = vadd.f32 %v1099, %v1340
  %v1383 = vadd.f32 %v1104, %v1345
  %v1384 = vadd.f32 %v1109, %v1350
  %v1385 = vld [vmem:[%s1] sm:$0xff]
  %v1386 = vld [vmem:[%s1 + $0x8] sm:$0xff]
  %v1387 = vld [vmem:[%s1 + $0x10] sm:$0xff]
  %v1388 = vld [vmem:[%s1 + $0x18] sm:$0xff]
  %v1389 = vld [vmem:[%s1 + $0x20] sm:$0xff]
  %v1390 = vld [vmem:[%s1 + $0x28] sm:$0xff]
  %v1391 = vld [vmem:[%s1 + $0x30] sm:$0xff]
  %v1392 = vld [vmem:[%s1 + $0x38] sm:$0xff]
  %v1393 = vld [vmem:[%s1 + $0x40] sm:$0xff]
  %v1394 = vld [vmem:[%s1 + $0x48] sm:$0xff]
  %v1395 = vld [vmem:[%s1 + $0x50] sm:$0xff]
  %v1396 = vld [vmem:[%s1 + $0x58] sm:$0xff]
  %v1397 = vld [vmem:[%s1 + $0x60] sm:$0xff]
  %v1398 = vld [vmem:[%s1 + $0x68] sm:$0xff]
  %v1399 = vld [vmem:[%s1 + $0x70] sm:$0xff]
  %v1400 = vld [vmem:[%s1 + $0x78] sm:$0xff]
  %v1401 = vld [vmem:[%s1 + $0x80] sm:$0xff]
  %v1402 = vld [vmem:[%s1 + $0x88] sm:$0xff]
  %v1403 = vld [vmem:[%s1 + $0x90] sm:$0xff]
  %v1404 = vld [vmem:[%s1 + $0x98] sm:$0xff]
  %v1405 = vld [vmem:[%s1 + $0xa0] sm:$0xff]
  %v1406 = vld [vmem:[%s1 + $0xa8] sm:$0xff]
  %v1407 = vld [vmem:[%s1 + $0xb0] sm:$0xff]
  %v1408 = vld [vmem:[%s1 + $0xb8] sm:$0xff]
  %v1409 = vld [vmem:[%s1 + $0xc0] sm:$0xff]
  %v1410 = vld [vmem:[%s1 + $0xc8] sm:$0xff]
  %v1411 = vld [vmem:[%s1 + $0xd0] sm:$0xff]
  %v1412 = vld [vmem:[%s1 + $0xd8] sm:$0xff]
  %v1413 = vld [vmem:[%s1 + $0xe0] sm:$0xff]
  %v1414 = vld [vmem:[%s1 + $0xe8] sm:$0xff]
  %v1415 = vld [vmem:[%s1 + $0xf0] sm:$0xff]
  %v1416 = vld [vmem:[%s1 + $0xf8] sm:$0xff]
  %v1417 = vld [vmem:[%s9] sm:$0xff]
  %v1418 = vld [vmem:[%s9 + $0x8] sm:$0xff]
  %v1419 = vld [vmem:[%s9 + $0x10] sm:$0xff]
  %v1420 = vld [vmem:[%s9 + $0x18] sm:$0xff]
  %v1421 = vld [vmem:[%s9 + $0x20] sm:$0xff]
  %v1422 = vld [vmem:[%s9 + $0x28] sm:$0xff]
  %v1423 = vld [vmem:[%s9 + $0x30] sm:$0xff]
  %v1424 = vld [vmem:[%s9 + $0x38] sm:$0xff]
  %v1425 = vld [vmem:[%s9 + $0x40] sm:$0xff]
  %v1426 = vld [vmem:[%s9 + $0x48] sm:$0xff]
  %v1427 = vld [vmem:[%s9 + $0x50] sm:$0xff]
  %v1428 = vld [vmem:[%s9 + $0x58] sm:$0xff]
  %v1429 = vld [vmem:[%s9 + $0x60] sm:$0xff]
  %v1430 = vld [vmem:[%s9 + $0x68] sm:$0xff]
  %v1431 = vld [vmem:[%s9 + $0x70] sm:$0xff]
  %v1432 = vld [vmem:[%s9 + $0x78] sm:$0xff]
  %1433 = vmatprep.subr.mxu0 0.0
  %1434 = vmatpush1.msra.mxu0 %v1417
  %1435 = vmatprep.subr.mxu0 0.0
  %1436 = vmatpush1.msra.mxu0 %v1418
  %1437 = vmatprep.subr.mxu0 0.0
  %1438 = vmatpush1.msra.mxu0 %v1419
  %1439 = vmatprep.subr.mxu0 0.0
  %1440 = vmatpush1.msra.mxu0 %v1420
  %1441 = vmatprep.subr.mxu0 0.0
  %1442 = vmatpush1.msra.mxu0 %v1421
  %1443 = vmatprep.subr.mxu0 0.0
  %1444 = vmatpush1.msra.mxu0 %v1422
  %1445 = vmatprep.subr.mxu0 0.0
  %1446 = vmatpush1.msra.mxu0 %v1423
  %1447 = vmatprep.subr.mxu0 0.0
  %1448 = vmatpush1.msra.mxu0 %v1424
  %1449 = vmatprep.subr.mxu0 0.0
  %1450 = vmatpush1.msra.mxu0 %v1425
  %1451 = vmatprep.subr.mxu0 0.0
  %1452 = vmatpush1.msra.mxu0 %v1426
  %1453 = vmatprep.subr.mxu0 0.0
  %1454 = vmatpush1.msra.mxu0 %v1427
  %1455 = vmatprep.subr.mxu0 0.0
  %1456 = vmatpush1.msra.mxu0 %v1428
  %1457 = vmatprep.subr.mxu0 0.0
  %1458 = vmatpush1.msra.mxu0 %v1429
  %1459 = vmatprep.subr.mxu0 0.0
  %1460 = vmatpush1.msra.mxu0 %v1430
  %1461 = vmatprep.subr.mxu0 0.0
  %1462 = vmatpush1.msra.mxu0 %v1431
  %1463 = vmatprep.subr.mxu0 0.0
  %1464 = vmatpush1.msra.mxu0 %v1432
  %1465 = vmatprep.subr.mxu0 0.0
  %1466 = vmatpush1.msra.mxu0 0.0
  %1467 = vmatprep.subr.mxu0 0.0
  %1468 = vmatpush1.msra.mxu0 0.0
  %1469 = vmatprep.subr.mxu0 0.0
  %1470 = vmatpush1.msra.mxu0 0.0
  %1471 = vmatprep.subr.mxu0 0.0
  %1472 = vmatpush1.msra.mxu0 0.0
  %1473 = vmatprep.subr.mxu0 0.0
  %1474 = vmatpush1.msra.mxu0 0.0
  %1475 = vmatprep.subr.mxu0 0.0
  %1476 = vmatpush1.msra.mxu0 0.0
  %1477 = vmatprep.subr.mxu0 0.0
  %1478 = vmatpush1.msra.mxu0 0.0
  %1479 = vmatprep.subr.mxu0 0.0
  %1480 = vmatpush1.msra.mxu0 0.0
  %1481 = vmatprep.subr.mxu0 0.0
  %1482 = vmatpush1.msra.mxu0 0.0
  %1483 = vmatprep.subr.mxu0 0.0
  %1484 = vmatpush1.msra.mxu0 0.0
  %1485 = vmatprep.subr.mxu0 0.0
  %1486 = vmatpush1.msra.mxu0 0.0
  %1487 = vmatprep.subr.mxu0 0.0
  %1488 = vmatpush1.msra.mxu0 0.0
  %1489 = vmatprep.subr.mxu0 0.0
  %1490 = vmatpush1.msra.mxu0 0.0
  %1491 = vmatprep.subr.mxu0 0.0
  %1492 = vmatpush1.msra.mxu0 0.0
  %1493 = vmatprep.subr.mxu0 0.0
  %1494 = vmatpush1.msra.mxu0 0.0
  %1495 = vmatprep.subr.mxu0 0.0
  %1496 = vmatpush1.msra.mxu0 0.0
  %1497 = vmatprep.mubr.f32.mxu0 0.0
  %1498 = vmatmul.mubr.f32.gmra.mrb[0].mxu0 %v1385
  %v1499 = vpop.f32.mrb[0].mxu0
  %v1500 = vadd.f32 0.0, %v1499
  %v1501 = vpop.f32.mrb[0].mxu0
  %1502 = vmatprep.mubr.f32.mxu0 0.0
  %1503 = vmatmul.mubr.f32.gmra.mrb[0].mxu0 %v1386
  %v1504 = vpop.f32.mrb[0].mxu0
  %v1505 = vadd.f32 0.0, %v1504
  %v1506 = vpop.f32.mrb[0].mxu0
  %1507 = vmatprep.mubr.f32.mxu0 0.0
  %1508 = vmatmul.mubr.f32.gmra.mrb[0].mxu0 %v1387
  %v1509 = vpop.f32.mrb[0].mxu0
  %v1510 = vadd.f32 0.0, %v1509
  %v1511 = vpop.f32.mrb[0].mxu0
  %1512 = vmatprep.mubr.f32.mxu0 0.0
  %1513 = vmatmul.mubr.f32.gmra.mrb[0].mxu0 %v1388
  %v1514 = vpop.f32.mrb[0].mxu0
  %v1515 = vadd.f32 0.0, %v1514
  %v1516 = vpop.f32.mrb[0].mxu0
  %1517 = vmatprep.mubr.f32.mxu0 0.0
  %1518 = vmatmul.mubr.f32.gmra.mrb[0].mxu0 %v1389
  %v1519 = vpop.f32.mrb[0].mxu0
  %v1520 = vadd.f32 0.0, %v1519
  %v1521 = vpop.f32.mrb[0].mxu0
  %1522 = vmatprep.mubr.f32.mxu0 0.0
  %1523 = vmatmul.mubr.f32.gmra.mrb[0].mxu0 %v1390
  %v1524 = vpop.f32.mrb[0].mxu0
  %v1525 = vadd.f32 0.0, %v1524
  %v1526 = vpop.f32.mrb[0].mxu0
  %1527 = vmatprep.mubr.f32.mxu0 0.0
  %1528 = vmatmul.mubr.f32.gmra.mrb[0].mxu0 %v1391
  %v1529 = vpop.f32.mrb[0].mxu0
  %v1530 = vadd.f32 0.0, %v1529
  %v1531 = vpop.f32.mrb[0].mxu0
  %1532 = vmatprep.mubr.f32.mxu0 0.0
  %1533 = vmatmul.mubr.f32.gmra.mrb[0].mxu0 %v1392
  %v1534 = vpop.f32.mrb[0].mxu0
  %v1535 = vadd.f32 0.0, %v1534
  %v1536 = vpop.f32.mrb[0].mxu0
  %1537 = vmatprep.mubr.f32.mxu0 0.0
  %1538 = vmatmul.mubr.f32.gmra.mrb[0].mxu0 %v1393
  %v1539 = vpop.f32.mrb[0].mxu0
  %v1540 = vadd.f32 0.0, %v1539
  %v1541 = vpop.f32.mrb[0].mxu0
  %1542 = vmatprep.mubr.f32.mxu0 0.0
  %1543 = vmatmul.mubr.f32.gmra.mrb[0].mxu0 %v1394
  %v1544 = vpop.f32.mrb[0].mxu0
  %v1545 = vadd.f32 0.0, %v1544
  %v1546 = vpop.f32.mrb[0].mxu0
  %1547 = vmatprep.mubr.f32.mxu0 0.0
  %1548 = vmatmul.mubr.f32.gmra.mrb[0].mxu0 %v1395
  %v1549 = vpop.f32.mrb[0].mxu0
  %v1550 = vadd.f32 0.0, %v1549
  %v1551 = vpop.f32.mrb[0].mxu0
  %1552 = vmatprep.mubr.f32.mxu0 0.0
  %1553 = vmatmul.mubr.f32.gmra.mrb[0].mxu0 %v1396
  %v1554 = vpop.f32.mrb[0].mxu0
  %v1555 = vadd.f32 0.0, %v1554
  %v1556 = vpop.f32.mrb[0].mxu0
  %1557 = vmatprep.mubr.f32.mxu0 0.0
  %1558 = vmatmul.mubr.f32.gmra.mrb[0].mxu0 %v1397
  %v1559 = vpop.f32.mrb[0].mxu0
  %v1560 = vadd.f32 0.0, %v1559
  %v1561 = vpop.f32.mrb[0].mxu0
  %1562 = vmatprep.mubr.f32.mxu0 0.0
  %1563 = vmatmul.mubr.f32.gmra.mrb[0].mxu0 %v1398
  %v1564 = vpop.f32.mrb[0].mxu0
  %v1565 = vadd.f32 0.0, %v1564
  %v1566 = vpop.f32.mrb[0].mxu0
  %1567 = vmatprep.mubr.f32.mxu0 0.0
  %1568 = vmatmul.mubr.f32.gmra.mrb[0].mxu0 %v1399
  %v1569 = vpop.f32.mrb[0].mxu0
  %v1570 = vadd.f32 0.0, %v1569
  %v1571 = vpop.f32.mrb[0].mxu0
  %1572 = vmatprep.mubr.f32.mxu0 0.0
  %1573 = vmatmul.mubr.f32.gmra.mrb[0].mxu0 %v1400
  %v1574 = vpop.f32.mrb[0].mxu0
  %v1575 = vadd.f32 0.0, %v1574
  %v1576 = vpop.f32.mrb[0].mxu0
  %1577 = vmatprep.mubr.f32.mxu0 0.0
  %1578 = vmatmul.mubr.f32.gmra.mrb[0].mxu0 %v1401
  %v1579 = vpop.f32.mrb[0].mxu0
  %v1580 = vadd.f32 0.0, %v1579
  %v1581 = vpop.f32.mrb[0].mxu0
  %1582 = vmatprep.mubr.f32.mxu0 0.0
  %1583 = vmatmul.mubr.f32.gmra.mrb[0].mxu0 %v1402
  %v1584 = vpop.f32.mrb[0].mxu0
  %v1585 = vadd.f32 0.0, %v1584
  %v1586 = vpop.f32.mrb[0].mxu0
  %1587 = vmatprep.mubr.f32.mxu0 0.0
  %1588 = vmatmul.mubr.f32.gmra.mrb[0].mxu0 %v1403
  %v1589 = vpop.f32.mrb[0].mxu0
  %v1590 = vadd.f32 0.0, %v1589
  %v1591 = vpop.f32.mrb[0].mxu0
  %1592 = vmatprep.mubr.f32.mxu0 0.0
  %1593 = vmatmul.mubr.f32.gmra.mrb[0].mxu0 %v1404
  %v1594 = vpop.f32.mrb[0].mxu0
  %v1595 = vadd.f32 0.0, %v1594
  %v1596 = vpop.f32.mrb[0].mxu0
  %1597 = vmatprep.mubr.f32.mxu0 0.0
  %1598 = vmatmul.mubr.f32.gmra.mrb[0].mxu0 %v1405
  %v1599 = vpop.f32.mrb[0].mxu0
  %v1600 = vadd.f32 0.0, %v1599
  %v1601 = vpop.f32.mrb[0].mxu0
  %1602 = vmatprep.mubr.f32.mxu0 0.0
  %1603 = vmatmul.mubr.f32.gmra.mrb[0].mxu0 %v1406
  %v1604 = vpop.f32.mrb[0].mxu0
  %v1605 = vadd.f32 0.0, %v1604
  %v1606 = vpop.f32.mrb[0].mxu0
  %1607 = vmatprep.mubr.f32.mxu0 0.0
  %1608 = vmatmul.mubr.f32.gmra.mrb[0].mxu0 %v1407
  %v1609 = vpop.f32.mrb[0].mxu0
  %v1610 = vadd.f32 0.0, %v1609
  %v1611 = vpop.f32.mrb[0].mxu0
  %1612 = vmatprep.mubr.f32.mxu0 0.0
  %1613 = vmatmul.mubr.f32.gmra.mrb[0].mxu0 %v1408
  %v1614 = vpop.f32.mrb[0].mxu0
  %v1615 = vadd.f32 0.0, %v1614
  %v1616 = vpop.f32.mrb[0].mxu0
  %1617 = vmatprep.mubr.f32.mxu0 0.0
  %1618 = vmatmul.mubr.f32.gmra.mrb[0].mxu0 %v1409
  %v1619 = vpop.f32.mrb[0].mxu0
  %v1620 = vadd.f32 0.0, %v1619
  %v1621 = vpop.f32.mrb[0].mxu0
  %1622 = vmatprep.mubr.f32.mxu0 0.0
  %1623 = vmatmul.mubr.f32.gmra.mrb[0].mxu0 %v1410
  %v1624 = vpop.f32.mrb[0].mxu0
  %v1625 = vadd.f32 0.0, %v1624
  %v1626 = vpop.f32.mrb[0].mxu0
  %1627 = vmatprep.mubr.f32.mxu0 0.0
  %1628 = vmatmul.mubr.f32.gmra.mrb[0].mxu0 %v1411
  %v1629 = vpop.f32.mrb[0].mxu0
  %v1630 = vadd.f32 0.0, %v1629
  %v1631 = vpop.f32.mrb[0].mxu0
  %1632 = vmatprep.mubr.f32.mxu0 0.0
  %1633 = vmatmul.mubr.f32.gmra.mrb[0].mxu0 %v1412
  %v1634 = vpop.f32.mrb[0].mxu0
  %v1635 = vadd.f32 0.0, %v1634
  %v1636 = vpop.f32.mrb[0].mxu0
  %1637 = vmatprep.mubr.f32.mxu0 0.0
  %1638 = vmatmul.mubr.f32.gmra.mrb[0].mxu0 %v1413
  %v1639 = vpop.f32.mrb[0].mxu0
  %v1640 = vadd.f32 0.0, %v1639
  %v1641 = vpop.f32.mrb[0].mxu0
  %1642 = vmatprep.mubr.f32.mxu0 0.0
  %1643 = vmatmul.mubr.f32.gmra.mrb[0].mxu0 %v1414
  %v1644 = vpop.f32.mrb[0].mxu0
  %v1645 = vadd.f32 0.0, %v1644
  %v1646 = vpop.f32.mrb[0].mxu0
  %1647 = vmatprep.mubr.f32.mxu0 0.0
  %1648 = vmatmul.mubr.f32.gmra.mrb[0].mxu0 %v1415
  %v1649 = vpop.f32.mrb[0].mxu0
  %v1650 = vadd.f32 0.0, %v1649
  %v1651 = vpop.f32.mrb[0].mxu0
  %1652 = vmatprep.mubr.f32.mxu0 0.0
  %1653 = vmatmul.mubr.f32.gmra.mrb[0].mxu0 %v1416
  %v1654 = vpop.f32.mrb[0].mxu0
  %v1655 = vadd.f32 0.0, %v1654
  %v1656 = vpop.f32.mrb[0].mxu0
  %1657 = vdwg.mxu0
  %v1658 = vadd.f32 %v1353, %v1500
  %v1659 = vadd.f32 %v1354, %v1505
  %v1660 = vadd.f32 %v1355, %v1510
  %v1661 = vadd.f32 %v1356, %v1515
  %v1662 = vadd.f32 %v1357, %v1520
  %v1663 = vadd.f32 %v1358, %v1525
  %v1664 = vadd.f32 %v1359, %v1530
  %v1665 = vadd.f32 %v1360, %v1535
  %v1666 = vadd.f32 %v1361, %v1540
  %v1667 = vadd.f32 %v1362, %v1545
  %v1668 = vadd.f32 %v1363, %v1550
  %v1669 = vadd.f32 %v1364, %v1555
  %v1670 = vadd.f32 %v1365, %v1560
  %v1671 = vadd.f32 %v1366, %v1565
  %v1672 = vadd.f32 %v1367, %v1570
  %v1673 = vadd.f32 %v1368, %v1575
  %v1674 = vadd.f32 %v1369, %v1580
  %v1675 = vadd.f32 %v1370, %v1585
  %v1676 = vadd.f32 %v1371, %v1590
  %v1677 = vadd.f32 %v1372, %v1595
  %v1678 = vadd.f32 %v1373, %v1600
  %v1679 = vadd.f32 %v1374, %v1605
  %v1680 = vadd.f32 %v1375, %v1610
  %v1681 = vadd.f32 %v1376, %v1615
  %v1682 = vadd.f32 %v1377, %v1620
  %v1683 = vadd.f32 %v1378, %v1625
  %v1684 = vadd.f32 %v1379, %v1630
  %v1685 = vadd.f32 %v1380, %v1635
  %v1686 = vadd.f32 %v1381, %v1640
  %v1687 = vadd.f32 %v1382, %v1645
  %v1688 = vadd.f32 %v1383, %v1650
  %v1689 = vadd.f32 %v1384, %v1655
  %v1690 = vld [vmem:[%s10] sm:$0x1]
  %v1692 = vlaneseq
  %v1693 = vshrl.u32 %v1692, 7
  %v1694 = vsub.s32 0, %v1693
  %v1695 = vrot.slane %v1690, %v1694
  %v1697 = vadd.f32 %v1658, %v1695
  %v1698 = vadd.f32 %v1659, %v1695
  %v1699 = vadd.f32 %v1660, %v1695
  %v1700 = vadd.f32 %v1661, %v1695
  %v1701 = vadd.f32 %v1662, %v1695
  %v1702 = vadd.f32 %v1663, %v1695
  %v1703 = vadd.f32 %v1664, %v1695
  %v1704 = vadd.f32 %v1665, %v1695
  %v1705 = vadd.f32 %v1666, %v1695
  %v1706 = vadd.f32 %v1667, %v1695
  %v1707 = vadd.f32 %v1668, %v1695
  %v1708 = vadd.f32 %v1669, %v1695
  %v1709 = vadd.f32 %v1670, %v1695
  %v1710 = vadd.f32 %v1671, %v1695
  %v1711 = vadd.f32 %v1672, %v1695
  %v1712 = vadd.f32 %v1673, %v1695
  %v1713 = vadd.f32 %v1674, %v1695
  %v1714 = vadd.f32 %v1675, %v1695
  %v1715 = vadd.f32 %v1676, %v1695
  %v1716 = vadd.f32 %v1677, %v1695
  %v1717 = vadd.f32 %v1678, %v1695
  %v1718 = vadd.f32 %v1679, %v1695
  %v1719 = vadd.f32 %v1680, %v1695
  %v1720 = vadd.f32 %v1681, %v1695
  %v1721 = vadd.f32 %v1682, %v1695
  %v1722 = vadd.f32 %v1683, %v1695
  %v1723 = vadd.f32 %v1684, %v1695
  %v1724 = vadd.f32 %v1685, %v1695
  %v1725 = vadd.f32 %v1686, %v1695
  %v1726 = vadd.f32 %v1687, %v1695
  %v1727 = vadd.f32 %v1688, %v1695
  %v1728 = vadd.f32 %v1689, %v1695
  %v1729 = vadd.f32 %v1697, %v598
  %v1730 = vadd.f32 %v1698, %v599
  %v1731 = vadd.f32 %v1699, %v600
  %v1732 = vadd.f32 %v1700, %v601
  %v1733 = vadd.f32 %v1701, %v602
  %v1734 = vadd.f32 %v1702, %v603
  %v1735 = vadd.f32 %v1703, %v604
  %v1736 = vadd.f32 %v1704, %v605
  %v1737 = vadd.f32 %v1705, %v606
  %v1738 = vadd.f32 %v1706, %v607
  %v1739 = vadd.f32 %v1707, %v608
  %v1740 = vadd.f32 %v1708, %v609
  %v1741 = vadd.f32 %v1709, %v610
  %v1742 = vadd.f32 %v1710, %v611
  %v1743 = vadd.f32 %v1711, %v612
  %v1744 = vadd.f32 %v1712, %v613
  %v1745 = vadd.f32 %v1713, %v614
  %v1746 = vadd.f32 %v1714, %v615
  %v1747 = vadd.f32 %v1715, %v616
  %v1748 = vadd.f32 %v1716, %v617
  %v1749 = vadd.f32 %v1717, %v618
  %v1750 = vadd.f32 %v1718, %v619
  %v1751 = vadd.f32 %v1719, %v620
  %v1752 = vadd.f32 %v1720, %v621
  %v1753 = vadd.f32 %v1721, %v622
  %v1754 = vadd.f32 %v1722, %v623
  %v1755 = vadd.f32 %v1723, %v624
  %v1756 = vadd.f32 %v1724, %v625
  %v1757 = vadd.f32 %v1725, %v626
  %v1758 = vadd.f32 %v1726, %v627
  %v1759 = vadd.f32 %v1727, %v628
  %v1760 = vadd.f32 %v1728, %v629
  %v1761 = vmax.f32 %v1729, 0.0
  %v1762 = vmax.f32 %v1730, 0.0
  %v1763 = vmax.f32 %v1731, 0.0
  %v1764 = vmax.f32 %v1732, 0.0
  %v1765 = vmax.f32 %v1733, 0.0
  %v1766 = vmax.f32 %v1734, 0.0
  %v1767 = vmax.f32 %v1735, 0.0
  %v1768 = vmax.f32 %v1736, 0.0
  %v1769 = vmax.f32 %v1737, 0.0
  %v1770 = vmax.f32 %v1738, 0.0
  %v1771 = vmax.f32 %v1739, 0.0
  %v1772 = vmax.f32 %v1740, 0.0
  %v1773 = vmax.f32 %v1741, 0.0
  %v1774 = vmax.f32 %v1742, 0.0
  %v1775 = vmax.f32 %v1743, 0.0
  %v1776 = vmax.f32 %v1744, 0.0
  %v1777 = vmax.f32 %v1745, 0.0
  %v1778 = vmax.f32 %v1746, 0.0
  %v1779 = vmax.f32 %v1747, 0.0
  %v1780 = vmax.f32 %v1748, 0.0
  %v1781 = vmax.f32 %v1749, 0.0
  %v1782 = vmax.f32 %v1750, 0.0
  %v1783 = vmax.f32 %v1751, 0.0
  %v1784 = vmax.f32 %v1752, 0.0
  %v1785 = vmax.f32 %v1753, 0.0
  %v1786 = vmax.f32 %v1754, 0.0
  %v1787 = vmax.f32 %v1755, 0.0
  %v1788 = vmax.f32 %v1756, 0.0
  %v1789 = vmax.f32 %v1757, 0.0
  %v1790 = vmax.f32 %v1758, 0.0
  %v1791 = vmax.f32 %v1759, 0.0
  %v1792 = vmax.f32 %v1760, 0.0
  %1793 = vst [vmem:[%s11] sm:$0xff] %v1761
  %1794 = vst [vmem:[%s11 + $0x8] sm:$0xff] %v1762
  %1795 = vst [vmem:[%s11 + $0x10] sm:$0xff] %v1763
  %1796 = vst [vmem:[%s11 + $0x18] sm:$0xff] %v1764
  %1797 = vst [vmem:[%s11 + $0x20] sm:$0xff] %v1765
  %1798 = vst [vmem:[%s11 + $0x28] sm:$0xff] %v1766
  %1799 = vst [vmem:[%s11 + $0x30] sm:$0xff] %v1767
  %1800 = vst [vmem:[%s11 + $0x38] sm:$0xff] %v1768
  %1801 = vst [vmem:[%s11 + $0x40] sm:$0xff] %v1769
  %1802 = vst [vmem:[%s11 + $0x48] sm:$0xff] %v1770
  %1803 = vst [vmem:[%s11 + $0x50] sm:$0xff] %v1771
  %1804 = vst [vmem:[%s11 + $0x58] sm:$0xff] %v1772
  %1805 = vst [vmem:[%s11 + $0x60] sm:$0xff] %v1773
  %1806 = vst [vmem:[%s11 + $0x68] sm:$0xff] %v1774
  %1807 = vst [vmem:[%s11 + $0x70] sm:$0xff] %v1775
  %1808 = vst [vmem:[%s11 + $0x78] sm:$0xff] %v1776
  %1809 = vst [vmem:[%s11 + $0x80] sm:$0xff] %v1777
  %1810 = vst [vmem:[%s11 + $0x88] sm:$0xff] %v1778
  %1811 = vst [vmem:[%s11 + $0x90] sm:$0xff] %v1779
  %1812 = vst [vmem:[%s11 + $0x98] sm:$0xff] %v1780
  %1813 = vst [vmem:[%s11 + $0xa0] sm:$0xff] %v1781
  %1814 = vst [vmem:[%s11 + $0xa8] sm:$0xff] %v1782
  %1815 = vst [vmem:[%s11 + $0xb0] sm:$0xff] %v1783
  %1816 = vst [vmem:[%s11 + $0xb8] sm:$0xff] %v1784
  %1817 = vst [vmem:[%s11 + $0xc0] sm:$0xff] %v1785
  %1818 = vst [vmem:[%s11 + $0xc8] sm:$0xff] %v1786
  %1819 = vst [vmem:[%s11 + $0xd0] sm:$0xff] %v1787
  %1820 = vst [vmem:[%s11 + $0xd8] sm:$0xff] %v1788
  %1821 = vst [vmem:[%s11 + $0xe0] sm:$0xff] %v1789
  %1822 = vst [vmem:[%s11 + $0xe8] sm:$0xff] %v1790
  %1823 = vst [vmem:[%s11 + $0xf0] sm:$0xff] %v1791
  %1824 = vst [vmem:[%s11 + $0xf8] sm:$0xff] %v1792
  // Predicated region
  $region46: #{_lambda_.3} parent=0 // pred_check
    _
  $region47: #{_lambda_.3} parent=0 // pred_check_branch
    %1826 = sbr.rel (0) target = $region49
  $region48: #{_lambda_.3} parent=0 // pred_region
    _
  $region49: #{_lambda_.3} parent=0 // pred_fallthru
    _
  // Predicated region
  $region50: #{_lambda_.3} parent=0 // pred_check
    _
  $region51: #{_lambda_.3} parent=0 // pred_check_branch
    %1828 = sbr.rel (0) target = $region53
  $region52: #{_lambda_.3} parent=0 // pred_region
    _
  $region53: #{_lambda_.3} parent=0 // pred_fallthru
    _

// kernel: _lambda_.2
$region0: #{_lambda_.2}
  #allocation0 [shape = 'u32[]', space=smem, size = 0x4, offset = 0x4, fixed_abs, tag = 'smem constant byte address 0x4 - core index']
  #allocation1 [shape = 'u32[144,128]{1,0:T(1,128)}', space=vmem, size = 0x12000, scoped, tag = 'internal scratch']
  %s0 = inlined_call_operand.vmem [shape: f32[256,128], index: 0, kind: input, shape index: {}]
  %s1 = inlined_call_operand.hbm [shape: f32[128,128], index: 1, kind: input, shape index: {}]
  %s2 = inlined_call_operand.vmem [shape: f32[1,128], index: 2, kind: input, shape index: {}]
  %s3 = inlined_call_operand.hbm [shape: f32[128,128], index: 3, kind: input, shape index: {}]
  %s4 = inlined_call_operand.vmem [shape: f32[1,128], index: 4, kind: input, shape index: {}]
  %s5 = inlined_call_operand.vmem [shape: f32[128,128], index: 5, kind: input, shape index: {}]
  %s6 = inlined_call_operand.vmem [shape: f32[128,128], index: 6, kind: input, shape index: {}]
  %s7 = inlined_call_operand.vmem [shape: f32[1,128], index: 7, kind: input, shape index: {}]
  %s8 = inlined_call_operand.vmem [shape: f32[256,128], index: 8, kind: output, shape index: {}]
  %s9 = sld [smem:[#allocation0]]
  $region50: #{_lambda_.2} parent=0
    _
  %s11 = ssub.s32 1, %s9
  %s12 = scalar_select 0, %s11, %s9
  $region1: #{_lambda_.2} parent=0
    #allocation2 [shape = 'u8[65536]{0}', space=vmem, size = 0x10000, scoped, tag = 'input window, operand 1, single buffered']
    #allocation3 [shape = 's32[1]{0}', space=sflag, size = 0x4, scoped, tag = 'scoped memory for _lambda_.2']
    #allocation4 [shape = 'u8[65536]{0}', space=vmem, size = 0x10000, scoped, tag = 'input window, operand 3, single buffered']
    #allocation5 [shape = 's32[1]{0}', space=sflag, size = 0x4, scoped, tag = 'scoped memory for _lambda_.2']
    %13 = vsyncpa [#allocation3], 0
    %14 = vsyncpa [#allocation5], 0
    // Predicated region
    $region2: #{_lambda_.2} parent=1 // pred_check
      _
    $region3: #{_lambda_.2} parent=1 // pred_check_branch
      %16 = sbr.rel (0) target = $region5
    $region4: #{_lambda_.2} parent=1 // pred_region
      _
    $region5: #{_lambda_.2} parent=1 // pred_fallthru
      _
    // Predicated region
    $region6: #{_lambda_.2} parent=1 // pred_check
      _
    $region7: #{_lambda_.2} parent=1 // pred_check_branch
      %18 = sbr.rel (0) target = $region9
    $region8: #{_lambda_.2} parent=1 // pred_region
      %s20 = ssub.s32 2048, 2048
      %21 = vsyncadd [#allocation3], %s20
      %s22 = sshll.u32 [#allocation2], 4
      %s23 = int_to_ptr.vmem [resolvable:$true] %s22
      %28 = dma.hbm_to_vmem [thread:$0]  %s1, 2048, %s23, [#allocation3], 128, 128, 8
    $region9: #{_lambda_.2} parent=1 // pred_fallthru
      _
    // Predicated region
    $region10: #{_lambda_.2} parent=1 // pred_check
      _
    $region11: #{_lambda_.2} parent=1 // pred_check_branch
      %30 = sbr.rel (0) target = $region13
    $region12: #{_lambda_.2} parent=1 // pred_region
      _
    $region13: #{_lambda_.2} parent=1 // pred_fallthru
      _
    // Predicated region
    $region14: #{_lambda_.2} parent=1 // pred_check
      _
    $region15: #{_lambda_.2} parent=1 // pred_check_branch
      %32 = sbr.rel (0) target = $region17
    $region16: #{_lambda_.2} parent=1 // pred_region
      %s34 = ssub.s32 2048, 2048
      %35 = vsyncadd [#allocation5], %s34
      %s36 = sshll.u32 [#allocation4], 4
      %s37 = int_to_ptr.vmem [resolvable:$true] %s36
      %42 = dma.hbm_to_vmem [thread:$0]  %s3, 2048, %s37, [#allocation5], 128, 128, 8
    $region17: #{_lambda_.2} parent=1 // pred_fallthru
      _
    // Predicated region
    $region18: #{_lambda_.2} parent=1 // pred_check
      _
    $region19: #{_lambda_.2} parent=1 // pred_check_branch
      %44 = sbr.rel (0) target = $region21
    $region20: #{_lambda_.2} parent=1 // pred_region
      _
    $region21: #{_lambda_.2} parent=1 // pred_fallthru
      _
    // Predicated region
    $region22: #{_lambda_.2} parent=1 // pred_check
      _
    $region23: #{_lambda_.2} parent=1 // pred_check_branch
      %46 = sbr.rel (0) target = $region25
    $region24: #{_lambda_.2} parent=1 // pred_region
      _
    $region25: #{_lambda_.2} parent=1 // pred_fallthru
      _
    // Predicated region
    $region26: #{_lambda_.2} parent=1 // pred_check
      _
    $region27: #{_lambda_.2} parent=1 // pred_check_branch
      %48 = sbr.rel (0) target = $region29
    $region28: #{_lambda_.2} parent=1 // pred_region
      _
    $region29: #{_lambda_.2} parent=1 // pred_fallthru
      _
    // Predicated region
    $region30: #{_lambda_.2} parent=1 // pred_check
      _
    $region31: #{_lambda_.2} parent=1 // pred_check_branch
      %50 = sbr.rel (0) target = $region33
    $region32: #{_lambda_.2} parent=1 // pred_region
      _
    $region33: #{_lambda_.2} parent=1 // pred_fallthru
      _
    // Predicated region
    $region34: #{_lambda_.2} parent=1 // pred_check
      _
    $region35: #{_lambda_.2} parent=1 // pred_check_branch
      %52 = sbr.rel (0) target = $region37
    $region36: #{_lambda_.2} parent=1 // pred_region
      %53 = dma.done [#allocation3], 2048
    $region37: #{_lambda_.2} parent=1 // pred_fallthru
      _
    // Predicated region
    $region38: #{_lambda_.2} parent=1 // pred_check
      _
    $region39: #{_lambda_.2} parent=1 // pred_check_branch
      %55 = sbr.rel (0) target = $region41
    $region40: #{_lambda_.2} parent=1 // pred_region
      %56 = dma.done [#allocation5], 2048
    $region41: #{_lambda_.2} parent=1 // pred_fallthru
      _
    %v57 = vld [vmem:[%s0] sm:$0xff]
    %v58 = vld [vmem:[%s0 + $0x8] sm:$0xff]
    %v59 = vld [vmem:[%s0 + $0x10] sm:$0xff]
    %v60 = vld [vmem:[%s0 + $0x18] sm:$0xff]
    %v61 = vld [vmem:[%s0 + $0x20] sm:$0xff]
    %v62 = vld [vmem:[%s0 + $0x28] sm:$0xff]
    %v63 = vld [vmem:[%s0 + $0x30] sm:$0xff]
    %v64 = vld [vmem:[%s0 + $0x38] sm:$0xff]
    %v65 = vld [vmem:[%s0 + $0x40] sm:$0xff]
    %v66 = vld [vmem:[%s0 + $0x48] sm:$0xff]
    %v67 = vld [vmem:[%s0 + $0x50] sm:$0xff]
    %v68 = vld [vmem:[%s0 + $0x58] sm:$0xff]
    %v69 = vld [vmem:[%s0 + $0x60] sm:$0xff]
    %v70 = vld [vmem:[%s0 + $0x68] sm:$0xff]
    %v71 = vld [vmem:[%s0 + $0x70] sm:$0xff]
    %v72 = vld [vmem:[%s0 + $0x78] sm:$0xff]
    %v73 = vld [vmem:[%s0 + $0x80] sm:$0xff]
    %v74 = vld [vmem:[%s0 + $0x88] sm:$0xff]
    %v75 = vld [vmem:[%s0 + $0x90] sm:$0xff]
    %v76 = vld [vmem:[%s0 + $0x98] sm:$0xff]
    %v77 = vld [vmem:[%s0 + $0xa0] sm:$0xff]
    %v78 = vld [vmem:[%s0 + $0xa8] sm:$0xff]
    %v79 = vld [vmem:[%s0 + $0xb0] sm:$0xff]
    %v80 = vld [vmem:[%s0 + $0xb8] sm:$0xff]
    %v81 = vld [vmem:[%s0 + $0xc0] sm:$0xff]
    %v82 = vld [vmem:[%s0 + $0xc8] sm:$0xff]
    %v83 = vld [vmem:[%s0 + $0xd0] sm:$0xff]
    %v84 = vld [vmem:[%s0 + $0xd8] sm:$0xff]
    %v85 = vld [vmem:[%s0 + $0xe0] sm:$0xff]
    %v86 = vld [vmem:[%s0 + $0xe8] sm:$0xff]
    %v87 = vld [vmem:[%s0 + $0xf0] sm:$0xff]
    %v88 = vld [vmem:[%s0 + $0xf8] sm:$0xff]
    %v89 = vld [vmem:[#allocation2] sm:$0xff]
    %v90 = vld [vmem:[#allocation2 + $0x8] sm:$0xff]
    %v91 = vld [vmem:[#allocation2 + $0x10] sm:$0xff]
    %v92 = vld [vmem:[#allocation2 + $0x18] sm:$0xff]
    %v93 = vld [vmem:[#allocation2 + $0x20] sm:$0xff]
    %v94 = vld [vmem:[#allocation2 + $0x28] sm:$0xff]
    %v95 = vld [vmem:[#allocation2 + $0x30] sm:$0xff]
    %v96 = vld [vmem:[#allocation2 + $0x38] sm:$0xff]
    %v97 = vld [vmem:[#allocation2 + $0x40] sm:$0xff]
    %v98 = vld [vmem:[#allocation2 + $0x48] sm:$0xff]
    %v99 = vld [vmem:[#allocation2 + $0x50] sm:$0xff]
    %v100 = vld [vmem:[#allocation2 + $0x58] sm:$0xff]
    %v101 = vld [vmem:[#allocation2 + $0x60] sm:$0xff]
    %v102 = vld [vmem:[#allocation2 + $0x68] sm:$0xff]
    %v103 = vld [vmem:[#allocation2 + $0x70] sm:$0xff]
    %v104 = vld [vmem:[#allocation2 + $0x78] sm:$0xff]
    %v105 = vld [vmem:[%s2] sm:$0x1]
    %v107 = vlaneseq
    %v108 = vshrl.u32 %v107, 7
    %v109 = vsub.s32 0, %v108
    %v110 = vrot.slane %v105, %v109
    %112 = vmatprep.subr.mxu0 0.0
    %113 = vmatpush1.msra.mxu0 %v89
    %114 = vmatprep.subr.mxu0 0.0
    %115 = vmatpush1.msra.mxu0 %v90
    %116 = vmatprep.subr.mxu0 0.0
    %117 = vmatpush1.msra.mxu0 %v91
    %118 = vmatprep.subr.mxu0 0.0
    %119 = vmatpush1.msra.mxu0 %v92
    %120 = vmatprep.subr.mxu0 0.0
    %121 = vmatpush1.msra.mxu0 %v93
    %122 = vmatprep.subr.mxu0 0.0
    %123 = vmatpush1.msra.mxu0 %v94
    %124 = vmatprep.subr.mxu0 0.0
    %125 = vmatpush1.msra.mxu0 %v95
    %126 = vmatprep.subr.mxu0 0.0
    %127 = vmatpush1.msra.mxu0 %v96
    %128 = vmatprep.subr.mxu0 0.0
    %129 = vmatpush1.msra.mxu0 %v97
    %130 = vmatprep.subr.mxu0 0.0
    %131 = vmatpush1.msra.mxu0 %v98
    %132 = vmatprep.subr.mxu0 0.0
    %133 = vmatpush1.msra.mxu0 %v99
    %134 = vmatprep.subr.mxu0 0.0
    %135 = vmatpush1.msra.mxu0 %v100
    %136 = vmatprep.subr.mxu0 0.0
    %137 = vmatpush1.msra.mxu0 %v101
    %138 = vmatprep.subr.mxu0 0.0
    %139 = vmatpush1.msra.mxu0 %v102
    %140 = vmatprep.subr.mxu0 0.0
    %141 = vmatpush1.msra.mxu0 %v103
    %142 = vmatprep.subr.mxu0 0.0
    %143 = vmatpush1.msra.mxu0 %v104
    %144 = vmatprep.subr.mxu0 0.0
    %145 = vmatpush1.msra.mxu0 0.0
    %146 = vmatprep.subr.mxu0 0.0
    %147 = vmatpush1.msra.mxu0 0.0
    %148 = vmatprep.subr.mxu0 0.0
    %149 = vmatpush1.msra.mxu0 0.0
    %150 = vmatprep.subr.mxu0 0.0
    %151 = vmatpush1.msra.mxu0 0.0
    %152 = vmatprep.subr.mxu0 0.0
    %153 = vmatpush1.msra.mxu0 0.0
    %154 = vmatprep.subr.mxu0 0.0
    %155 = vmatpush1.msra.mxu0 0.0
    %156 = vmatprep.subr.mxu0 0.0
    %157 = vmatpush1.msra.mxu0 0.0
    %158 = vmatprep.subr.mxu0 0.0
    %159 = vmatpush1.msra.mxu0 0.0
    %160 = vmatprep.subr.mxu0 0.0
    %161 = vmatpush1.msra.mxu0 0.0
    %162 = vmatprep.subr.mxu0 0.0
    %163 = vmatpush1.msra.mxu0 0.0
    %164 = vmatprep.subr.mxu0 0.0
    %165 = vmatpush1.msra.mxu0 0.0
    %166 = vmatprep.subr.mxu0 0.0
    %167 = vmatpush1.msra.mxu0 0.0
    %168 = vmatprep.subr.mxu0 0.0
    %169 = vmatpush1.msra.mxu0 0.0
    %170 = vmatprep.subr.mxu0 0.0
    %171 = vmatpush1.msra.mxu0 0.0
    %172 = vmatprep.subr.mxu0 0.0
    %173 = vmatpush1.msra.mxu0 0.0
    %174 = vmatprep.subr.mxu0 0.0
    %175 = vmatpush1.msra.mxu0 0.0
    %176 = vmatprep.mubr.f32.mxu0 0.0
    %177 = vmatmul.mubr.f32.gmra.mrb[0].mxu0 %v57
    %v178 = vpop.f32.mrb[0].mxu0
    %v179 = vadd.f32 %v110, %v178
    %v180 = vpop.f32.mrb[0].mxu0
    %181 = vmatprep.mubr.f32.mxu0 0.0
    %182 = vmatmul.mubr.f32.gmra.mrb[0].mxu0 %v58
    %v183 = vpop.f32.mrb[0].mxu0
    %v184 = vadd.f32 %v110, %v183
    %v185 = vpop.f32.mrb[0].mxu0
    %186 = vmatprep.mubr.f32.mxu0 0.0
    %187 = vmatmul.mubr.f32.gmra.mrb[0].mxu0 %v59
    %v188 = vpop.f32.mrb[0].mxu0
    %v189 = vadd.f32 %v110, %v188
    %v190 = vpop.f32.mrb[0].mxu0
    %191 = vmatprep.mubr.f32.mxu0 0.0
    %192 = vmatmul.mubr.f32.gmra.mrb[0].mxu0 %v60
    %v193 = vpop.f32.mrb[0].mxu0
    %v194 = vadd.f32 %v110, %v193
    %v195 = vpop.f32.mrb[0].mxu0
    %196 = vmatprep.mubr.f32.mxu0 0.0
    %197 = vmatmul.mubr.f32.gmra.mrb[0].mxu0 %v61
    %v198 = vpop.f32.mrb[0].mxu0
    %v199 = vadd.f32 %v110, %v198
    %v200 = vpop.f32.mrb[0].mxu0
    %201 = vmatprep.mubr.f32.mxu0 0.0
    %202 = vmatmul.mubr.f32.gmra.mrb[0].mxu0 %v62
    %v203 = vpop.f32.mrb[0].mxu0
    %v204 = vadd.f32 %v110, %v203
    %v205 = vpop.f32.mrb[0].mxu0
    %206 = vmatprep.mubr.f32.mxu0 0.0
    %207 = vmatmul.mubr.f32.gmra.mrb[0].mxu0 %v63
    %v208 = vpop.f32.mrb[0].mxu0
    %v209 = vadd.f32 %v110, %v208
    %v210 = vpop.f32.mrb[0].mxu0
    %211 = vmatprep.mubr.f32.mxu0 0.0
    %212 = vmatmul.mubr.f32.gmra.mrb[0].mxu0 %v64
    %v213 = vpop.f32.mrb[0].mxu0
    %v214 = vadd.f32 %v110, %v213
    %v215 = vpop.f32.mrb[0].mxu0
    %216 = vmatprep.mubr.f32.mxu0 0.0
    %217 = vmatmul.mubr.f32.gmra.mrb[0].mxu0 %v65
    %v218 = vpop.f32.mrb[0].mxu0
    %v219 = vadd.f32 %v110, %v218
    %v220 = vpop.f32.mrb[0].mxu0
    %221 = vmatprep.mubr.f32.mxu0 0.0
    %222 = vmatmul.mubr.f32.gmra.mrb[0].mxu0 %v66
    %v223 = vpop.f32.mrb[0].mxu0
    %v224 = vadd.f32 %v110, %v223
    %v225 = vpop.f32.mrb[0].mxu0
    %226 = vmatprep.mubr.f32.mxu0 0.0
    %227 = vmatmul.mubr.f32.gmra.mrb[0].mxu0 %v67
    %v228 = vpop.f32.mrb[0].mxu0
    %v229 = vadd.f32 %v110, %v228
    %v230 = vpop.f32.mrb[0].mxu0
    %231 = vmatprep.mubr.f32.mxu0 0.0
    %232 = vmatmul.mubr.f32.gmra.mrb[0].mxu0 %v68
    %v233 = vpop.f32.mrb[0].mxu0
    %v234 = vadd.f32 %v110, %v233
    %v235 = vpop.f32.mrb[0].mxu0
    %236 = vmatprep.mubr.f32.mxu0 0.0
    %237 = vmatmul.mubr.f32.gmra.mrb[0].mxu0 %v69
    %v238 = vpop.f32.mrb[0].mxu0
    %v239 = vadd.f32 %v110, %v238
    %v240 = vpop.f32.mrb[0].mxu0
    %241 = vmatprep.mubr.f32.mxu0 0.0
    %242 = vmatmul.mubr.f32.gmra.mrb[0].mxu0 %v70
    %v243 = vpop.f32.mrb[0].mxu0
    %v244 = vadd.f32 %v110, %v243
    %v245 = vpop.f32.mrb[0].mxu0
    %246 = vmatprep.mubr.f32.mxu0 0.0
    %247 = vmatmul.mubr.f32.gmra.mrb[0].mxu0 %v71
    %v248 = vpop.f32.mrb[0].mxu0
    %v249 = vadd.f32 %v110, %v248
    %v250 = vpop.f32.mrb[0].mxu0
    %251 = vmatprep.mubr.f32.mxu0 0.0
    %252 = vmatmul.mubr.f32.gmra.mrb[0].mxu0 %v72
    %v253 = vpop.f32.mrb[0].mxu0
    %v254 = vadd.f32 %v110, %v253
    %v255 = vpop.f32.mrb[0].mxu0
    %256 = vmatprep.mubr.f32.mxu0 0.0
    %257 = vmatmul.mubr.f32.gmra.mrb[0].mxu0 %v73
    %v258 = vpop.f32.mrb[0].mxu0
    %v259 = vadd.f32 %v110, %v258
    %v260 = vpop.f32.mrb[0].mxu0
    %261 = vmatprep.mubr.f32.mxu0 0.0
    %262 = vmatmul.mubr.f32.gmra.mrb[0].mxu0 %v74
    %v263 = vpop.f32.mrb[0].mxu0
    %v264 = vadd.f32 %v110, %v263
    %v265 = vpop.f32.mrb[0].mxu0
    %266 = vmatprep.mubr.f32.mxu0 0.0
    %267 = vmatmul.mubr.f32.gmra.mrb[0].mxu0 %v75
    %v268 = vpop.f32.mrb[0].mxu0
    %v269 = vadd.f32 %v110, %v268
    %v270 = vpop.f32.mrb[0].mxu0
    %271 = vmatprep.mubr.f32.mxu0 0.0
    %272 = vmatmul.mubr.f32.gmra.mrb[0].mxu0 %v76
    %v273 = vpop.f32.mrb[0].mxu0
    %v274 = vadd.f32 %v110, %v273
    %v275 = vpop.f32.mrb[0].mxu0
    %276 = vmatprep.mubr.f32.mxu0 0.0
    %277 = vmatmul.mubr.f32.gmra.mrb[0].mxu0 %v77
    %v278 = vpop.f32.mrb[0].mxu0
    %v279 = vadd.f32 %v110, %v278
    %v280 = vpop.f32.mrb[0].mxu0
    %281 = vmatprep.mubr.f32.mxu0 0.0
    %282 = vmatmul.mubr.f32.gmra.mrb[0].mxu0 %v78
    %v283 = vpop.f32.mrb[0].mxu0
    %v284 = vadd.f32 %v110, %v283
    %v285 = vpop.f32.mrb[0].mxu0
    %286 = vmatprep.mubr.f32.mxu0 0.0
    %287 = vmatmul.mubr.f32.gmra.mrb[0].mxu0 %v79
    %v288 = vpop.f32.mrb[0].mxu0
    %v289 = vadd.f32 %v110, %v288
    %v290 = vpop.f32.mrb[0].mxu0
    %291 = vmatprep.mubr.f32.mxu0 0.0
    %292 = vmatmul.mubr.f32.gmra.mrb[0].mxu0 %v80
    %v293 = vpop.f32.mrb[0].mxu0
    %v294 = vadd.f32 %v110, %v293
    %v295 = vpop.f32.mrb[0].mxu0
    %296 = vmatprep.mubr.f32.mxu0 0.0
    %297 = vmatmul.mubr.f32.gmra.mrb[0].mxu0 %v81
    %v298 = vpop.f32.mrb[0].mxu0
    %v299 = vadd.f32 %v110, %v298
    %v300 = vpop.f32.mrb[0].mxu0
    %301 = vmatprep.mubr.f32.mxu0 0.0
    %302 = vmatmul.mubr.f32.gmra.mrb[0].mxu0 %v82
    %v303 = vpop.f32.mrb[0].mxu0
    %v304 = vadd.f32 %v110, %v303
    %v305 = vpop.f32.mrb[0].mxu0
    %306 = vmatprep.mubr.f32.mxu0 0.0
    %307 = vmatmul.mubr.f32.gmra.mrb[0].mxu0 %v83
    %v308 = vpop.f32.mrb[0].mxu0
    %v309 = vadd.f32 %v110, %v308
    %v310 = vpop.f32.mrb[0].mxu0
    %311 = vmatprep.mubr.f32.mxu0 0.0
    %312 = vmatmul.mubr.f32.gmra.mrb[0].mxu0 %v84
    %v313 = vpop.f32.mrb[0].mxu0
    %v314 = vadd.f32 %v110, %v313
    %v315 = vpop.f32.mrb[0].mxu0
    %316 = vmatprep.mubr.f32.mxu0 0.0
    %317 = vmatmul.mubr.f32.gmra.mrb[0].mxu0 %v85
    %v318 = vpop.f32.mrb[0].mxu0
    %v319 = vadd.f32 %v110, %v318
    %v320 = vpop.f32.mrb[0].mxu0
    %321 = vmatprep.mubr.f32.mxu0 0.0
    %322 = vmatmul.mubr.f32.gmra.mrb[0].mxu0 %v86
    %v323 = vpop.f32.mrb[0].mxu0
    %v324 = vadd.f32 %v110, %v323
    %v325 = vpop.f32.mrb[0].mxu0
    %326 = vmatprep.mubr.f32.mxu0 0.0
    %327 = vmatmul.mubr.f32.gmra.mrb[0].mxu0 %v87
    %v328 = vpop.f32.mrb[0].mxu0
    %v329 = vadd.f32 %v110, %v328
    %v330 = vpop.f32.mrb[0].mxu0
    %331 = vmatprep.mubr.f32.mxu0 0.0
    %332 = vmatmul.mubr.f32.gmra.mrb[0].mxu0 %v88
    %v333 = vpop.f32.mrb[0].mxu0
    %v334 = vadd.f32 %v110, %v333
    %v335 = vpop.f32.mrb[0].mxu0
    %336 = vdwg.mxu0
    %v337 = vmax.f32 %v179, 0.0
    %v338 = vmax.f32 %v184, 0.0
    %v339 = vmax.f32 %v189, 0.0
    %v340 = vmax.f32 %v194, 0.0
    %v341 = vmax.f32 %v199, 0.0
    %v342 = vmax.f32 %v204, 0.0
    %v343 = vmax.f32 %v209, 0.0
    %v344 = vmax.f32 %v214, 0.0
    %v345 = vmax.f32 %v219, 0.0
    %v346 = vmax.f32 %v224, 0.0
    %v347 = vmax.f32 %v229, 0.0
    %v348 = vmax.f32 %v234, 0.0
    %v349 = vmax.f32 %v239, 0.0
    %v350 = vmax.f32 %v244, 0.0
    %v351 = vmax.f32 %v249, 0.0
    %v352 = vmax.f32 %v254, 0.0
    %v353 = vmax.f32 %v259, 0.0
    %v354 = vmax.f32 %v264, 0.0
    %v355 = vmax.f32 %v269, 0.0
    %v356 = vmax.f32 %v274, 0.0
    %v357 = vmax.f32 %v279, 0.0
    %v358 = vmax.f32 %v284, 0.0
    %v359 = vmax.f32 %v289, 0.0
    %v360 = vmax.f32 %v294, 0.0
    %v361 = vmax.f32 %v299, 0.0
    %v362 = vmax.f32 %v304, 0.0
    %v363 = vmax.f32 %v309, 0.0
    %v364 = vmax.f32 %v314, 0.0
    %v365 = vmax.f32 %v319, 0.0
    %v366 = vmax.f32 %v324, 0.0
    %v367 = vmax.f32 %v329, 0.0
    %v368 = vmax.f32 %v334, 0.0
    %v369 = vld [vmem:[#allocation4] sm:$0xff]
    %v370 = vld [vmem:[#allocation4 + $0x8] sm:$0xff]
    %v371 = vld [vmem:[#allocation4 + $0x10] sm:$0xff]
    %v372 = vld [vmem:[#allocation4 + $0x18] sm:$0xff]
    %v373 = vld [vmem:[#allocation4 + $0x20] sm:$0xff]
    %v374 = vld [vmem:[#allocation4 + $0x28] sm:$0xff]
    %v375 = vld [vmem:[#allocation4 + $0x30] sm:$0xff]
    %v376 = vld [vmem:[#allocation4 + $0x38] sm:$0xff]
    %v377 = vld [vmem:[#allocation4 + $0x40] sm:$0xff]
    %v378 = vld [vmem:[#allocation4 + $0x48] sm:$0xff]
    %v379 = vld [vmem:[#allocation4 + $0x50] sm:$0xff]
    %v380 = vld [vmem:[#allocation4 + $0x58] sm:$0xff]
    %v381 = vld [vmem:[#allocation4 + $0x60] sm:$0xff]
    %v382 = vld [vmem:[#allocation4 + $0x68] sm:$0xff]
    %v383 = vld [vmem:[#allocation4 + $0x70] sm:$0xff]
    %v384 = vld [vmem:[#allocation4 + $0x78] sm:$0xff]
    %v385 = vld [vmem:[%s4] sm:$0x1]
    %v387 = vlaneseq
    %v388 = vshrl.u32 %v387, 7
    %v389 = vsub.s32 0, %v388
    %v390 = vrot.slane %v385, %v389
    %392 = vmatprep.subr.mxu0 0.0
    %393 = vmatpush1.msra.mxu0 %v369
    %394 = vmatprep.subr.mxu0 0.0
    %395 = vmatpush1.msra.mxu0 %v370
    %396 = vmatprep.subr.mxu0 0.0
    %397 = vmatpush1.msra.mxu0 %v371
    %398 = vmatprep.subr.mxu0 0.0
    %399 = vmatpush1.msra.mxu0 %v372
    %400 = vmatprep.subr.mxu0 0.0
    %401 = vmatpush1.msra.mxu0 %v373
    %402 = vmatprep.subr.mxu0 0.0
    %403 = vmatpush1.msra.mxu0 %v374
    %404 = vmatprep.subr.mxu0 0.0
    %405 = vmatpush1.msra.mxu0 %v375
    %406 = vmatprep.subr.mxu0 0.0
    %407 = vmatpush1.msra.mxu0 %v376
    %408 = vmatprep.subr.mxu0 0.0
    %409 = vmatpush1.msra.mxu0 %v377
    %410 = vmatprep.subr.mxu0 0.0
    %411 = vmatpush1.msra.mxu0 %v378
    %412 = vmatprep.subr.mxu0 0.0
    %413 = vmatpush1.msra.mxu0 %v379
    %414 = vmatprep.subr.mxu0 0.0
    %415 = vmatpush1.msra.mxu0 %v380
    %416 = vmatprep.subr.mxu0 0.0
    %417 = vmatpush1.msra.mxu0 %v381
    %418 = vmatprep.subr.mxu0 0.0
    %419 = vmatpush1.msra.mxu0 %v382
    %420 = vmatprep.subr.mxu0 0.0
    %421 = vmatpush1.msra.mxu0 %v383
    %422 = vmatprep.subr.mxu0 0.0
    %423 = vmatpush1.msra.mxu0 %v384
    %424 = vmatprep.subr.mxu0 0.0
    %425 = vmatpush1.msra.mxu0 0.0
    %426 = vmatprep.subr.mxu0 0.0
    %427 = vmatpush1.msra.mxu0 0.0
    %428 = vmatprep.subr.mxu0 0.0
    %429 = vmatpush1.msra.mxu0 0.0
    %430 = vmatprep.subr.mxu0 0.0
    %431 = vmatpush1.msra.mxu0 0.0
    %432 = vmatprep.subr.mxu0 0.0
    %433 = vmatpush1.msra.mxu0 0.0
    %434 = vmatprep.subr.mxu0 0.0
    %435 = vmatpush1.msra.mxu0 0.0
    %436 = vmatprep.subr.mxu0 0.0
    %437 = vmatpush1.msra.mxu0 0.0
    %438 = vmatprep.subr.mxu0 0.0
    %439 = vmatpush1.msra.mxu0 0.0
    %440 = vmatprep.subr.mxu0 0.0
    %441 = vmatpush1.msra.mxu0 0.0
    %442 = vmatprep.subr.mxu0 0.0
    %443 = vmatpush1.msra.mxu0 0.0
    %444 = vmatprep.subr.mxu0 0.0
    %445 = vmatpush1.msra.mxu0 0.0
    %446 = vmatprep.subr.mxu0 0.0
    %447 = vmatpush1.msra.mxu0 0.0
    %448 = vmatprep.subr.mxu0 0.0
    %449 = vmatpush1.msra.mxu0 0.0
    %450 = vmatprep.subr.mxu0 0.0
    %451 = vmatpush1.msra.mxu0 0.0
    %452 = vmatprep.subr.mxu0 0.0
    %453 = vmatpush1.msra.mxu0 0.0
    %454 = vmatprep.subr.mxu0 0.0
    %455 = vmatpush1.msra.mxu0 0.0
    %456 = vmatprep.mubr.f32.mxu0 0.0
    %457 = vmatmul.mubr.f32.gmra.mrb[0].mxu0 %v337
    %v458 = vpop.f32.mrb[0].mxu0
    %v459 = vadd.f32 %v390, %v458
    %v460 = vpop.f32.mrb[0].mxu0
    %461 = vmatprep.mubr.f32.mxu0 0.0
    %462 = vmatmul.mubr.f32.gmra.mrb[0].mxu0 %v338
    %v463 = vpop.f32.mrb[0].mxu0
    %v464 = vadd.f32 %v390, %v463
    %v465 = vpop.f32.mrb[0].mxu0
    %466 = vmatprep.mubr.f32.mxu0 0.0
    %467 = vmatmul.mubr.f32.gmra.mrb[0].mxu0 %v339
    %v468 = vpop.f32.mrb[0].mxu0
    %v469 = vadd.f32 %v390, %v468
    %v470 = vpop.f32.mrb[0].mxu0
    %471 = vmatprep.mubr.f32.mxu0 0.0
    %472 = vmatmul.mubr.f32.gmra.mrb[0].mxu0 %v340
    %v473 = vpop.f32.mrb[0].mxu0
    %v474 = vadd.f32 %v390, %v473
    %v475 = vpop.f32.mrb[0].mxu0
    %476 = vmatprep.mubr.f32.mxu0 0.0
    %477 = vmatmul.mubr.f32.gmra.mrb[0].mxu0 %v341
    %v478 = vpop.f32.mrb[0].mxu0
    %v479 = vadd.f32 %v390, %v478
    %v480 = vpop.f32.mrb[0].mxu0
    %481 = vmatprep.mubr.f32.mxu0 0.0
    %482 = vmatmul.mubr.f32.gmra.mrb[0].mxu0 %v342
    %v483 = vpop.f32.mrb[0].mxu0
    %v484 = vadd.f32 %v390, %v483
    %v485 = vpop.f32.mrb[0].mxu0
    %486 = vmatprep.mubr.f32.mxu0 0.0
    %487 = vmatmul.mubr.f32.gmra.mrb[0].mxu0 %v343
    %v488 = vpop.f32.mrb[0].mxu0
    %v489 = vadd.f32 %v390, %v488
    %v490 = vpop.f32.mrb[0].mxu0
    %491 = vmatprep.mubr.f32.mxu0 0.0
    %492 = vmatmul.mubr.f32.gmra.mrb[0].mxu0 %v344
    %v493 = vpop.f32.mrb[0].mxu0
    %v494 = vadd.f32 %v390, %v493
    %v495 = vpop.f32.mrb[0].mxu0
    %496 = vmatprep.mubr.f32.mxu0 0.0
    %497 = vmatmul.mubr.f32.gmra.mrb[0].mxu0 %v345
    %v498 = vpop.f32.mrb[0].mxu0
    %v499 = vadd.f32 %v390, %v498
    %v500 = vpop.f32.mrb[0].mxu0
    %501 = vmatprep.mubr.f32.mxu0 0.0
    %502 = vmatmul.mubr.f32.gmra.mrb[0].mxu0 %v346
    %v503 = vpop.f32.mrb[0].mxu0
    %v504 = vadd.f32 %v390, %v503
    %v505 = vpop.f32.mrb[0].mxu0
    %506 = vmatprep.mubr.f32.mxu0 0.0
    %507 = vmatmul.mubr.f32.gmra.mrb[0].mxu0 %v347
    %v508 = vpop.f32.mrb[0].mxu0
    %v509 = vadd.f32 %v390, %v508
    %v510 = vpop.f32.mrb[0].mxu0
    %511 = vmatprep.mubr.f32.mxu0 0.0
    %512 = vmatmul.mubr.f32.gmra.mrb[0].mxu0 %v348
    %v513 = vpop.f32.mrb[0].mxu0
    %v514 = vadd.f32 %v390, %v513
    %v515 = vpop.f32.mrb[0].mxu0
    %516 = vmatprep.mubr.f32.mxu0 0.0
    %517 = vmatmul.mubr.f32.gmra.mrb[0].mxu0 %v349
    %v518 = vpop.f32.mrb[0].mxu0
    %v519 = vadd.f32 %v390, %v518
    %v520 = vpop.f32.mrb[0].mxu0
    %521 = vmatprep.mubr.f32.mxu0 0.0
    %522 = vmatmul.mubr.f32.gmra.mrb[0].mxu0 %v350
    %v523 = vpop.f32.mrb[0].mxu0
    %v524 = vadd.f32 %v390, %v523
    %v525 = vpop.f32.mrb[0].mxu0
    %526 = vmatprep.mubr.f32.mxu0 0.0
    %527 = vmatmul.mubr.f32.gmra.mrb[0].mxu0 %v351
    %v528 = vpop.f32.mrb[0].mxu0
    %v529 = vadd.f32 %v390, %v528
    %v530 = vpop.f32.mrb[0].mxu0
    %531 = vmatprep.mubr.f32.mxu0 0.0
    %532 = vmatmul.mubr.f32.gmra.mrb[0].mxu0 %v352
    %v533 = vpop.f32.mrb[0].mxu0
    %v534 = vadd.f32 %v390, %v533
    %v535 = vpop.f32.mrb[0].mxu0
    %536 = vmatprep.mubr.f32.mxu0 0.0
    %537 = vmatmul.mubr.f32.gmra.mrb[0].mxu0 %v353
    %v538 = vpop.f32.mrb[0].mxu0
    %v539 = vadd.f32 %v390, %v538
    %v540 = vpop.f32.mrb[0].mxu0
    %541 = vmatprep.mubr.f32.mxu0 0.0
    %542 = vmatmul.mubr.f32.gmra.mrb[0].mxu0 %v354
    %v543 = vpop.f32.mrb[0].mxu0
    %v544 = vadd.f32 %v390, %v543
    %v545 = vpop.f32.mrb[0].mxu0
    %546 = vmatprep.mubr.f32.mxu0 0.0
    %547 = vmatmul.mubr.f32.gmra.mrb[0].mxu0 %v355
    %v548 = vpop.f32.mrb[0].mxu0
    %v549 = vadd.f32 %v390, %v548
    %v550 = vpop.f32.mrb[0].mxu0
    %551 = vmatprep.mubr.f32.mxu0 0.0
    %552 = vmatmul.mubr.f32.gmra.mrb[0].mxu0 %v356
    %v553 = vpop.f32.mrb[0].mxu0
    %v554 = vadd.f32 %v390, %v553
    %v555 = vpop.f32.mrb[0].mxu0
    %556 = vmatprep.mubr.f32.mxu0 0.0
    %557 = vmatmul.mubr.f32.gmra.mrb[0].mxu0 %v357
    %v558 = vpop.f32.mrb[0].mxu0
    %v559 = vadd.f32 %v390, %v558
    %v560 = vpop.f32.mrb[0].mxu0
    %561 = vmatprep.mubr.f32.mxu0 0.0
    %562 = vmatmul.mubr.f32.gmra.mrb[0].mxu0 %v358
    %v563 = vpop.f32.mrb[0].mxu0
    %v564 = vadd.f32 %v390, %v563
    %v565 = vpop.f32.mrb[0].mxu0
    %566 = vmatprep.mubr.f32.mxu0 0.0
    %567 = vmatmul.mubr.f32.gmra.mrb[0].mxu0 %v359
    %v568 = vpop.f32.mrb[0].mxu0
    %v569 = vadd.f32 %v390, %v568
    %v570 = vpop.f32.mrb[0].mxu0
    %571 = vmatprep.mubr.f32.mxu0 0.0
    %572 = vmatmul.mubr.f32.gmra.mrb[0].mxu0 %v360
    %v573 = vpop.f32.mrb[0].mxu0
    %v574 = vadd.f32 %v390, %v573
    %v575 = vpop.f32.mrb[0].mxu0
    %576 = vmatprep.mubr.f32.mxu0 0.0
    %577 = vmatmul.mubr.f32.gmra.mrb[0].mxu0 %v361
    %v578 = vpop.f32.mrb[0].mxu0
    %v579 = vadd.f32 %v390, %v578
    %v580 = vpop.f32.mrb[0].mxu0
    %581 = vmatprep.mubr.f32.mxu0 0.0
    %582 = vmatmul.mubr.f32.gmra.mrb[0].mxu0 %v362
    %v583 = vpop.f32.mrb[0].mxu0
    %v584 = vadd.f32 %v390, %v583
    %v585 = vpop.f32.mrb[0].mxu0
    %586 = vmatprep.mubr.f32.mxu0 0.0
    %587 = vmatmul.mubr.f32.gmra.mrb[0].mxu0 %v363
    %v588 = vpop.f32.mrb[0].mxu0
    %v589 = vadd.f32 %v390, %v588
    %v590 = vpop.f32.mrb[0].mxu0
    %591 = vmatprep.mubr.f32.mxu0 0.0
    %592 = vmatmul.mubr.f32.gmra.mrb[0].mxu0 %v364
    %v593 = vpop.f32.mrb[0].mxu0
    %v594 = vadd.f32 %v390, %v593
    %v595 = vpop.f32.mrb[0].mxu0
    %596 = vmatprep.mubr.f32.mxu0 0.0
    %597 = vmatmul.mubr.f32.gmra.mrb[0].mxu0 %v365
    %v598 = vpop.f32.mrb[0].mxu0
    %v599 = vadd.f32 %v390, %v598
    %v600 = vpop.f32.mrb[0].mxu0
    %601 = vmatprep.mubr.f32.mxu0 0.0
    %602 = vmatmul.mubr.f32.gmra.mrb[0].mxu0 %v366
    %v603 = vpop.f32.mrb[0].mxu0
    %v604 = vadd.f32 %v390, %v603
    %v605 = vpop.f32.mrb[0].mxu0
    %606 = vmatprep.mubr.f32.mxu0 0.0
    %607 = vmatmul.mubr.f32.gmra.mrb[0].mxu0 %v367
    %v608 = vpop.f32.mrb[0].mxu0
    %v609 = vadd.f32 %v390, %v608
    %v610 = vpop.f32.mrb[0].mxu0
    %611 = vmatprep.mubr.f32.mxu0 0.0
    %612 = vmatmul.mubr.f32.gmra.mrb[0].mxu0 %v368
    %v613 = vpop.f32.mrb[0].mxu0
    %v614 = vadd.f32 %v390, %v613
    %v615 = vpop.f32.mrb[0].mxu0
    %616 = vdwg.mxu0
    %v617 = vmax.f32 %v459, 0.0
    %v618 = vmax.f32 %v464, 0.0
    %v619 = vmax.f32 %v469, 0.0
    %v620 = vmax.f32 %v474, 0.0
    %v621 = vmax.f32 %v479, 0.0
    %v622 = vmax.f32 %v484, 0.0
    %v623 = vmax.f32 %v489, 0.0
    %v624 = vmax.f32 %v494, 0.0
    %v625 = vmax.f32 %v499, 0.0
    %v626 = vmax.f32 %v504, 0.0
    %v627 = vmax.f32 %v509, 0.0
    %v628 = vmax.f32 %v514, 0.0
    %v629 = vmax.f32 %v519, 0.0
    %v630 = vmax.f32 %v524, 0.0
    %v631 = vmax.f32 %v529, 0.0
    %v632 = vmax.f32 %v534, 0.0
    %v633 = vmax.f32 %v539, 0.0
    %v634 = vmax.f32 %v544, 0.0
    %v635 = vmax.f32 %v549, 0.0
    %v636 = vmax.f32 %v554, 0.0
    %v637 = vmax.f32 %v559, 0.0
    %v638 = vmax.f32 %v564, 0.0
    %v639 = vmax.f32 %v569, 0.0
    %v640 = vmax.f32 %v574, 0.0
    %v641 = vmax.f32 %v579, 0.0
    %v642 = vmax.f32 %v584, 0.0
    %v643 = vmax.f32 %v589, 0.0
    %v644 = vmax.f32 %v594, 0.0
    %v645 = vmax.f32 %v599, 0.0
    %v646 = vmax.f32 %v604, 0.0
    %v647 = vmax.f32 %v609, 0.0
    %v648 = vmax.f32 %v614, 0.0
    %v649 = vld [vmem:[%s5] sm:$0xff]
    %v650 = vld [vmem:[%s5 + $0x8] sm:$0xff]
    %v651 = vld [vmem:[%s5 + $0x10] sm:$0xff]
    %v652 = vld [vmem:[%s5 + $0x18] sm:$0xff]
    %v653 = vld [vmem:[%s5 + $0x20] sm:$0xff]
    %v654 = vld [vmem:[%s5 + $0x28] sm:$0xff]
    %v655 = vld [vmem:[%s5 + $0x30] sm:$0xff]
    %v656 = vld [vmem:[%s5 + $0x38] sm:$0xff]
    %v657 = vld [vmem:[%s5 + $0x40] sm:$0xff]
    %v658 = vld [vmem:[%s5 + $0x48] sm:$0xff]
    %v659 = vld [vmem:[%s5 + $0x50] sm:$0xff]
    %v660 = vld [vmem:[%s5 + $0x58] sm:$0xff]
    %v661 = vld [vmem:[%s5 + $0x60] sm:$0xff]
    %v662 = vld [vmem:[%s5 + $0x68] sm:$0xff]
    %v663 = vld [vmem:[%s5 + $0x70] sm:$0xff]
    %v664 = vld [vmem:[%s5 + $0x78] sm:$0xff]
    %v665 = vld [vmem:[%s6] sm:$0xff]
    %v666 = vld [vmem:[%s6 + $0x8] sm:$0xff]
    %v667 = vld [vmem:[%s6 + $0x10] sm:$0xff]
    %v668 = vld [vmem:[%s6 + $0x18] sm:$0xff]
    %v669 = vld [vmem:[%s6 + $0x20] sm:$0xff]
    %v670 = vld [vmem:[%s6 + $0x28] sm:$0xff]
    %v671 = vld [vmem:[%s6 + $0x30] sm:$0xff]
    %v672 = vld [vmem:[%s6 + $0x38] sm:$0xff]
    %v673 = vld [vmem:[%s6 + $0x40] sm:$0xff]
    %v674 = vld [vmem:[%s6 + $0x48] sm:$0xff]
    %v675 = vld [vmem:[%s6 + $0x50] sm:$0xff]
    %v676 = vld [vmem:[%s6 + $0x58] sm:$0xff]
    %v677 = vld [vmem:[%s6 + $0x60] sm:$0xff]
    %v678 = vld [vmem:[%s6 + $0x68] sm:$0xff]
    %v679 = vld [vmem:[%s6 + $0x70] sm:$0xff]
    %v680 = vld [vmem:[%s6 + $0x78] sm:$0xff]
    %681 = vmatprep.subr.mxu0 0.0
    %682 = vmatpush1.msra.mxu0 %v665
    %683 = vmatprep.subr.mxu0 0.0
    %684 = vmatpush1.msra.mxu0 %v666
    %685 = vmatprep.subr.mxu0 0.0
    %686 = vmatpush1.msra.mxu0 %v667
    %687 = vmatprep.subr.mxu0 0.0
    %688 = vmatpush1.msra.mxu0 %v668
    %689 = vmatprep.subr.mxu0 0.0
    %690 = vmatpush1.msra.mxu0 %v669
    %691 = vmatprep.subr.mxu0 0.0
    %692 = vmatpush1.msra.mxu0 %v670
    %693 = vmatprep.subr.mxu0 0.0
    %694 = vmatpush1.msra.mxu0 %v671
    %695 = vmatprep.subr.mxu0 0.0
    %696 = vmatpush1.msra.mxu0 %v672
    %697 = vmatprep.subr.mxu0 0.0
    %698 = vmatpush1.msra.mxu0 %v673
    %699 = vmatprep.subr.mxu0 0.0
    %700 = vmatpush1.msra.mxu0 %v674
    %701 = vmatprep.subr.mxu0 0.0
    %702 = vmatpush1.msra.mxu0 %v675
    %703 = vmatprep.subr.mxu0 0.0
    %704 = vmatpush1.msra.mxu0 %v676
    %705 = vmatprep.subr.mxu0 0.0
    %706 = vmatpush1.msra.mxu0 %v677
    %707 = vmatprep.subr.mxu0 0.0
    %708 = vmatpush1.msra.mxu0 %v678
    %709 = vmatprep.subr.mxu0 0.0
    %710 = vmatpush1.msra.mxu0 %v679
    %711 = vmatprep.subr.mxu0 0.0
    %712 = vmatpush1.msra.mxu0 %v680
    %713 = vmatprep.subr.mxu0 0.0
    %714 = vmatpush1.msra.mxu0 0.0
    %715 = vmatprep.subr.mxu0 0.0
    %716 = vmatpush1.msra.mxu0 0.0
    %717 = vmatprep.subr.mxu0 0.0
    %718 = vmatpush1.msra.mxu0 0.0
    %719 = vmatprep.subr.mxu0 0.0
    %720 = vmatpush1.msra.mxu0 0.0
    %721 = vmatprep.subr.mxu0 0.0
    %722 = vmatpush1.msra.mxu0 0.0
    %723 = vmatprep.subr.mxu0 0.0
    %724 = vmatpush1.msra.mxu0 0.0
    %725 = vmatprep.subr.mxu0 0.0
    %726 = vmatpush1.msra.mxu0 0.0
    %727 = vmatprep.subr.mxu0 0.0
    %728 = vmatpush1.msra.mxu0 0.0
    %729 = vmatprep.subr.mxu0 0.0
    %730 = vmatpush1.msra.mxu0 0.0
    %731 = vmatprep.subr.mxu0 0.0
    %732 = vmatpush1.msra.mxu0 0.0
    %733 = vmatprep.subr.mxu0 0.0
    %734 = vmatpush1.msra.mxu0 0.0
    %735 = vmatprep.subr.mxu0 0.0
    %736 = vmatpush1.msra.mxu0 0.0
    %737 = vmatprep.subr.mxu0 0.0
    %738 = vmatpush1.msra.mxu0 0.0
    %739 = vmatprep.subr.mxu0 0.0
    %740 = vmatpush1.msra.mxu0 0.0
    %741 = vmatprep.subr.mxu0 0.0
    %742 = vmatpush1.msra.mxu0 0.0
    %743 = vmatprep.subr.mxu0 0.0
    %744 = vmatpush1.msra.mxu0 0.0
    %745 = vmatprep.mubr.f32.mxu0 0.0
    %746 = vmatmul.mubr.f32.gmra.mrb[0].mxu0 %v337
    %v747 = vpop.f32.mrb[0].mxu0
    %v748 = vadd.f32 0.0, %v747
    %v749 = vpop.f32.mrb[0].mxu0
    %750 = vmatprep.mubr.f32.mxu0 0.0
    %751 = vmatmul.mubr.f32.gmra.mrb[0].mxu0 %v338
    %v752 = vpop.f32.mrb[0].mxu0
    %v753 = vadd.f32 0.0, %v752
    %v754 = vpop.f32.mrb[0].mxu0
    %755 = vmatprep.mubr.f32.mxu0 0.0
    %756 = vmatmul.mubr.f32.gmra.mrb[0].mxu0 %v339
    %v757 = vpop.f32.mrb[0].mxu0
    %v758 = vadd.f32 0.0, %v757
    %v759 = vpop.f32.mrb[0].mxu0
    %760 = vmatprep.mubr.f32.mxu0 0.0
    %761 = vmatmul.mubr.f32.gmra.mrb[0].mxu0 %v340
    %v762 = vpop.f32.mrb[0].mxu0
    %v763 = vadd.f32 0.0, %v762
    %v764 = vpop.f32.mrb[0].mxu0
    %765 = vmatprep.mubr.f32.mxu0 0.0
    %766 = vmatmul.mubr.f32.gmra.mrb[0].mxu0 %v341
    %v767 = vpop.f32.mrb[0].mxu0
    %v768 = vadd.f32 0.0, %v767
    %v769 = vpop.f32.mrb[0].mxu0
    %770 = vmatprep.mubr.f32.mxu0 0.0
    %771 = vmatmul.mubr.f32.gmra.mrb[0].mxu0 %v342
    %v772 = vpop.f32.mrb[0].mxu0
    %v773 = vadd.f32 0.0, %v772
    %v774 = vpop.f32.mrb[0].mxu0
    %775 = vmatprep.mubr.f32.mxu0 0.0
    %776 = vmatmul.mubr.f32.gmra.mrb[0].mxu0 %v343
    %v777 = vpop.f32.mrb[0].mxu0
    %v778 = vadd.f32 0.0, %v777
    %v779 = vpop.f32.mrb[0].mxu0
    %780 = vmatprep.mubr.f32.mxu0 0.0
    %781 = vmatmul.mubr.f32.gmra.mrb[0].mxu0 %v344
    %v782 = vpop.f32.mrb[0].mxu0
    %v783 = vadd.f32 0.0, %v782
    %v784 = vpop.f32.mrb[0].mxu0
    %785 = vmatprep.mubr.f32.mxu0 0.0
    %786 = vmatmul.mubr.f32.gmra.mrb[0].mxu0 %v345
    %v787 = vpop.f32.mrb[0].mxu0
    %v788 = vadd.f32 0.0, %v787
    %v789 = vpop.f32.mrb[0].mxu0
    %790 = vmatprep.mubr.f32.mxu0 0.0
    %791 = vmatmul.mubr.f32.gmra.mrb[0].mxu0 %v346
    %v792 = vpop.f32.mrb[0].mxu0
    %v793 = vadd.f32 0.0, %v792
    %v794 = vpop.f32.mrb[0].mxu0
    %795 = vmatprep.mubr.f32.mxu0 0.0
    %796 = vmatmul.mubr.f32.gmra.mrb[0].mxu0 %v347
    %v797 = vpop.f32.mrb[0].mxu0
    %v798 = vadd.f32 0.0, %v797
    %v799 = vpop.f32.mrb[0].mxu0
    %800 = vmatprep.mubr.f32.mxu0 0.0
    %801 = vmatmul.mubr.f32.gmra.mrb[0].mxu0 %v348
    %v802 = vpop.f32.mrb[0].mxu0
    %v803 = vadd.f32 0.0, %v802
    %v804 = vpop.f32.mrb[0].mxu0
    %805 = vmatprep.mubr.f32.mxu0 0.0
    %806 = vmatmul.mubr.f32.gmra.mrb[0].mxu0 %v349
    %v807 = vpop.f32.mrb[0].mxu0
    %v808 = vadd.f32 0.0, %v807
    %v809 = vpop.f32.mrb[0].mxu0
    %810 = vmatprep.mubr.f32.mxu0 0.0
    %811 = vmatmul.mubr.f32.gmra.mrb[0].mxu0 %v350
    %v812 = vpop.f32.mrb[0].mxu0
    %v813 = vadd.f32 0.0, %v812
    %v814 = vpop.f32.mrb[0].mxu0
    %815 = vmatprep.mubr.f32.mxu0 0.0
    %816 = vmatmul.mubr.f32.gmra.mrb[0].mxu0 %v351
    %v817 = vpop.f32.mrb[0].mxu0
    %v818 = vadd.f32 0.0, %v817
    %v819 = vpop.f32.mrb[0].mxu0
    %820 = vmatprep.mubr.f32.mxu0 0.0
    %821 = vmatmul.mubr.f32.gmra.mrb[0].mxu0 %v352
    %v822 = vpop.f32.mrb[0].mxu0
    %v823 = vadd.f32 0.0, %v822
    %v824 = vpop.f32.mrb[0].mxu0
    %825 = vmatprep.mubr.f32.mxu0 0.0
    %826 = vmatmul.mubr.f32.gmra.mrb[0].mxu0 %v353
    %v827 = vpop.f32.mrb[0].mxu0
    %v828 = vadd.f32 0.0, %v827
    %v829 = vpop.f32.mrb[0].mxu0
    %830 = vmatprep.mubr.f32.mxu0 0.0
    %831 = vmatmul.mubr.f32.gmra.mrb[0].mxu0 %v354
    %v832 = vpop.f32.mrb[0].mxu0
    %v833 = vadd.f32 0.0, %v832
    %v834 = vpop.f32.mrb[0].mxu0
    %835 = vmatprep.mubr.f32.mxu0 0.0
    %836 = vmatmul.mubr.f32.gmra.mrb[0].mxu0 %v355
    %v837 = vpop.f32.mrb[0].mxu0
    %v838 = vadd.f32 0.0, %v837
    %v839 = vpop.f32.mrb[0].mxu0
    %840 = vmatprep.mubr.f32.mxu0 0.0
    %841 = vmatmul.mubr.f32.gmra.mrb[0].mxu0 %v356
    %v842 = vpop.f32.mrb[0].mxu0
    %v843 = vadd.f32 0.0, %v842
    %v844 = vpop.f32.mrb[0].mxu0
    %845 = vmatprep.mubr.f32.mxu0 0.0
    %846 = vmatmul.mubr.f32.gmra.mrb[0].mxu0 %v357
    %v847 = vpop.f32.mrb[0].mxu0
    %v848 = vadd.f32 0.0, %v847
    %v849 = vpop.f32.mrb[0].mxu0
    %850 = vmatprep.mubr.f32.mxu0 0.0
    %851 = vmatmul.mubr.f32.gmra.mrb[0].mxu0 %v358
    %v852 = vpop.f32.mrb[0].mxu0
    %v853 = vadd.f32 0.0, %v852
    %v854 = vpop.f32.mrb[0].mxu0
    %855 = vmatprep.mubr.f32.mxu0 0.0
    %856 = vmatmul.mubr.f32.gmra.mrb[0].mxu0 %v359
    %v857 = vpop.f32.mrb[0].mxu0
    %v858 = vadd.f32 0.0, %v857
    %v859 = vpop.f32.mrb[0].mxu0
    %860 = vmatprep.mubr.f32.mxu0 0.0
    %861 = vmatmul.mubr.f32.gmra.mrb[0].mxu0 %v360
    %v862 = vpop.f32.mrb[0].mxu0
    %v863 = vadd.f32 0.0, %v862
    %v864 = vpop.f32.mrb[0].mxu0
    %865 = vmatprep.mubr.f32.mxu0 0.0
    %866 = vmatmul.mubr.f32.gmra.mrb[0].mxu0 %v361
    %v867 = vpop.f32.mrb[0].mxu0
    %v868 = vadd.f32 0.0, %v867
    %v869 = vpop.f32.mrb[0].mxu0
    %870 = vmatprep.mubr.f32.mxu0 0.0
    %871 = vmatmul.mubr.f32.gmra.mrb[0].mxu0 %v362
    %v872 = vpop.f32.mrb[0].mxu0
    %v873 = vadd.f32 0.0, %v872
    %v874 = vpop.f32.mrb[0].mxu0
    %875 = vmatprep.mubr.f32.mxu0 0.0
    %876 = vmatmul.mubr.f32.gmra.mrb[0].mxu0 %v363
    %v877 = vpop.f32.mrb[0].mxu0
    %v878 = vadd.f32 0.0, %v877
    %v879 = vpop.f32.mrb[0].mxu0
    %880 = vmatprep.mubr.f32.mxu0 0.0
    %881 = vmatmul.mubr.f32.gmra.mrb[0].mxu0 %v364
    %v882 = vpop.f32.mrb[0].mxu0
    %v883 = vadd.f32 0.0, %v882
    %v884 = vpop.f32.mrb[0].mxu0
    %885 = vmatprep.mubr.f32.mxu0 0.0
    %886 = vmatmul.mubr.f32.gmra.mrb[0].mxu0 %v365
    %v887 = vpop.f32.mrb[0].mxu0
    %v888 = vadd.f32 0.0, %v887
    %v889 = vpop.f32.mrb[0].mxu0
    %890 = vmatprep.mubr.f32.mxu0 0.0
    %891 = vmatmul.mubr.f32.gmra.mrb[0].mxu0 %v366
    %v892 = vpop.f32.mrb[0].mxu0
    %v893 = vadd.f32 0.0, %v892
    %v894 = vpop.f32.mrb[0].mxu0
    %895 = vmatprep.mubr.f32.mxu0 0.0
    %896 = vmatmul.mubr.f32.gmra.mrb[0].mxu0 %v367
    %v897 = vpop.f32.mrb[0].mxu0
    %v898 = vadd.f32 0.0, %v897
    %v899 = vpop.f32.mrb[0].mxu0
    %900 = vmatprep.mubr.f32.mxu0 0.0
    %901 = vmatmul.mubr.f32.gmra.mrb[0].mxu0 %v368
    %v902 = vpop.f32.mrb[0].mxu0
    %v903 = vadd.f32 0.0, %v902
    %v904 = vpop.f32.mrb[0].mxu0
    %905 = vdwg.mxu0
    %906 = vmatprep.subr.mxu0 0.0
    %907 = vmatpush1.msra.mxu0 %v649
    %908 = vmatprep.subr.mxu0 0.0
    %909 = vmatpush1.msra.mxu0 %v650
    %910 = vmatprep.subr.mxu0 0.0
    %911 = vmatpush1.msra.mxu0 %v651
    %912 = vmatprep.subr.mxu0 0.0
    %913 = vmatpush1.msra.mxu0 %v652
    %914 = vmatprep.subr.mxu0 0.0
    %915 = vmatpush1.msra.mxu0 %v653
    %916 = vmatprep.subr.mxu0 0.0
    %917 = vmatpush1.msra.mxu0 %v654
    %918 = vmatprep.subr.mxu0 0.0
    %919 = vmatpush1.msra.mxu0 %v655
    %920 = vmatprep.subr.mxu0 0.0
    %921 = vmatpush1.msra.mxu0 %v656
    %922 = vmatprep.subr.mxu0 0.0
    %923 = vmatpush1.msra.mxu0 %v657
    %924 = vmatprep.subr.mxu0 0.0
    %925 = vmatpush1.msra.mxu0 %v658
    %926 = vmatprep.subr.mxu0 0.0
    %927 = vmatpush1.msra.mxu0 %v659
    %928 = vmatprep.subr.mxu0 0.0
    %929 = vmatpush1.msra.mxu0 %v660
    %930 = vmatprep.subr.mxu0 0.0
    %931 = vmatpush1.msra.mxu0 %v661
    %932 = vmatprep.subr.mxu0 0.0
    %933 = vmatpush1.msra.mxu0 %v662
    %934 = vmatprep.subr.mxu0 0.0
    %935 = vmatpush1.msra.mxu0 %v663
    %936 = vmatprep.subr.mxu0 0.0
    %937 = vmatpush1.msra.mxu0 %v664
    %938 = vmatprep.subr.mxu0 0.0
    %939 = vmatpush1.msra.mxu0 0.0
    %940 = vmatprep.subr.mxu0 0.0
    %941 = vmatpush1.msra.mxu0 0.0
    %942 = vmatprep.subr.mxu0 0.0
    %943 = vmatpush1.msra.mxu0 0.0
    %944 = vmatprep.subr.mxu0 0.0
    %945 = vmatpush1.msra.mxu0 0.0
    %946 = vmatprep.subr.mxu0 0.0
    %947 = vmatpush1.msra.mxu0 0.0
    %948 = vmatprep.subr.mxu0 0.0
    %949 = vmatpush1.msra.mxu0 0.0
    %950 = vmatprep.subr.mxu0 0.0
    %951 = vmatpush1.msra.mxu0 0.0
    %952 = vmatprep.subr.mxu0 0.0
    %953 = vmatpush1.msra.mxu0 0.0
    %954 = vmatprep.subr.mxu0 0.0
    %955 = vmatpush1.msra.mxu0 0.0
    %956 = vmatprep.subr.mxu0 0.0
    %957 = vmatpush1.msra.mxu0 0.0
    %958 = vmatprep.subr.mxu0 0.0
    %959 = vmatpush1.msra.mxu0 0.0
    %960 = vmatprep.subr.mxu0 0.0
    %961 = vmatpush1.msra.mxu0 0.0
    %962 = vmatprep.subr.mxu0 0.0
    %963 = vmatpush1.msra.mxu0 0.0
    %964 = vmatprep.subr.mxu0 0.0
    %965 = vmatpush1.msra.mxu0 0.0
    %966 = vmatprep.subr.mxu0 0.0
    %967 = vmatpush1.msra.mxu0 0.0
    %968 = vmatprep.subr.mxu0 0.0
    %969 = vmatpush1.msra.mxu0 0.0
    %970 = vmatprep.mubr.f32.mxu0 0.0
    %971 = vmatmul.mubr.f32.gmra.mrb[0].mxu0 %v617
    %v972 = vpop.f32.mrb[0].mxu0
    %v973 = vadd.f32 %v748, %v972
    %v974 = vpop.f32.mrb[0].mxu0
    %975 = vmatprep.mubr.f32.mxu0 0.0
    %976 = vmatmul.mubr.f32.gmra.mrb[0].mxu0 %v618
    %v977 = vpop.f32.mrb[0].mxu0
    %v978 = vadd.f32 %v753, %v977
    %v979 = vpop.f32.mrb[0].mxu0
    %980 = vmatprep.mubr.f32.mxu0 0.0
    %981 = vmatmul.mubr.f32.gmra.mrb[0].mxu0 %v619
    %v982 = vpop.f32.mrb[0].mxu0
    %v983 = vadd.f32 %v758, %v982
    %v984 = vpop.f32.mrb[0].mxu0
    %985 = vmatprep.mubr.f32.mxu0 0.0
    %986 = vmatmul.mubr.f32.gmra.mrb[0].mxu0 %v620
    %v987 = vpop.f32.mrb[0].mxu0
    %v988 = vadd.f32 %v763, %v987
    %v989 = vpop.f32.mrb[0].mxu0
    %990 = vmatprep.mubr.f32.mxu0 0.0
    %991 = vmatmul.mubr.f32.gmra.mrb[0].mxu0 %v621
    %v992 = vpop.f32.mrb[0].mxu0
    %v993 = vadd.f32 %v768, %v992
    %v994 = vpop.f32.mrb[0].mxu0
    %995 = vmatprep.mubr.f32.mxu0 0.0
    %996 = vmatmul.mubr.f32.gmra.mrb[0].mxu0 %v622
    %v997 = vpop.f32.mrb[0].mxu0
    %v998 = vadd.f32 %v773, %v997
    %v999 = vpop.f32.mrb[0].mxu0
    %1000 = vmatprep.mubr.f32.mxu0 0.0
    %1001 = vmatmul.mubr.f32.gmra.mrb[0].mxu0 %v623
    %v1002 = vpop.f32.mrb[0].mxu0
    %v1003 = vadd.f32 %v778, %v1002
    %v1004 = vpop.f32.mrb[0].mxu0
    %1005 = vmatprep.mubr.f32.mxu0 0.0
    %1006 = vmatmul.mubr.f32.gmra.mrb[0].mxu0 %v624
    %v1007 = vpop.f32.mrb[0].mxu0
    %v1008 = vadd.f32 %v783, %v1007
    %v1009 = vpop.f32.mrb[0].mxu0
    %1010 = vmatprep.mubr.f32.mxu0 0.0
    %1011 = vmatmul.mubr.f32.gmra.mrb[0].mxu0 %v625
    %v1012 = vpop.f32.mrb[0].mxu0
    %v1013 = vadd.f32 %v788, %v1012
    %v1014 = vpop.f32.mrb[0].mxu0
    %1015 = vmatprep.mubr.f32.mxu0 0.0
    %1016 = vmatmul.mubr.f32.gmra.mrb[0].mxu0 %v626
    %v1017 = vpop.f32.mrb[0].mxu0
    %v1018 = vadd.f32 %v793, %v1017
    %v1019 = vpop.f32.mrb[0].mxu0
    %1020 = vmatprep.mubr.f32.mxu0 0.0
    %1021 = vmatmul.mubr.f32.gmra.mrb[0].mxu0 %v627
    %v1022 = vpop.f32.mrb[0].mxu0
    %v1023 = vadd.f32 %v798, %v1022
    %v1024 = vpop.f32.mrb[0].mxu0
    %1025 = vmatprep.mubr.f32.mxu0 0.0
    %1026 = vmatmul.mubr.f32.gmra.mrb[0].mxu0 %v628
    %v1027 = vpop.f32.mrb[0].mxu0
    %v1028 = vadd.f32 %v803, %v1027
    %v1029 = vpop.f32.mrb[0].mxu0
    %1030 = vmatprep.mubr.f32.mxu0 0.0
    %1031 = vmatmul.mubr.f32.gmra.mrb[0].mxu0 %v629
    %v1032 = vpop.f32.mrb[0].mxu0
    %v1033 = vadd.f32 %v808, %v1032
    %v1034 = vpop.f32.mrb[0].mxu0
    %1035 = vmatprep.mubr.f32.mxu0 0.0
    %1036 = vmatmul.mubr.f32.gmra.mrb[0].mxu0 %v630
    %v1037 = vpop.f32.mrb[0].mxu0
    %v1038 = vadd.f32 %v813, %v1037
    %v1039 = vpop.f32.mrb[0].mxu0
    %1040 = vmatprep.mubr.f32.mxu0 0.0
    %1041 = vmatmul.mubr.f32.gmra.mrb[0].mxu0 %v631
    %v1042 = vpop.f32.mrb[0].mxu0
    %v1043 = vadd.f32 %v818, %v1042
    %v1044 = vpop.f32.mrb[0].mxu0
    %1045 = vmatprep.mubr.f32.mxu0 0.0
    %1046 = vmatmul.mubr.f32.gmra.mrb[0].mxu0 %v632
    %v1047 = vpop.f32.mrb[0].mxu0
    %v1048 = vadd.f32 %v823, %v1047
    %v1049 = vpop.f32.mrb[0].mxu0
    %1050 = vmatprep.mubr.f32.mxu0 0.0
    %1051 = vmatmul.mubr.f32.gmra.mrb[0].mxu0 %v633
    %v1052 = vpop.f32.mrb[0].mxu0
    %v1053 = vadd.f32 %v828, %v1052
    %v1054 = vpop.f32.mrb[0].mxu0
    %1055 = vmatprep.mubr.f32.mxu0 0.0
    %1056 = vmatmul.mubr.f32.gmra.mrb[0].mxu0 %v634
    %v1057 = vpop.f32.mrb[0].mxu0
    %v1058 = vadd.f32 %v833, %v1057
    %v1059 = vpop.f32.mrb[0].mxu0
    %1060 = vmatprep.mubr.f32.mxu0 0.0
    %1061 = vmatmul.mubr.f32.gmra.mrb[0].mxu0 %v635
    %v1062 = vpop.f32.mrb[0].mxu0
    %v1063 = vadd.f32 %v838, %v1062
    %v1064 = vpop.f32.mrb[0].mxu0
    %1065 = vmatprep.mubr.f32.mxu0 0.0
    %1066 = vmatmul.mubr.f32.gmra.mrb[0].mxu0 %v636
    %v1067 = vpop.f32.mrb[0].mxu0
    %v1068 = vadd.f32 %v843, %v1067
    %v1069 = vpop.f32.mrb[0].mxu0
    %1070 = vmatprep.mubr.f32.mxu0 0.0
    %1071 = vmatmul.mubr.f32.gmra.mrb[0].mxu0 %v637
    %v1072 = vpop.f32.mrb[0].mxu0
    %v1073 = vadd.f32 %v848, %v1072
    %v1074 = vpop.f32.mrb[0].mxu0
    %1075 = vmatprep.mubr.f32.mxu0 0.0
    %1076 = vmatmul.mubr.f32.gmra.mrb[0].mxu0 %v638
    %v1077 = vpop.f32.mrb[0].mxu0
    %v1078 = vadd.f32 %v853, %v1077
    %v1079 = vpop.f32.mrb[0].mxu0
    %1080 = vmatprep.mubr.f32.mxu0 0.0
    %1081 = vmatmul.mubr.f32.gmra.mrb[0].mxu0 %v639
    %v1082 = vpop.f32.mrb[0].mxu0
    %v1083 = vadd.f32 %v858, %v1082
    %v1084 = vpop.f32.mrb[0].mxu0
    %1085 = vmatprep.mubr.f32.mxu0 0.0
    %1086 = vmatmul.mubr.f32.gmra.mrb[0].mxu0 %v640
    %v1087 = vpop.f32.mrb[0].mxu0
    %v1088 = vadd.f32 %v863, %v1087
    %v1089 = vpop.f32.mrb[0].mxu0
    %1090 = vmatprep.mubr.f32.mxu0 0.0
    %1091 = vmatmul.mubr.f32.gmra.mrb[0].mxu0 %v641
    %v1092 = vpop.f32.mrb[0].mxu0
    %v1093 = vadd.f32 %v868, %v1092
    %v1094 = vpop.f32.mrb[0].mxu0
    %1095 = vmatprep.mubr.f32.mxu0 0.0
    %1096 = vmatmul.mubr.f32.gmra.mrb[0].mxu0 %v642
    %v1097 = vpop.f32.mrb[0].mxu0
    %v1098 = vadd.f32 %v873, %v1097
    %v1099 = vpop.f32.mrb[0].mxu0
    %1100 = vmatprep.mubr.f32.mxu0 0.0
    %1101 = vmatmul.mubr.f32.gmra.mrb[0].mxu0 %v643
    %v1102 = vpop.f32.mrb[0].mxu0
    %v1103 = vadd.f32 %v878, %v1102
    %v1104 = vpop.f32.mrb[0].mxu0
    %1105 = vmatprep.mubr.f32.mxu0 0.0
    %1106 = vmatmul.mubr.f32.gmra.mrb[0].mxu0 %v644
    %v1107 = vpop.f32.mrb[0].mxu0
    %v1108 = vadd.f32 %v883, %v1107
    %v1109 = vpop.f32.mrb[0].mxu0
    %1110 = vmatprep.mubr.f32.mxu0 0.0
    %1111 = vmatmul.mubr.f32.gmra.mrb[0].mxu0 %v645
    %v1112 = vpop.f32.mrb[0].mxu0
    %v1113 = vadd.f32 %v888, %v1112
    %v1114 = vpop.f32.mrb[0].mxu0
    %1115 = vmatprep.mubr.f32.mxu0 0.0
    %1116 = vmatmul.mubr.f32.gmra.mrb[0].mxu0 %v646
    %v1117 = vpop.f32.mrb[0].mxu0
    %v1118 = vadd.f32 %v893, %v1117
    %v1119 = vpop.f32.mrb[0].mxu0
    %1120 = vmatprep.mubr.f32.mxu0 0.0
    %1121 = vmatmul.mubr.f32.gmra.mrb[0].mxu0 %v647
    %v1122 = vpop.f32.mrb[0].mxu0
    %v1123 = vadd.f32 %v898, %v1122
    %v1124 = vpop.f32.mrb[0].mxu0
    %1125 = vmatprep.mubr.f32.mxu0 0.0
    %1126 = vmatmul.mubr.f32.gmra.mrb[0].mxu0 %v648
    %v1127 = vpop.f32.mrb[0].mxu0
    %v1128 = vadd.f32 %v903, %v1127
    %v1129 = vpop.f32.mrb[0].mxu0
    %1130 = vdwg.mxu0
    %v1131 = vld [vmem:[%s7] sm:$0x1]
    %v1133 = vlaneseq
    %v1134 = vshrl.u32 %v1133, 7
    %v1135 = vsub.s32 0, %v1134
    %v1136 = vrot.slane %v1131, %v1135
    %v1138 = vadd.f32 %v973, %v1136
    %v1139 = vadd.f32 %v978, %v1136
    %v1140 = vadd.f32 %v983, %v1136
    %v1141 = vadd.f32 %v988, %v1136
    %v1142 = vadd.f32 %v993, %v1136
    %v1143 = vadd.f32 %v998, %v1136
    %v1144 = vadd.f32 %v1003, %v1136
    %v1145 = vadd.f32 %v1008, %v1136
    %v1146 = vadd.f32 %v1013, %v1136
    %v1147 = vadd.f32 %v1018, %v1136
    %v1148 = vadd.f32 %v1023, %v1136
    %v1149 = vadd.f32 %v1028, %v1136
    %v1150 = vadd.f32 %v1033, %v1136
    %v1151 = vadd.f32 %v1038, %v1136
    %v1152 = vadd.f32 %v1043, %v1136
    %v1153 = vadd.f32 %v1048, %v1136
    %v1154 = vadd.f32 %v1053, %v1136
    %v1155 = vadd.f32 %v1058, %v1136
    %v1156 = vadd.f32 %v1063, %v1136
    %v1157 = vadd.f32 %v1068, %v1136
    %v1158 = vadd.f32 %v1073, %v1136
    %v1159 = vadd.f32 %v1078, %v1136
    %v1160 = vadd.f32 %v1083, %v1136
    %v1161 = vadd.f32 %v1088, %v1136
    %v1162 = vadd.f32 %v1093, %v1136
    %v1163 = vadd.f32 %v1098, %v1136
    %v1164 = vadd.f32 %v1103, %v1136
    %v1165 = vadd.f32 %v1108, %v1136
    %v1166 = vadd.f32 %v1113, %v1136
    %v1167 = vadd.f32 %v1118, %v1136
    %v1168 = vadd.f32 %v1123, %v1136
    %v1169 = vadd.f32 %v1128, %v1136
    %v1170 = vadd.f32 %v1138, %v617
    %v1171 = vadd.f32 %v1139, %v618
    %v1172 = vadd.f32 %v1140, %v619
    %v1173 = vadd.f32 %v1141, %v620
    %v1174 = vadd.f32 %v1142, %v621
    %v1175 = vadd.f32 %v1143, %v622
    %v1176 = vadd.f32 %v1144, %v623
    %v1177 = vadd.f32 %v1145, %v624
    %v1178 = vadd.f32 %v1146, %v625
    %v1179 = vadd.f32 %v1147, %v626
    %v1180 = vadd.f32 %v1148, %v627
    %v1181 = vadd.f32 %v1149, %v628
    %v1182 = vadd.f32 %v1150, %v629
    %v1183 = vadd.f32 %v1151, %v630
    %v1184 = vadd.f32 %v1152, %v631
    %v1185 = vadd.f32 %v1153, %v632
    %v1186 = vadd.f32 %v1154, %v633
    %v1187 = vadd.f32 %v1155, %v634
    %v1188 = vadd.f32 %v1156, %v635
    %v1189 = vadd.f32 %v1157, %v636
    %v1190 = vadd.f32 %v1158, %v637
    %v1191 = vadd.f32 %v1159, %v638
    %v1192 = vadd.f32 %v1160, %v639
    %v1193 = vadd.f32 %v1161, %v640
    %v1194 = vadd.f32 %v1162, %v641
    %v1195 = vadd.f32 %v1163, %v642
    %v1196 = vadd.f32 %v1164, %v643
    %v1197 = vadd.f32 %v1165, %v644
    %v1198 = vadd.f32 %v1166, %v645
    %v1199 = vadd.f32 %v1167, %v646
    %v1200 = vadd.f32 %v1168, %v647
    %v1201 = vadd.f32 %v1169, %v648
    %v1202 = vmax.f32 %v1170, 0.0
    %v1203 = vmax.f32 %v1171, 0.0
    %v1204 = vmax.f32 %v1172, 0.0
    %v1205 = vmax.f32 %v1173, 0.0
    %v1206 = vmax.f32 %v1174, 0.0
    %v1207 = vmax.f32 %v1175, 0.0
    %v1208 = vmax.f32 %v1176, 0.0
    %v1209 = vmax.f32 %v1177, 0.0
    %v1210 = vmax.f32 %v1178, 0.0
    %v1211 = vmax.f32 %v1179, 0.0
    %v1212 = vmax.f32 %v1180, 0.0
    %v1213 = vmax.f32 %v1181, 0.0
    %v1214 = vmax.f32 %v1182, 0.0
    %v1215 = vmax.f32 %v1183, 0.0
    %v1216 = vmax.f32 %v1184, 0.0
    %v1217 = vmax.f32 %v1185, 0.0
    %v1218 = vmax.f32 %v1186, 0.0
    %v1219 = vmax.f32 %v1187, 0.0
    %v1220 = vmax.f32 %v1188, 0.0
    %v1221 = vmax.f32 %v1189, 0.0
    %v1222 = vmax.f32 %v1190, 0.0
    %v1223 = vmax.f32 %v1191, 0.0
    %v1224 = vmax.f32 %v1192, 0.0
    %v1225 = vmax.f32 %v1193, 0.0
    %v1226 = vmax.f32 %v1194, 0.0
    %v1227 = vmax.f32 %v1195, 0.0
    %v1228 = vmax.f32 %v1196, 0.0
    %v1229 = vmax.f32 %v1197, 0.0
    %v1230 = vmax.f32 %v1198, 0.0
    %v1231 = vmax.f32 %v1199, 0.0
    %v1232 = vmax.f32 %v1200, 0.0
    %v1233 = vmax.f32 %v1201, 0.0
    %1234 = vst [vmem:[%s8] sm:$0xff] %v1202
    %1235 = vst [vmem:[%s8 + $0x8] sm:$0xff] %v1203
    %1236 = vst [vmem:[%s8 + $0x10] sm:$0xff] %v1204
    %1237 = vst [vmem:[%s8 + $0x18] sm:$0xff] %v1205
    %1238 = vst [vmem:[%s8 + $0x20] sm:$0xff] %v1206
    %1239 = vst [vmem:[%s8 + $0x28] sm:$0xff] %v1207
    %1240 = vst [vmem:[%s8 + $0x30] sm:$0xff] %v1208
    %1241 = vst [vmem:[%s8 + $0x38] sm:$0xff] %v1209
    %1242 = vst [vmem:[%s8 + $0x40] sm:$0xff] %v1210
    %1243 = vst [vmem:[%s8 + $0x48] sm:$0xff] %v1211
    %1244 = vst [vmem:[%s8 + $0x50] sm:$0xff] %v1212
    %1245 = vst [vmem:[%s8 + $0x58] sm:$0xff] %v1213
    %1246 = vst [vmem:[%s8 + $0x60] sm:$0xff] %v1214
    %1247 = vst [vmem:[%s8 + $0x68] sm:$0xff] %v1215
    %1248 = vst [vmem:[%s8 + $0x70] sm:$0xff] %v1216
    %1249 = vst [vmem:[%s8 + $0x78] sm:$0xff] %v1217
    %1250 = vst [vmem:[%s8 + $0x80] sm:$0xff] %v1218
    %1251 = vst [vmem:[%s8 + $0x88] sm:$0xff] %v1219
    %1252 = vst [vmem:[%s8 + $0x90] sm:$0xff] %v1220
    %1253 = vst [vmem:[%s8 + $0x98] sm:$0xff] %v1221
    %1254 = vst [vmem:[%s8 + $0xa0] sm:$0xff] %v1222
    %1255 = vst [vmem:[%s8 + $0xa8] sm:$0xff] %v1223
    %1256 = vst [vmem:[%s8 + $0xb0] sm:$0xff] %v1224
    %1257 = vst [vmem:[%s8 + $0xb8] sm:$0xff] %v1225
    %1258 = vst [vmem:[%s8 + $0xc0] sm:$0xff] %v1226
    %1259 = vst [vmem:[%s8 + $0xc8] sm:$0xff] %v1227
    %1260 = vst [vmem:[%s8 + $0xd0] sm:$0xff] %v1228
    %1261 = vst [vmem:[%s8 + $0xd8] sm:$0xff] %v1229
    %1262 = vst [vmem:[%s8 + $0xe0] sm:$0xff] %v1230
    %1263 = vst [vmem:[%s8 + $0xe8] sm:$0xff] %v1231
    %1264 = vst [vmem:[%s8 + $0xf0] sm:$0xff] %v1232
    %1265 = vst [vmem:[%s8 + $0xf8] sm:$0xff] %v1233
    // Predicated region
    $region42: #{_lambda_.2} parent=1 // pred_check
      _
    $region43: #{_lambda_.2} parent=1 // pred_check_branch
      %1267 = sbr.rel (0) target = $region45
    $region44: #{_lambda_.2} parent=1 // pred_region
      _
    $region45: #{_lambda_.2} parent=1 // pred_fallthru
      _
    // Predicated region
    $region46: #{_lambda_.2} parent=1 // pred_check
      _
    $region47: #{_lambda_.2} parent=1 // pred_check_branch
      %1269 = sbr.rel (0) target = $region49
    $region48: #{_lambda_.2} parent=1 // pred_region
      _
    $region49: #{_lambda_.2} parent=1 // pred_fallthru
      _
    %1270 = vsyncpa [#allocation3], 1
    %1271 = vsyncpa [#allocation5], 1

</llo_original>
